<compile_context>
chip_gen: v6e
topology: v6e:2x2x1
jax: 0.10.0
libtpu: 0.0.40
codegen_flags: <defaults>
</compile_context>

<pallas_src>
import math

import jax
import jax.numpy as jnp
from jax.experimental import pallas as pl

# ---- small synthetic config (shapes implied by the encoder forward) ----
B = 2           # batch
S = 8           # sequence length
H = 32          # hidden size
NHEAD = 4       # attention heads
HEAD_DIM = H // NHEAD
FFN = 64        # intermediate size
VOCAB = 128
NLAYERS = 2
LN_EPS = 1e-12
VEC_W = 128     # lane-aligned width of the packed bias/LN table

# rows of the packed per-layer vector table
_R_BQKV, _R_BO, _R_LN1G, _R_LN1B, _R_B1, _R_B2, _R_LN2G, _R_LN2B = range(8)


def _layernorm(x, g, b):
    mu = jnp.mean(x, axis=-1, keepdims=True)
    var = jnp.mean((x - mu) ** 2, axis=-1, keepdims=True)
    return (x - mu) * jax.lax.rsqrt(var + LN_EPS) * g + b


# --------------------------------------------------------------------------
# One fused kernel: all encoder layers (unrolled) + both pooling heads.
# No grid — a single invocation; activations never leave VMEM/vregs.
# --------------------------------------------------------------------------
def fused_encoder_kernel(x_ref, mask_ref, mask_col_ref,
                         wqkv_ref, wo_ref, w1_ref, w2_ref, vec_ref,
                         pw_ref, pb_ref,
                         out_def_ref, out_mean_ref):
    x = x_ref[...]                         # (B*S, H) activation slab
    mask = mask_ref[...]                   # (B, S), 1=keep 0=pad
    neg_bias = (1.0 - mask) * (-1e9)       # additive attention bias, computed once

    for l in range(NLAYERS):               # unrolled at trace time
        vecs = vec_ref[l]                   # (8, VEC_W) packed bias / LN table
        bqkv  = vecs[_R_BQKV:_R_BQKV + 1, 0:3 * H]
        bo    = vecs[_R_BO:_R_BO + 1, 0:H]
        ln1_g = vecs[_R_LN1G:_R_LN1G + 1, 0:H]
        ln1_b = vecs[_R_LN1B:_R_LN1B + 1, 0:H]
        b1    = vecs[_R_B1:_R_B1 + 1, 0:FFN]
        b2    = vecs[_R_B2:_R_B2 + 1, 0:H]
        ln2_g = vecs[_R_LN2G:_R_LN2G + 1, 0:H]
        ln2_b = vecs[_R_LN2B:_R_LN2B + 1, 0:H]

        # ---- QKV projection over the full (B*S, H) slab (one MXU matmul) ----
        # 1/sqrt(HEAD_DIM) is pre-folded into the Q columns/bias of wqkv.
        qkv = jnp.dot(x, wqkv_ref[l], preferred_element_type=jnp.float32) + bqkv
        qkv3 = qkv.reshape(B, S, 3 * H)      # leading-dim split only (layout-safe)

        # ---- multi-head attention: one batched einsum pair per head ----
        ctx_heads = []
        for h in range(NHEAD):
            q_h = qkv3[:, :, h * HEAD_DIM:(h + 1) * HEAD_DIM]                 # (B,S,D)
            k_h = qkv3[:, :, H + h * HEAD_DIM:H + (h + 1) * HEAD_DIM]
            v_h = qkv3[:, :, 2 * H + h * HEAD_DIM:2 * H + (h + 1) * HEAD_DIM]
            scores = jnp.einsum('bqd,bkd->bqk', q_h, k_h,
                                preferred_element_type=jnp.float32)           # (B,S,S)
            scores = scores + neg_bias[:, None, :]
            p = jnp.exp(scores - jnp.max(scores, axis=-1, keepdims=True))
            p = p * pl.reciprocal(jnp.sum(p, axis=-1, keepdims=True), approx=True)
            ctx_heads.append(jnp.einsum('bqk,bkd->bqd', p, v_h,
                                        preferred_element_type=jnp.float32))  # (B,S,D)
        ctx = jnp.concatenate(ctx_heads, axis=-1).reshape(B * S, H)

        attn_out = jnp.dot(ctx, wo_ref[l], preferred_element_type=jnp.float32) + bo

        # ---- residual + LayerNorm 1 ----
        h1 = _layernorm(x + attn_out, ln1_g, ln1_b)

        # ---- feed-forward ----
        # TODO(synk): HF BERT uses exact (erf) GELU; tanh approximation kept for robust lowering.
        f = jnp.dot(h1, w1_ref[l], preferred_element_type=jnp.float32) + b1
        f = jax.nn.gelu(f, approximate=True)
        f = jnp.dot(f, w2_ref[l], preferred_element_type=jnp.float32) + b2

        # ---- residual + LayerNorm 2 ----
        x = _layernorm(h1 + f, ln2_g, ln2_b)

    # ---- fused pooling epilogue (straight-line, no pl.when) ----
    h3 = x.reshape(B, S, H)
    cls = h3[:, 0, :]                                       # (B, H) CLS rows
    out_def_ref[...] = jnp.tanh(
        jnp.dot(cls, pw_ref[...], preferred_element_type=jnp.float32) + pb_ref[...])

    masked = x * mask_col_ref[...]                          # (B*S, H) * (B*S, 1)
    nums = jnp.sum(masked.reshape(B, S, H), axis=1)         # (B, H)
    den = jnp.maximum(jnp.sum(mask, axis=-1, keepdims=True), 1e-9)
    out_mean_ref[...] = nums / den


def _encoder_call(x_flat, mask_f32, mask_col, params):
    def full(shape):
        return pl.BlockSpec(shape, lambda: (0,) * len(shape))

    return pl.pallas_call(
        fused_encoder_kernel,
        out_shape=(jax.ShapeDtypeStruct((B, H), jnp.float32),   # 'default' pooled
                   jax.ShapeDtypeStruct((B, H), jnp.float32)),  # 'mean' pooled
        in_specs=[
            full((B * S, H)),               # activations
            full((B, S)),                   # attention mask
            full((B * S, 1)),               # mask as a column (for mean pooling)
            full((NLAYERS, H, 3 * H)),      # stacked wqkv (scale pre-folded)
            full((NLAYERS, H, H)),          # stacked wo
            full((NLAYERS, H, FFN)),        # stacked w1
            full((NLAYERS, FFN, H)),        # stacked w2
            full((NLAYERS, 8, VEC_W)),      # packed biases / LN params
            full((H, H)),                   # pooler W
            full((1, H)),                   # pooler b
        ],
        out_specs=(full((B, H)), full((B, H))),
    )(x_flat, mask_f32, mask_col,
      params['wqkv_fused'], params['wo'], params['w1'], params['w2'],
      params['vecs_fused'], params['pooler_w'], params['pooler_b'])


@jax.jit
def encoder_forward(params, input_ids, attention_mask):
    # embedding lookup + learned positions (glue left to XLA; dropout is a no-op at inference)
    x = jnp.take(params['tok_emb'], input_ids, axis=0) + params['pos_emb'][None, :, :]
    x_flat = x.astype(jnp.float32).reshape(B * S, H)
    mask_f32 = attention_mask.astype(jnp.float32)
    mask_col = mask_f32.reshape(B * S, 1)
    return _encoder_call(x_flat, mask_f32, mask_col, params)


def model_forward(params, input_ids, attention_mask, pooling='default'):
    out_default, out_mean = encoder_forward(params, input_ids, attention_mask)
    if pooling == 'default':
        return out_default
    if pooling == 'mean':
        return out_mean
    raise ValueError(pooling)


# --------------------------------------------------------------------------
# Parameter init (deterministic, synthetic "pretrained" encoder)
# --------------------------------------------------------------------------
def init_params(key):
    keys = jax.random.split(key, 16)

    def nrm(k, shape, std=0.02):
        return jax.random.normal(k, shape, jnp.float32) * std

    p = {
        'tok_emb': nrm(keys[0], (VOCAB, H)),
        'pos_emb': nrm(keys[1], (S, H)),
        'pooler_w': nrm(keys[2], (H, H)),
        'pooler_b': nrm(keys[3], (1, H)),
        'wqkv': nrm(keys[4], (NLAYERS, H, 3 * H)),
        'wo':   nrm(keys[5], (NLAYERS, H, H)),
        'w1':   nrm(keys[6], (NLAYERS, H, FFN)),
        'w2':   nrm(keys[7], (NLAYERS, FFN, H)),
        'bqkv': nrm(keys[8], (NLAYERS, 3 * H)),
        'bo':   nrm(keys[9], (NLAYERS, H)),
        'b1':   nrm(keys[10], (NLAYERS, FFN)),
        'b2':   nrm(keys[11], (NLAYERS, H)),
        'ln1_g': 1.0 + nrm(keys[12], (NLAYERS, H)),
        'ln1_b': nrm(keys[13], (NLAYERS, H)),
        'ln2_g': 1.0 + nrm(keys[14], (NLAYERS, H)),
        'ln2_b': nrm(keys[15], (NLAYERS, H)),
    }

    # One-time transform: fold the attention 1/sqrt(HEAD_DIM) scale into the Q
    # projection weights + bias consumed by the kernel (removes a per-layer mul).
    s = 1.0 / math.sqrt(HEAD_DIM)
    p['wqkv_fused'] = p['wqkv'].at[:, :, 0:H].multiply(s)
    bqkv_fused = p['bqkv'].at[:, 0:H].multiply(s)

    # Pack the 8 per-layer bias/LN vectors into one lane-aligned table
    # (NLAYERS, 8, VEC_W): bqkv, bo, ln1_g, ln1_b, b1, b2, ln2_g, ln2_b.
    def row(v):
        return jnp.pad(v, ((0, 0), (0, VEC_W - v.shape[-1])))

    p['vecs_fused'] = jnp.stack(
        [row(bqkv_fused), row(p['bo']), row(p['ln1_g']), row(p['ln1_b']),
         row(p['b1']), row(p['b2']), row(p['ln2_g']), row(p['ln2_b'])], axis=1)
    return p


# --------------------------------------------------------------------------
# Pure-JAX reference of the same math (numerical self-check, textbook form)
# --------------------------------------------------------------------------
def reference_forward(params, input_ids, attention_mask):
    x = jnp.take(params['tok_emb'], input_ids, axis=0) + params['pos_emb'][None, :, :]
    x = x.astype(jnp.float32)                      # (B, S, H)
    mask = attention_mask.astype(jnp.float32)      # (B, S)
    neg = (1.0 - mask) * (-1e9)
    for l in range(NLAYERS):
        qkv = x @ params['wqkv'][l] + params['bqkv'][l]
        q, k, v = qkv[..., :H], qkv[..., H:2 * H], qkv[..., 2 * H:]

        def split(t):
            return t.reshape(B, S, NHEAD, HEAD_DIM).transpose(0, 2, 1, 3)
        qh, kh, vh = split(q), split(k), split(v)
        sc = jnp.einsum('bhqd,bhkd->bhqk', qh, kh) / math.sqrt(HEAD_DIM)
        sc = sc + neg[:, None, None, :]
        p = jax.nn.softmax(sc, axis=-1)
        ctx = jnp.einsum('bhqk,bhkd->bhqd', p, vh).transpose(0, 2, 1, 3).reshape(B, S, H)
        attn = ctx @ params['wo'][l] + params['bo'][l]

        h1 = _layernorm(x + attn, params['ln1_g'][l], params['ln1_b'][l])
        f = jax.nn.gelu(h1 @ params['w1'][l] + params['b1'][l], approximate=True)
        f = f @ params['w2'][l] + params['b2'][l]
        x = _layernorm(h1 + f, params['ln2_g'][l], params['ln2_b'][l])

    pooled_default = jnp.tanh(x[:, 0, :] @ params['pooler_w'] + params['pooler_b'])
    m = mask[..., None]
    pooled_mean = jnp.sum(x * m, axis=1) / jnp.maximum(jnp.sum(m, axis=1), 1e-9)
    return pooled_default, pooled_mean


if __name__ == "__main__":
    key = jax.random.PRNGKey(0)
    pkey, ikey = jax.random.split(key)
    params = init_params(pkey)

    input_ids = jax.random.randint(ikey, (B, S), 0, VOCAB, dtype=jnp.int32)
    attention_mask = jnp.array([[1, 1, 1, 1, 1, 1, 0, 0],
                                [1, 1, 1, 1, 0, 0, 0, 0]], dtype=jnp.int32)

    out_default = model_forward(params, input_ids, attention_mask, pooling='default')
    out_mean = model_forward(params, input_ids, attention_mask, pooling='mean')
    jax.block_until_ready((out_default, out_mean))
    assert out_default.shape == (B, H) and out_mean.shape == (B, H)

    # numerical self-check vs. a pure-JAX reference of the same math
    ref_default, ref_mean = reference_forward(params, input_ids, attention_mask)
    assert jnp.allclose(out_default, ref_default, rtol=2e-2, atol=5e-3)
    assert jnp.allclose(out_mean, ref_mean, rtol=2e-2, atol=5e-3)

    print("KERNEL_OK")
</pallas_src>

<mosaic_0001>
module attributes {stable_mosaic.version = 11 : i64} {
  func.func @fused_encoder_kernel(%arg0: memref<16x32xf32, #tpu.memory_space<vmem>>, %arg1: memref<2x8xf32, #tpu.memory_space<vmem>>, %arg2: memref<16x1xf32, #tpu.memory_space<vmem>>, %arg3: memref<2x32x96xf32, #tpu.memory_space<vmem>>, %arg4: memref<2x32x32xf32, #tpu.memory_space<vmem>>, %arg5: memref<2x32x64xf32, #tpu.memory_space<vmem>>, %arg6: memref<2x64x32xf32, #tpu.memory_space<vmem>>, %arg7: memref<2x8x128xf32, #tpu.memory_space<vmem>>, %arg8: memref<32x32xf32, #tpu.memory_space<vmem>>, %arg9: memref<1x32xf32, #tpu.memory_space<vmem>>, %arg10: memref<2x32xf32, #tpu.memory_space<vmem>>, %arg11: memref<2x32xf32, #tpu.memory_space<vmem>>) attributes {dimension_semantics = [], scalar_prefetch = 0 : i64, scratch_operands = 0 : i64, tpu.core_type = #tpu.core_type<tc>} {
    %c0 = arith.constant 0 : index
    %c0_0 = arith.constant 0 : index
    %0 = vector.load %arg0[%c0, %c0_0] : memref<16x32xf32, #tpu.memory_space<vmem>>, vector<16x32xf32>
    %c0_1 = arith.constant 0 : index
    %c0_2 = arith.constant 0 : index
    %1 = vector.load %arg1[%c0_1, %c0_2] : memref<2x8xf32, #tpu.memory_space<vmem>>, vector<2x8xf32>
    %cst = arith.constant 1.000000e+00 : f32
    %2 = vector.broadcast %cst : f32 to vector<2x8xf32>
    %3 = arith.subf %2, %1 : vector<2x8xf32>
    %cst_3 = arith.constant -1.000000e+09 : f32
    %4 = vector.broadcast %cst_3 : f32 to vector<2x8xf32>
    %5 = arith.mulf %3, %4 : vector<2x8xf32>
    %c0_4 = arith.constant 0 : index
    %c0_5 = arith.constant 0 : index
    %c0_6 = arith.constant 0 : index
    %6 = vector.load %arg7[%c0_4, %c0_5, %c0_6] : memref<2x8x128xf32, #tpu.memory_space<vmem>>, vector<1x8x128xf32>
    %7 = vector.shape_cast %6 : vector<1x8x128xf32> to vector<8x128xf32>
    %8 = vector.extract_strided_slice %7 {offsets = [0, 0], sizes = [1, 96], strides = [1, 1]} : vector<8x128xf32> to vector<1x96xf32>
    %9 = vector.extract_strided_slice %7 {offsets = [1, 0], sizes = [1, 32], strides = [1, 1]} : vector<8x128xf32> to vector<1x32xf32>
    %10 = vector.extract_strided_slice %7 {offsets = [2, 0], sizes = [1, 32], strides = [1, 1]} : vector<8x128xf32> to vector<1x32xf32>
    %11 = vector.extract_strided_slice %7 {offsets = [3, 0], sizes = [1, 32], strides = [1, 1]} : vector<8x128xf32> to vector<1x32xf32>
    %12 = vector.extract_strided_slice %7 {offsets = [4, 0], sizes = [1, 64], strides = [1, 1]} : vector<8x128xf32> to vector<1x64xf32>
    %13 = vector.extract_strided_slice %7 {offsets = [5, 0], sizes = [1, 32], strides = [1, 1]} : vector<8x128xf32> to vector<1x32xf32>
    %14 = vector.extract_strided_slice %7 {offsets = [6, 0], sizes = [1, 32], strides = [1, 1]} : vector<8x128xf32> to vector<1x32xf32>
    %15 = vector.extract_strided_slice %7 {offsets = [7, 0], sizes = [1, 32], strides = [1, 1]} : vector<8x128xf32> to vector<1x32xf32>
    %c0_7 = arith.constant 0 : index
    %c0_8 = arith.constant 0 : index
    %c0_9 = arith.constant 0 : index
    %16 = vector.load %arg3[%c0_7, %c0_8, %c0_9] : memref<2x32x96xf32, #tpu.memory_space<vmem>>, vector<1x32x96xf32>
    %17 = vector.shape_cast %16 : vector<1x32x96xf32> to vector<32x96xf32>
    %cst_10 = arith.constant dense<0.000000e+00> : vector<16x96xf32>
    %18 = tpu.matmul %0, %17, %cst_10 {dimension_numbers = #tpu.dot_dimension_numbers<[1], [0], [0], [1], [0, 0, 1, 1], [], []>} : vector<16x32xf32>, vector<32x96xf32>, vector<16x96xf32> -> vector<16x96xf32>
    %19 = vector.broadcast %8 : vector<1x96xf32> to vector<16x96xf32>
    %20 = arith.addf %18, %19 : vector<16x96xf32>
    %21 = vector.shape_cast %20 : vector<16x96xf32> to vector<2x8x96xf32>
    %22 = vector.extract_strided_slice %21 {offsets = [0, 0, 0], sizes = [2, 8, 8], strides = [1, 1, 1]} : vector<2x8x96xf32> to vector<2x8x8xf32>
    %23 = vector.extract_strided_slice %21 {offsets = [0, 0, 32], sizes = [2, 8, 8], strides = [1, 1, 1]} : vector<2x8x96xf32> to vector<2x8x8xf32>
    %24 = vector.extract_strided_slice %21 {offsets = [0, 0, 64], sizes = [2, 8, 8], strides = [1, 1, 1]} : vector<2x8x96xf32> to vector<2x8x8xf32>
    "tpu.trace_start"() <{level = 10 : i32, message = "bqd,bkd->bqk"}> : () -> ()
    %cst_11 = arith.constant dense<0.000000e+00> : vector<2x8x8xf32>
    %25 = tpu.matmul %22, %23, %cst_11 {dimension_numbers = #tpu.dot_dimension_numbers<[2], [2], [1], [1], [0, 0, 0, 1, 1, 1], [0], [0]>} : vector<2x8x8xf32>, vector<2x8x8xf32>, vector<2x8x8xf32> -> vector<2x8x8xf32>
    "tpu.trace_stop"() : () -> ()
    %26 = vector.shape_cast %5 : vector<2x8xf32> to vector<2x1x8xf32>
    %27 = vector.broadcast %26 : vector<2x1x8xf32> to vector<2x8x8xf32>
    %28 = arith.addf %25, %27 : vector<2x8x8xf32>
    %cst_12 = arith.constant dense<0xFF800000> : vector<2x8xf32>
    %29 = vector.multi_reduction <maximumf>, %28, %cst_12 [2] : vector<2x8x8xf32> to vector<2x8xf32>
    %30 = vector.shape_cast %29 : vector<2x8xf32> to vector<2x8x1xf32>
    %31 = vector.broadcast %30 : vector<2x8x1xf32> to vector<2x8x8xf32>
    %32 = arith.subf %28, %31 : vector<2x8x8xf32>
    %33 = math.exp %32 : vector<2x8x8xf32>
    %cst_13 = arith.constant dense<0.000000e+00> : vector<2x8xf32>
    %34 = vector.multi_reduction <add>, %33, %cst_13 [2] : vector<2x8x8xf32> to vector<2x8xf32>
    %35 = vector.shape_cast %34 : vector<2x8xf32> to vector<2x8x1xf32>
    %36 = tpu.reciprocal %35 {approx = true} : vector<2x8x1xf32> -> vector<2x8x1xf32>
    %37 = vector.broadcast %36 : vector<2x8x1xf32> to vector<2x8x8xf32>
    %38 = arith.mulf %33, %37 : vector<2x8x8xf32>
    "tpu.trace_start"() <{level = 10 : i32, message = "bqk,bkd->bqd"}> : () -> ()
    %cst_14 = arith.constant dense<0.000000e+00> : vector<2x8x8xf32>
    %39 = tpu.matmul %38, %24, %cst_14 {dimension_numbers = #tpu.dot_dimension_numbers<[2], [1], [1], [2], [0, 0, 0, 1, 1, 2], [0], [0]>} : vector<2x8x8xf32>, vector<2x8x8xf32>, vector<2x8x8xf32> -> vector<2x8x8xf32>
    "tpu.trace_stop"() : () -> ()
    %40 = vector.extract_strided_slice %21 {offsets = [0, 0, 8], sizes = [2, 8, 8], strides = [1, 1, 1]} : vector<2x8x96xf32> to vector<2x8x8xf32>
    %41 = vector.extract_strided_slice %21 {offsets = [0, 0, 40], sizes = [2, 8, 8], strides = [1, 1, 1]} : vector<2x8x96xf32> to vector<2x8x8xf32>
    %42 = vector.extract_strided_slice %21 {offsets = [0, 0, 72], sizes = [2, 8, 8], strides = [1, 1, 1]} : vector<2x8x96xf32> to vector<2x8x8xf32>
    "tpu.trace_start"() <{level = 10 : i32, message = "bqd,bkd->bqk"}> : () -> ()
    %cst_15 = arith.constant dense<0.000000e+00> : vector<2x8x8xf32>
    %43 = tpu.matmul %40, %41, %cst_15 {dimension_numbers = #tpu.dot_dimension_numbers<[2], [2], [1], [1], [0, 0, 0, 1, 1, 1], [0], [0]>} : vector<2x8x8xf32>, vector<2x8x8xf32>, vector<2x8x8xf32> -> vector<2x8x8xf32>
    "tpu.trace_stop"() : () -> ()
    %44 = vector.shape_cast %5 : vector<2x8xf32> to vector<2x1x8xf32>
    %45 = vector.broadcast %44 : vector<2x1x8xf32> to vector<2x8x8xf32>
    %46 = arith.addf %43, %45 : vector<2x8x8xf32>
    %cst_16 = arith.constant dense<0xFF800000> : vector<2x8xf32>
    %47 = vector.multi_reduction <maximumf>, %46, %cst_16 [2] : vector<2x8x8xf32> to vector<2x8xf32>
    %48 = vector.shape_cast %47 : vector<2x8xf32> to vector<2x8x1xf32>
    %49 = vector.broadcast %48 : vector<2x8x1xf32> to vector<2x8x8xf32>
    %50 = arith.subf %46, %49 : vector<2x8x8xf32>
    %51 = math.exp %50 : vector<2x8x8xf32>
    %cst_17 = arith.constant dense<0.000000e+00> : vector<2x8xf32>
    %52 = vector.multi_reduction <add>, %51, %cst_17 [2] : vector<2x8x8xf32> to vector<2x8xf32>
    %53 = vector.shape_cast %52 : vector<2x8xf32> to vector<2x8x1xf32>
    %54 = tpu.reciprocal %53 {approx = true} : vector<2x8x1xf32> -> vector<2x8x1xf32>
    %55 = vector.broadcast %54 : vector<2x8x1xf32> to vector<2x8x8xf32>
    %56 = arith.mulf %51, %55 : vector<2x8x8xf32>
    "tpu.trace_start"() <{level = 10 : i32, message = "bqk,bkd->bqd"}> : () -> ()
    %cst_18 = arith.constant dense<0.000000e+00> : vector<2x8x8xf32>
    %57 = tpu.matmul %56, %42, %cst_18 {dimension_numbers = #tpu.dot_dimension_numbers<[2], [1], [1], [2], [0, 0, 0, 1, 1, 2], [0], [0]>} : vector<2x8x8xf32>, vector<2x8x8xf32>, vector<2x8x8xf32> -> vector<2x8x8xf32>
    "tpu.trace_stop"() : () -> ()
    %58 = vector.extract_strided_slice %21 {offsets = [0, 0, 16], sizes = [2, 8, 8], strides = [1, 1, 1]} : vector<2x8x96xf32> to vector<2x8x8xf32>
    %59 = vector.extract_strided_slice %21 {offsets = [0, 0, 48], sizes = [2, 8, 8], strides = [1, 1, 1]} : vector<2x8x96xf32> to vector<2x8x8xf32>
    %60 = vector.extract_strided_slice %21 {offsets = [0, 0, 80], sizes = [2, 8, 8], strides = [1, 1, 1]} : vector<2x8x96xf32> to vector<2x8x8xf32>
    "tpu.trace_start"() <{level = 10 : i32, message = "bqd,bkd->bqk"}> : () -> ()
    %cst_19 = arith.constant dense<0.000000e+00> : vector<2x8x8xf32>
    %61 = tpu.matmul %58, %59, %cst_19 {dimension_numbers = #tpu.dot_dimension_numbers<[2], [2], [1], [1], [0, 0, 0, 1, 1, 1], [0], [0]>} : vector<2x8x8xf32>, vector<2x8x8xf32>, vector<2x8x8xf32> -> vector<2x8x8xf32>
    "tpu.trace_stop"() : () -> ()
    %62 = vector.shape_cast %5 : vector<2x8xf32> to vector<2x1x8xf32>
    %63 = vector.broadcast %62 : vector<2x1x8xf32> to vector<2x8x8xf32>
    %64 = arith.addf %61, %63 : vector<2x8x8xf32>
    %cst_20 = arith.constant dense<0xFF800000> : vector<2x8xf32>
    %65 = vector.multi_reduction <maximumf>, %64, %cst_20 [2] : vector<2x8x8xf32> to vector<2x8xf32>
    %66 = vector.shape_cast %65 : vector<2x8xf32> to vector<2x8x1xf32>
    %67 = vector.broadcast %66 : vector<2x8x1xf32> to vector<2x8x8xf32>
    %68 = arith.subf %64, %67 : vector<2x8x8xf32>
    %69 = math.exp %68 : vector<2x8x8xf32>
    %cst_21 = arith.constant dense<0.000000e+00> : vector<2x8xf32>
    %70 = vector.multi_reduction <add>, %69, %cst_21 [2] : vector<2x8x8xf32> to vector<2x8xf32>
    %71 = vector.shape_cast %70 : vector<2x8xf32> to vector<2x8x1xf32>
    %72 = tpu.reciprocal %71 {approx = true} : vector<2x8x1xf32> -> vector<2x8x1xf32>
    %73 = vector.broadcast %72 : vector<2x8x1xf32> to vector<2x8x8xf32>
    %74 = arith.mulf %69, %73 : vector<2x8x8xf32>
    "tpu.trace_start"() <{level = 10 : i32, message = "bqk,bkd->bqd"}> : () -> ()
    %cst_22 = arith.constant dense<0.000000e+00> : vector<2x8x8xf32>
    %75 = tpu.matmul %74, %60, %cst_22 {dimension_numbers = #tpu.dot_dimension_numbers<[2], [1], [1], [2], [0, 0, 0, 1, 1, 2], [0], [0]>} : vector<2x8x8xf32>, vector<2x8x8xf32>, vector<2x8x8xf32> -> vector<2x8x8xf32>
    "tpu.trace_stop"() : () -> ()
    %76 = vector.extract_strided_slice %21 {offsets = [0, 0, 24], sizes = [2, 8, 8], strides = [1, 1, 1]} : vector<2x8x96xf32> to vector<2x8x8xf32>
    %77 = vector.extract_strided_slice %21 {offsets = [0, 0, 56], sizes = [2, 8, 8], strides = [1, 1, 1]} : vector<2x8x96xf32> to vector<2x8x8xf32>
    %78 = vector.extract_strided_slice %21 {offsets = [0, 0, 88], sizes = [2, 8, 8], strides = [1, 1, 1]} : vector<2x8x96xf32> to vector<2x8x8xf32>
    "tpu.trace_start"() <{level = 10 : i32, message = "bqd,bkd->bqk"}> : () -> ()
    %cst_23 = arith.constant dense<0.000000e+00> : vector<2x8x8xf32>
    %79 = tpu.matmul %76, %77, %cst_23 {dimension_numbers = #tpu.dot_dimension_numbers<[2], [2], [1], [1], [0, 0, 0, 1, 1, 1], [0], [0]>} : vector<2x8x8xf32>, vector<2x8x8xf32>, vector<2x8x8xf32> -> vector<2x8x8xf32>
    "tpu.trace_stop"() : () -> ()
    %80 = vector.shape_cast %5 : vector<2x8xf32> to vector<2x1x8xf32>
    %81 = vector.broadcast %80 : vector<2x1x8xf32> to vector<2x8x8xf32>
    %82 = arith.addf %79, %81 : vector<2x8x8xf32>
    %cst_24 = arith.constant dense<0xFF800000> : vector<2x8xf32>
    %83 = vector.multi_reduction <maximumf>, %82, %cst_24 [2] : vector<2x8x8xf32> to vector<2x8xf32>
    %84 = vector.shape_cast %83 : vector<2x8xf32> to vector<2x8x1xf32>
    %85 = vector.broadcast %84 : vector<2x8x1xf32> to vector<2x8x8xf32>
    %86 = arith.subf %82, %85 : vector<2x8x8xf32>
    %87 = math.exp %86 : vector<2x8x8xf32>
    %cst_25 = arith.constant dense<0.000000e+00> : vector<2x8xf32>
    %88 = vector.multi_reduction <add>, %87, %cst_25 [2] : vector<2x8x8xf32> to vector<2x8xf32>
    %89 = vector.shape_cast %88 : vector<2x8xf32> to vector<2x8x1xf32>
    %90 = tpu.reciprocal %89 {approx = true} : vector<2x8x1xf32> -> vector<2x8x1xf32>
    %91 = vector.broadcast %90 : vector<2x8x1xf32> to vector<2x8x8xf32>
    %92 = arith.mulf %87, %91 : vector<2x8x8xf32>
    "tpu.trace_start"() <{level = 10 : i32, message = "bqk,bkd->bqd"}> : () -> ()
    %cst_26 = arith.constant dense<0.000000e+00> : vector<2x8x8xf32>
    %93 = tpu.matmul %92, %78, %cst_26 {dimension_numbers = #tpu.dot_dimension_numbers<[2], [1], [1], [2], [0, 0, 0, 1, 1, 2], [0], [0]>} : vector<2x8x8xf32>, vector<2x8x8xf32>, vector<2x8x8xf32> -> vector<2x8x8xf32>
    "tpu.trace_stop"() : () -> ()
    %94 = tpu.concatenate %39, %57, %75, %93 in 2 : vector<2x8x8xf32>, vector<2x8x8xf32>, vector<2x8x8xf32>, vector<2x8x8xf32> -> vector<2x8x32xf32>
    %95 = vector.shape_cast %94 : vector<2x8x32xf32> to vector<16x32xf32>
    %c0_27 = arith.constant 0 : index
    %c0_28 = arith.constant 0 : index
    %c0_29 = arith.constant 0 : index
    %96 = vector.load %arg4[%c0_27, %c0_28, %c0_29] : memref<2x32x32xf32, #tpu.memory_space<vmem>>, vector<1x32x32xf32>
    %97 = vector.shape_cast %96 : vector<1x32x32xf32> to vector<32x32xf32>
    %cst_30 = arith.constant dense<0.000000e+00> : vector<16x32xf32>
    %98 = tpu.matmul %95, %97, %cst_30 {dimension_numbers = #tpu.dot_dimension_numbers<[1], [0], [0], [1], [0, 0, 1, 1], [], []>} : vector<16x32xf32>, vector<32x32xf32>, vector<16x32xf32> -> vector<16x32xf32>
    %99 = vector.broadcast %9 : vector<1x32xf32> to vector<16x32xf32>
    %100 = arith.addf %98, %99 : vector<16x32xf32>
    %101 = arith.addf %0, %100 : vector<16x32xf32>
    %cst_31 = arith.constant dense<0.000000e+00> : vector<16xf32>
    %102 = vector.multi_reduction <add>, %101, %cst_31 [1] : vector<16x32xf32> to vector<16xf32>
    %103 = vector.shape_cast %102 : vector<16xf32> to vector<16x1xf32>
    %cst_32 = arith.constant 3.200000e+01 : f32
    %104 = vector.broadcast %cst_32 : f32 to vector<16x1xf32>
    %105 = arith.divf %103, %104 : vector<16x1xf32>
    %106 = vector.broadcast %105 : vector<16x1xf32> to vector<16x32xf32>
    %107 = arith.subf %101, %106 : vector<16x32xf32>
    %108 = arith.mulf %107, %107 : vector<16x32xf32>
    %cst_33 = arith.constant dense<0.000000e+00> : vector<16xf32>
    %109 = vector.multi_reduction <add>, %108, %cst_33 [1] : vector<16x32xf32> to vector<16xf32>
    %110 = vector.shape_cast %109 : vector<16xf32> to vector<16x1xf32>
    %cst_34 = arith.constant 3.200000e+01 : f32
    %111 = vector.broadcast %cst_34 : f32 to vector<16x1xf32>
    %112 = arith.divf %110, %111 : vector<16x1xf32>
    %113 = vector.broadcast %105 : vector<16x1xf32> to vector<16x32xf32>
    %114 = arith.subf %101, %113 : vector<16x32xf32>
    %cst_35 = arith.constant 9.99999996E-13 : f32
    %115 = vector.broadcast %cst_35 : f32 to vector<16x1xf32>
    %116 = arith.addf %112, %115 : vector<16x1xf32>
    %117 = math.rsqrt %116 : vector<16x1xf32>
    %118 = vector.broadcast %117 : vector<16x1xf32> to vector<16x32xf32>
    %119 = arith.mulf %114, %118 : vector<16x32xf32>
    %120 = vector.broadcast %10 : vector<1x32xf32> to vector<16x32xf32>
    %121 = arith.mulf %119, %120 : vector<16x32xf32>
    %122 = vector.broadcast %11 : vector<1x32xf32> to vector<16x32xf32>
    %123 = arith.addf %121, %122 : vector<16x32xf32>
    %c0_36 = arith.constant 0 : index
    %c0_37 = arith.constant 0 : index
    %c0_38 = arith.constant 0 : index
    %124 = vector.load %arg5[%c0_36, %c0_37, %c0_38] : memref<2x32x64xf32, #tpu.memory_space<vmem>>, vector<1x32x64xf32>
    %125 = vector.shape_cast %124 : vector<1x32x64xf32> to vector<32x64xf32>
    %cst_39 = arith.constant dense<0.000000e+00> : vector<16x64xf32>
    %126 = tpu.matmul %123, %125, %cst_39 {dimension_numbers = #tpu.dot_dimension_numbers<[1], [0], [0], [1], [0, 0, 1, 1], [], []>} : vector<16x32xf32>, vector<32x64xf32>, vector<16x64xf32> -> vector<16x64xf32>
    %127 = vector.broadcast %12 : vector<1x64xf32> to vector<16x64xf32>
    %128 = arith.addf %126, %127 : vector<16x64xf32>
    %129 = arith.mulf %128, %128 : vector<16x64xf32>
    %130 = arith.mulf %128, %129 : vector<16x64xf32>
    %cst_40 = arith.constant 4.471500e-02 : f32
    %131 = vector.broadcast %cst_40 : f32 to vector<16x64xf32>
    %132 = arith.mulf %131, %130 : vector<16x64xf32>
    %133 = arith.addf %128, %132 : vector<16x64xf32>
    %cst_41 = arith.constant 0.797884583 : f32
    %134 = vector.broadcast %cst_41 : f32 to vector<16x64xf32>
    %135 = arith.mulf %134, %133 : vector<16x64xf32>
    %136 = math.tanh %135 : vector<16x64xf32>
    %cst_42 = arith.constant 1.000000e+00 : f32
    %137 = vector.broadcast %cst_42 : f32 to vector<16x64xf32>
    %138 = arith.addf %137, %136 : vector<16x64xf32>
    %cst_43 = arith.constant 5.000000e-01 : f32
    %139 = vector.broadcast %cst_43 : f32 to vector<16x64xf32>
    %140 = arith.mulf %139, %138 : vector<16x64xf32>
    %141 = arith.mulf %128, %140 : vector<16x64xf32>
    %c0_44 = arith.constant 0 : index
    %c0_45 = arith.constant 0 : index
    %c0_46 = arith.constant 0 : index
    %142 = vector.load %arg6[%c0_44, %c0_45, %c0_46] : memref<2x64x32xf32, #tpu.memory_space<vmem>>, vector<1x64x32xf32>
    %143 = vector.shape_cast %142 : vector<1x64x32xf32> to vector<64x32xf32>
    %cst_47 = arith.constant dense<0.000000e+00> : vector<16x32xf32>
    %144 = tpu.matmul %141, %143, %cst_47 {dimension_numbers = #tpu.dot_dimension_numbers<[1], [0], [0], [1], [0, 0, 1, 1], [], []>} : vector<16x64xf32>, vector<64x32xf32>, vector<16x32xf32> -> vector<16x32xf32>
    %145 = vector.broadcast %13 : vector<1x32xf32> to vector<16x32xf32>
    %146 = arith.addf %144, %145 : vector<16x32xf32>
    %147 = arith.addf %123, %146 : vector<16x32xf32>
    %cst_48 = arith.constant dense<0.000000e+00> : vector<16xf32>
    %148 = vector.multi_reduction <add>, %147, %cst_48 [1] : vector<16x32xf32> to vector<16xf32>
    %149 = vector.shape_cast %148 : vector<16xf32> to vector<16x1xf32>
    %cst_49 = arith.constant 3.200000e+01 : f32
    %150 = vector.broadcast %cst_49 : f32 to vector<16x1xf32>
    %151 = arith.divf %149, %150 : vector<16x1xf32>
    %152 = vector.broadcast %151 : vector<16x1xf32> to vector<16x32xf32>
    %153 = arith.subf %147, %152 : vector<16x32xf32>
    %154 = arith.mulf %153, %153 : vector<16x32xf32>
    %cst_50 = arith.constant dense<0.000000e+00> : vector<16xf32>
    %155 = vector.multi_reduction <add>, %154, %cst_50 [1] : vector<16x32xf32> to vector<16xf32>
    %156 = vector.shape_cast %155 : vector<16xf32> to vector<16x1xf32>
    %cst_51 = arith.constant 3.200000e+01 : f32
    %157 = vector.broadcast %cst_51 : f32 to vector<16x1xf32>
    %158 = arith.divf %156, %157 : vector<16x1xf32>
    %159 = vector.broadcast %151 : vector<16x1xf32> to vector<16x32xf32>
    %160 = arith.subf %147, %159 : vector<16x32xf32>
    %cst_52 = arith.constant 9.99999996E-13 : f32
    %161 = vector.broadcast %cst_52 : f32 to vector<16x1xf32>
    %162 = arith.addf %158, %161 : vector<16x1xf32>
    %163 = math.rsqrt %162 : vector<16x1xf32>
    %164 = vector.broadcast %163 : vector<16x1xf32> to vector<16x32xf32>
    %165 = arith.mulf %160, %164 : vector<16x32xf32>
    %166 = vector.broadcast %14 : vector<1x32xf32> to vector<16x32xf32>
    %167 = arith.mulf %165, %166 : vector<16x32xf32>
    %168 = vector.broadcast %15 : vector<1x32xf32> to vector<16x32xf32>
    %169 = arith.addf %167, %168 : vector<16x32xf32>
    %c1 = arith.constant 1 : index
    %c0_53 = arith.constant 0 : index
    %c0_54 = arith.constant 0 : index
    %170 = vector.load %arg7[%c1, %c0_53, %c0_54] : memref<2x8x128xf32, #tpu.memory_space<vmem>>, vector<1x8x128xf32>
    %171 = vector.shape_cast %170 : vector<1x8x128xf32> to vector<8x128xf32>
    %172 = vector.extract_strided_slice %171 {offsets = [0, 0], sizes = [1, 96], strides = [1, 1]} : vector<8x128xf32> to vector<1x96xf32>
    %173 = vector.extract_strided_slice %171 {offsets = [1, 0], sizes = [1, 32], strides = [1, 1]} : vector<8x128xf32> to vector<1x32xf32>
    %174 = vector.extract_strided_slice %171 {offsets = [2, 0], sizes = [1, 32], strides = [1, 1]} : vector<8x128xf32> to vector<1x32xf32>
    %175 = vector.extract_strided_slice %171 {offsets = [3, 0], sizes = [1, 32], strides = [1, 1]} : vector<8x128xf32> to vector<1x32xf32>
    %176 = vector.extract_strided_slice %171 {offsets = [4, 0], sizes = [1, 64], strides = [1, 1]} : vector<8x128xf32> to vector<1x64xf32>
    %177 = vector.extract_strided_slice %171 {offsets = [5, 0], sizes = [1, 32], strides = [1, 1]} : vector<8x128xf32> to vector<1x32xf32>
    %178 = vector.extract_strided_slice %171 {offsets = [6, 0], sizes = [1, 32], strides = [1, 1]} : vector<8x128xf32> to vector<1x32xf32>
    %179 = vector.extract_strided_slice %171 {offsets = [7, 0], sizes = [1, 32], strides = [1, 1]} : vector<8x128xf32> to vector<1x32xf32>
    %c1_55 = arith.constant 1 : index
    %c0_56 = arith.constant 0 : index
    %c0_57 = arith.constant 0 : index
    %180 = vector.load %arg3[%c1_55, %c0_56, %c0_57] : memref<2x32x96xf32, #tpu.memory_space<vmem>>, vector<1x32x96xf32>
    %181 = vector.shape_cast %180 : vector<1x32x96xf32> to vector<32x96xf32>
    %cst_58 = arith.constant dense<0.000000e+00> : vector<16x96xf32>
    %182 = tpu.matmul %169, %181, %cst_58 {dimension_numbers = #tpu.dot_dimension_numbers<[1], [0], [0], [1], [0, 0, 1, 1], [], []>} : vector<16x32xf32>, vector<32x96xf32>, vector<16x96xf32> -> vector<16x96xf32>
    %183 = vector.broadcast %172 : vector<1x96xf32> to vector<16x96xf32>
    %184 = arith.addf %182, %183 : vector<16x96xf32>
    %185 = vector.shape_cast %184 : vector<16x96xf32> to vector<2x8x96xf32>
    %186 = vector.extract_strided_slice %185 {offsets = [0, 0, 0], sizes = [2, 8, 8], strides = [1, 1, 1]} : vector<2x8x96xf32> to vector<2x8x8xf32>
    %187 = vector.extract_strided_slice %185 {offsets = [0, 0, 32], sizes = [2, 8, 8], strides = [1, 1, 1]} : vector<2x8x96xf32> to vector<2x8x8xf32>
    %188 = vector.extract_strided_slice %185 {offsets = [0, 0, 64], sizes = [2, 8, 8], strides = [1, 1, 1]} : vector<2x8x96xf32> to vector<2x8x8xf32>
    "tpu.trace_start"() <{level = 10 : i32, message = "bqd,bkd->bqk"}> : () -> ()
    %cst_59 = arith.constant dense<0.000000e+00> : vector<2x8x8xf32>
    %189 = tpu.matmul %186, %187, %cst_59 {dimension_numbers = #tpu.dot_dimension_numbers<[2], [2], [1], [1], [0, 0, 0, 1, 1, 1], [0], [0]>} : vector<2x8x8xf32>, vector<2x8x8xf32>, vector<2x8x8xf32> -> vector<2x8x8xf32>
    "tpu.trace_stop"() : () -> ()
    %190 = vector.shape_cast %5 : vector<2x8xf32> to vector<2x1x8xf32>
    %191 = vector.broadcast %190 : vector<2x1x8xf32> to vector<2x8x8xf32>
    %192 = arith.addf %189, %191 : vector<2x8x8xf32>
    %cst_60 = arith.constant dense<0xFF800000> : vector<2x8xf32>
    %193 = vector.multi_reduction <maximumf>, %192, %cst_60 [2] : vector<2x8x8xf32> to vector<2x8xf32>
    %194 = vector.shape_cast %193 : vector<2x8xf32> to vector<2x8x1xf32>
    %195 = vector.broadcast %194 : vector<2x8x1xf32> to vector<2x8x8xf32>
    %196 = arith.subf %192, %195 : vector<2x8x8xf32>
    %197 = math.exp %196 : vector<2x8x8xf32>
    %cst_61 = arith.constant dense<0.000000e+00> : vector<2x8xf32>
    %198 = vector.multi_reduction <add>, %197, %cst_61 [2] : vector<2x8x8xf32> to vector<2x8xf32>
    %199 = vector.shape_cast %198 : vector<2x8xf32> to vector<2x8x1xf32>
    %200 = tpu.reciprocal %199 {approx = true} : vector<2x8x1xf32> -> vector<2x8x1xf32>
    %201 = vector.broadcast %200 : vector<2x8x1xf32> to vector<2x8x8xf32>
    %202 = arith.mulf %197, %201 : vector<2x8x8xf32>
    "tpu.trace_start"() <{level = 10 : i32, message = "bqk,bkd->bqd"}> : () -> ()
    %cst_62 = arith.constant dense<0.000000e+00> : vector<2x8x8xf32>
    %203 = tpu.matmul %202, %188, %cst_62 {dimension_numbers = #tpu.dot_dimension_numbers<[2], [1], [1], [2], [0, 0, 0, 1, 1, 2], [0], [0]>} : vector<2x8x8xf32>, vector<2x8x8xf32>, vector<2x8x8xf32> -> vector<2x8x8xf32>
    "tpu.trace_stop"() : () -> ()
    %204 = vector.extract_strided_slice %185 {offsets = [0, 0, 8], sizes = [2, 8, 8], strides = [1, 1, 1]} : vector<2x8x96xf32> to vector<2x8x8xf32>
    %205 = vector.extract_strided_slice %185 {offsets = [0, 0, 40], sizes = [2, 8, 8], strides = [1, 1, 1]} : vector<2x8x96xf32> to vector<2x8x8xf32>
    %206 = vector.extract_strided_slice %185 {offsets = [0, 0, 72], sizes = [2, 8, 8], strides = [1, 1, 1]} : vector<2x8x96xf32> to vector<2x8x8xf32>
    "tpu.trace_start"() <{level = 10 : i32, message = "bqd,bkd->bqk"}> : () -> ()
    %cst_63 = arith.constant dense<0.000000e+00> : vector<2x8x8xf32>
    %207 = tpu.matmul %204, %205, %cst_63 {dimension_numbers = #tpu.dot_dimension_numbers<[2], [2], [1], [1], [0, 0, 0, 1, 1, 1], [0], [0]>} : vector<2x8x8xf32>, vector<2x8x8xf32>, vector<2x8x8xf32> -> vector<2x8x8xf32>
    "tpu.trace_stop"() : () -> ()
    %208 = vector.shape_cast %5 : vector<2x8xf32> to vector<2x1x8xf32>
    %209 = vector.broadcast %208 : vector<2x1x8xf32> to vector<2x8x8xf32>
    %210 = arith.addf %207, %209 : vector<2x8x8xf32>
    %cst_64 = arith.constant dense<0xFF800000> : vector<2x8xf32>
    %211 = vector.multi_reduction <maximumf>, %210, %cst_64 [2] : vector<2x8x8xf32> to vector<2x8xf32>
    %212 = vector.shape_cast %211 : vector<2x8xf32> to vector<2x8x1xf32>
    %213 = vector.broadcast %212 : vector<2x8x1xf32> to vector<2x8x8xf32>
    %214 = arith.subf %210, %213 : vector<2x8x8xf32>
    %215 = math.exp %214 : vector<2x8x8xf32>
    %cst_65 = arith.constant dense<0.000000e+00> : vector<2x8xf32>
    %216 = vector.multi_reduction <add>, %215, %cst_65 [2] : vector<2x8x8xf32> to vector<2x8xf32>
    %217 = vector.shape_cast %216 : vector<2x8xf32> to vector<2x8x1xf32>
    %218 = tpu.reciprocal %217 {approx = true} : vector<2x8x1xf32> -> vector<2x8x1xf32>
    %219 = vector.broadcast %218 : vector<2x8x1xf32> to vector<2x8x8xf32>
    %220 = arith.mulf %215, %219 : vector<2x8x8xf32>
    "tpu.trace_start"() <{level = 10 : i32, message = "bqk,bkd->bqd"}> : () -> ()
    %cst_66 = arith.constant dense<0.000000e+00> : vector<2x8x8xf32>
    %221 = tpu.matmul %220, %206, %cst_66 {dimension_numbers = #tpu.dot_dimension_numbers<[2], [1], [1], [2], [0, 0, 0, 1, 1, 2], [0], [0]>} : vector<2x8x8xf32>, vector<2x8x8xf32>, vector<2x8x8xf32> -> vector<2x8x8xf32>
    "tpu.trace_stop"() : () -> ()
    %222 = vector.extract_strided_slice %185 {offsets = [0, 0, 16], sizes = [2, 8, 8], strides = [1, 1, 1]} : vector<2x8x96xf32> to vector<2x8x8xf32>
    %223 = vector.extract_strided_slice %185 {offsets = [0, 0, 48], sizes = [2, 8, 8], strides = [1, 1, 1]} : vector<2x8x96xf32> to vector<2x8x8xf32>
    %224 = vector.extract_strided_slice %185 {offsets = [0, 0, 80], sizes = [2, 8, 8], strides = [1, 1, 1]} : vector<2x8x96xf32> to vector<2x8x8xf32>
    "tpu.trace_start"() <{level = 10 : i32, message = "bqd,bkd->bqk"}> : () -> ()
    %cst_67 = arith.constant dense<0.000000e+00> : vector<2x8x8xf32>
    %225 = tpu.matmul %222, %223, %cst_67 {dimension_numbers = #tpu.dot_dimension_numbers<[2], [2], [1], [1], [0, 0, 0, 1, 1, 1], [0], [0]>} : vector<2x8x8xf32>, vector<2x8x8xf32>, vector<2x8x8xf32> -> vector<2x8x8xf32>
    "tpu.trace_stop"() : () -> ()
    %226 = vector.shape_cast %5 : vector<2x8xf32> to vector<2x1x8xf32>
    %227 = vector.broadcast %226 : vector<2x1x8xf32> to vector<2x8x8xf32>
    %228 = arith.addf %225, %227 : vector<2x8x8xf32>
    %cst_68 = arith.constant dense<0xFF800000> : vector<2x8xf32>
    %229 = vector.multi_reduction <maximumf>, %228, %cst_68 [2] : vector<2x8x8xf32> to vector<2x8xf32>
    %230 = vector.shape_cast %229 : vector<2x8xf32> to vector<2x8x1xf32>
    %231 = vector.broadcast %230 : vector<2x8x1xf32> to vector<2x8x8xf32>
    %232 = arith.subf %228, %231 : vector<2x8x8xf32>
    %233 = math.exp %232 : vector<2x8x8xf32>
    %cst_69 = arith.constant dense<0.000000e+00> : vector<2x8xf32>
    %234 = vector.multi_reduction <add>, %233, %cst_69 [2] : vector<2x8x8xf32> to vector<2x8xf32>
    %235 = vector.shape_cast %234 : vector<2x8xf32> to vector<2x8x1xf32>
    %236 = tpu.reciprocal %235 {approx = true} : vector<2x8x1xf32> -> vector<2x8x1xf32>
    %237 = vector.broadcast %236 : vector<2x8x1xf32> to vector<2x8x8xf32>
    %238 = arith.mulf %233, %237 : vector<2x8x8xf32>
    "tpu.trace_start"() <{level = 10 : i32, message = "bqk,bkd->bqd"}> : () -> ()
    %cst_70 = arith.constant dense<0.000000e+00> : vector<2x8x8xf32>
    %239 = tpu.matmul %238, %224, %cst_70 {dimension_numbers = #tpu.dot_dimension_numbers<[2], [1], [1], [2], [0, 0, 0, 1, 1, 2], [0], [0]>} : vector<2x8x8xf32>, vector<2x8x8xf32>, vector<2x8x8xf32> -> vector<2x8x8xf32>
    "tpu.trace_stop"() : () -> ()
    %240 = vector.extract_strided_slice %185 {offsets = [0, 0, 24], sizes = [2, 8, 8], strides = [1, 1, 1]} : vector<2x8x96xf32> to vector<2x8x8xf32>
    %241 = vector.extract_strided_slice %185 {offsets = [0, 0, 56], sizes = [2, 8, 8], strides = [1, 1, 1]} : vector<2x8x96xf32> to vector<2x8x8xf32>
    %242 = vector.extract_strided_slice %185 {offsets = [0, 0, 88], sizes = [2, 8, 8], strides = [1, 1, 1]} : vector<2x8x96xf32> to vector<2x8x8xf32>
    "tpu.trace_start"() <{level = 10 : i32, message = "bqd,bkd->bqk"}> : () -> ()
    %cst_71 = arith.constant dense<0.000000e+00> : vector<2x8x8xf32>
    %243 = tpu.matmul %240, %241, %cst_71 {dimension_numbers = #tpu.dot_dimension_numbers<[2], [2], [1], [1], [0, 0, 0, 1, 1, 1], [0], [0]>} : vector<2x8x8xf32>, vector<2x8x8xf32>, vector<2x8x8xf32> -> vector<2x8x8xf32>
    "tpu.trace_stop"() : () -> ()
    %244 = vector.shape_cast %5 : vector<2x8xf32> to vector<2x1x8xf32>
    %245 = vector.broadcast %244 : vector<2x1x8xf32> to vector<2x8x8xf32>
    %246 = arith.addf %243, %245 : vector<2x8x8xf32>
    %cst_72 = arith.constant dense<0xFF800000> : vector<2x8xf32>
    %247 = vector.multi_reduction <maximumf>, %246, %cst_72 [2] : vector<2x8x8xf32> to vector<2x8xf32>
    %248 = vector.shape_cast %247 : vector<2x8xf32> to vector<2x8x1xf32>
    %249 = vector.broadcast %248 : vector<2x8x1xf32> to vector<2x8x8xf32>
    %250 = arith.subf %246, %249 : vector<2x8x8xf32>
    %251 = math.exp %250 : vector<2x8x8xf32>
    %cst_73 = arith.constant dense<0.000000e+00> : vector<2x8xf32>
    %252 = vector.multi_reduction <add>, %251, %cst_73 [2] : vector<2x8x8xf32> to vector<2x8xf32>
    %253 = vector.shape_cast %252 : vector<2x8xf32> to vector<2x8x1xf32>
    %254 = tpu.reciprocal %253 {approx = true} : vector<2x8x1xf32> -> vector<2x8x1xf32>
    %255 = vector.broadcast %254 : vector<2x8x1xf32> to vector<2x8x8xf32>
    %256 = arith.mulf %251, %255 : vector<2x8x8xf32>
    "tpu.trace_start"() <{level = 10 : i32, message = "bqk,bkd->bqd"}> : () -> ()
    %cst_74 = arith.constant dense<0.000000e+00> : vector<2x8x8xf32>
    %257 = tpu.matmul %256, %242, %cst_74 {dimension_numbers = #tpu.dot_dimension_numbers<[2], [1], [1], [2], [0, 0, 0, 1, 1, 2], [0], [0]>} : vector<2x8x8xf32>, vector<2x8x8xf32>, vector<2x8x8xf32> -> vector<2x8x8xf32>
    "tpu.trace_stop"() : () -> ()
    %258 = tpu.concatenate %203, %221, %239, %257 in 2 : vector<2x8x8xf32>, vector<2x8x8xf32>, vector<2x8x8xf32>, vector<2x8x8xf32> -> vector<2x8x32xf32>
    %259 = vector.shape_cast %258 : vector<2x8x32xf32> to vector<16x32xf32>
    %c1_75 = arith.constant 1 : index
    %c0_76 = arith.constant 0 : index
    %c0_77 = arith.constant 0 : index
    %260 = vector.load %arg4[%c1_75, %c0_76, %c0_77] : memref<2x32x32xf32, #tpu.memory_space<vmem>>, vector<1x32x32xf32>
    %261 = vector.shape_cast %260 : vector<1x32x32xf32> to vector<32x32xf32>
    %cst_78 = arith.constant dense<0.000000e+00> : vector<16x32xf32>
    %262 = tpu.matmul %259, %261, %cst_78 {dimension_numbers = #tpu.dot_dimension_numbers<[1], [0], [0], [1], [0, 0, 1, 1], [], []>} : vector<16x32xf32>, vector<32x32xf32>, vector<16x32xf32> -> vector<16x32xf32>
    %263 = vector.broadcast %173 : vector<1x32xf32> to vector<16x32xf32>
    %264 = arith.addf %262, %263 : vector<16x32xf32>
    %265 = arith.addf %169, %264 : vector<16x32xf32>
    %cst_79 = arith.constant dense<0.000000e+00> : vector<16xf32>
    %266 = vector.multi_reduction <add>, %265, %cst_79 [1] : vector<16x32xf32> to vector<16xf32>
    %267 = vector.shape_cast %266 : vector<16xf32> to vector<16x1xf32>
    %cst_80 = arith.constant 3.200000e+01 : f32
    %268 = vector.broadcast %cst_80 : f32 to vector<16x1xf32>
    %269 = arith.divf %267, %268 : vector<16x1xf32>
    %270 = vector.broadcast %269 : vector<16x1xf32> to vector<16x32xf32>
    %271 = arith.subf %265, %270 : vector<16x32xf32>
    %272 = arith.mulf %271, %271 : vector<16x32xf32>
    %cst_81 = arith.constant dense<0.000000e+00> : vector<16xf32>
    %273 = vector.multi_reduction <add>, %272, %cst_81 [1] : vector<16x32xf32> to vector<16xf32>
    %274 = vector.shape_cast %273 : vector<16xf32> to vector<16x1xf32>
    %cst_82 = arith.constant 3.200000e+01 : f32
    %275 = vector.broadcast %cst_82 : f32 to vector<16x1xf32>
    %276 = arith.divf %274, %275 : vector<16x1xf32>
    %277 = vector.broadcast %269 : vector<16x1xf32> to vector<16x32xf32>
    %278 = arith.subf %265, %277 : vector<16x32xf32>
    %cst_83 = arith.constant 9.99999996E-13 : f32
    %279 = vector.broadcast %cst_83 : f32 to vector<16x1xf32>
    %280 = arith.addf %276, %279 : vector<16x1xf32>
    %281 = math.rsqrt %280 : vector<16x1xf32>
    %282 = vector.broadcast %281 : vector<16x1xf32> to vector<16x32xf32>
    %283 = arith.mulf %278, %282 : vector<16x32xf32>
    %284 = vector.broadcast %174 : vector<1x32xf32> to vector<16x32xf32>
    %285 = arith.mulf %283, %284 : vector<16x32xf32>
    %286 = vector.broadcast %175 : vector<1x32xf32> to vector<16x32xf32>
    %287 = arith.addf %285, %286 : vector<16x32xf32>
    %c1_84 = arith.constant 1 : index
    %c0_85 = arith.constant 0 : index
    %c0_86 = arith.constant 0 : index
    %288 = vector.load %arg5[%c1_84, %c0_85, %c0_86] : memref<2x32x64xf32, #tpu.memory_space<vmem>>, vector<1x32x64xf32>
    %289 = vector.shape_cast %288 : vector<1x32x64xf32> to vector<32x64xf32>
    %cst_87 = arith.constant dense<0.000000e+00> : vector<16x64xf32>
    %290 = tpu.matmul %287, %289, %cst_87 {dimension_numbers = #tpu.dot_dimension_numbers<[1], [0], [0], [1], [0, 0, 1, 1], [], []>} : vector<16x32xf32>, vector<32x64xf32>, vector<16x64xf32> -> vector<16x64xf32>
    %291 = vector.broadcast %176 : vector<1x64xf32> to vector<16x64xf32>
    %292 = arith.addf %290, %291 : vector<16x64xf32>
    %293 = arith.mulf %292, %292 : vector<16x64xf32>
    %294 = arith.mulf %292, %293 : vector<16x64xf32>
    %cst_88 = arith.constant 4.471500e-02 : f32
    %295 = vector.broadcast %cst_88 : f32 to vector<16x64xf32>
    %296 = arith.mulf %295, %294 : vector<16x64xf32>
    %297 = arith.addf %292, %296 : vector<16x64xf32>
    %cst_89 = arith.constant 0.797884583 : f32
    %298 = vector.broadcast %cst_89 : f32 to vector<16x64xf32>
    %299 = arith.mulf %298, %297 : vector<16x64xf32>
    %300 = math.tanh %299 : vector<16x64xf32>
    %cst_90 = arith.constant 1.000000e+00 : f32
    %301 = vector.broadcast %cst_90 : f32 to vector<16x64xf32>
    %302 = arith.addf %301, %300 : vector<16x64xf32>
    %cst_91 = arith.constant 5.000000e-01 : f32
    %303 = vector.broadcast %cst_91 : f32 to vector<16x64xf32>
    %304 = arith.mulf %303, %302 : vector<16x64xf32>
    %305 = arith.mulf %292, %304 : vector<16x64xf32>
    %c1_92 = arith.constant 1 : index
    %c0_93 = arith.constant 0 : index
    %c0_94 = arith.constant 0 : index
    %306 = vector.load %arg6[%c1_92, %c0_93, %c0_94] : memref<2x64x32xf32, #tpu.memory_space<vmem>>, vector<1x64x32xf32>
    %307 = vector.shape_cast %306 : vector<1x64x32xf32> to vector<64x32xf32>
    %cst_95 = arith.constant dense<0.000000e+00> : vector<16x32xf32>
    %308 = tpu.matmul %305, %307, %cst_95 {dimension_numbers = #tpu.dot_dimension_numbers<[1], [0], [0], [1], [0, 0, 1, 1], [], []>} : vector<16x64xf32>, vector<64x32xf32>, vector<16x32xf32> -> vector<16x32xf32>
    %309 = vector.broadcast %177 : vector<1x32xf32> to vector<16x32xf32>
    %310 = arith.addf %308, %309 : vector<16x32xf32>
    %311 = arith.addf %287, %310 : vector<16x32xf32>
    %cst_96 = arith.constant dense<0.000000e+00> : vector<16xf32>
    %312 = vector.multi_reduction <add>, %311, %cst_96 [1] : vector<16x32xf32> to vector<16xf32>
    %313 = vector.shape_cast %312 : vector<16xf32> to vector<16x1xf32>
    %cst_97 = arith.constant 3.200000e+01 : f32
    %314 = vector.broadcast %cst_97 : f32 to vector<16x1xf32>
    %315 = arith.divf %313, %314 : vector<16x1xf32>
    %316 = vector.broadcast %315 : vector<16x1xf32> to vector<16x32xf32>
    %317 = arith.subf %311, %316 : vector<16x32xf32>
    %318 = arith.mulf %317, %317 : vector<16x32xf32>
    %cst_98 = arith.constant dense<0.000000e+00> : vector<16xf32>
    %319 = vector.multi_reduction <add>, %318, %cst_98 [1] : vector<16x32xf32> to vector<16xf32>
    %320 = vector.shape_cast %319 : vector<16xf32> to vector<16x1xf32>
    %cst_99 = arith.constant 3.200000e+01 : f32
    %321 = vector.broadcast %cst_99 : f32 to vector<16x1xf32>
    %322 = arith.divf %320, %321 : vector<16x1xf32>
    %323 = vector.broadcast %315 : vector<16x1xf32> to vector<16x32xf32>
    %324 = arith.subf %311, %323 : vector<16x32xf32>
    %cst_100 = arith.constant 9.99999996E-13 : f32
    %325 = vector.broadcast %cst_100 : f32 to vector<16x1xf32>
    %326 = arith.addf %322, %325 : vector<16x1xf32>
    %327 = math.rsqrt %326 : vector<16x1xf32>
    %328 = vector.broadcast %327 : vector<16x1xf32> to vector<16x32xf32>
    %329 = arith.mulf %324, %328 : vector<16x32xf32>
    %330 = vector.broadcast %178 : vector<1x32xf32> to vector<16x32xf32>
    %331 = arith.mulf %329, %330 : vector<16x32xf32>
    %332 = vector.broadcast %179 : vector<1x32xf32> to vector<16x32xf32>
    %333 = arith.addf %331, %332 : vector<16x32xf32>
    %334 = vector.shape_cast %333 : vector<16x32xf32> to vector<2x8x32xf32>
    %335 = vector.extract_strided_slice %334 {offsets = [0, 0, 0], sizes = [2, 1, 32], strides = [1, 1, 1]} : vector<2x8x32xf32> to vector<2x1x32xf32>
    %336 = vector.shape_cast %335 : vector<2x1x32xf32> to vector<2x32xf32>
    %c0_101 = arith.constant 0 : index
    %c0_102 = arith.constant 0 : index
    %337 = vector.load %arg8[%c0_101, %c0_102] : memref<32x32xf32, #tpu.memory_space<vmem>>, vector<32x32xf32>
    %cst_103 = arith.constant dense<0.000000e+00> : vector<2x32xf32>
    %338 = tpu.matmul %336, %337, %cst_103 {dimension_numbers = #tpu.dot_dimension_numbers<[1], [0], [0], [1], [0, 0, 1, 1], [], []>} : vector<2x32xf32>, vector<32x32xf32>, vector<2x32xf32> -> vector<2x32xf32>
    %c0_104 = arith.constant 0 : index
    %c0_105 = arith.constant 0 : index
    %339 = vector.load %arg9[%c0_104, %c0_105] : memref<1x32xf32, #tpu.memory_space<vmem>>, vector<1x32xf32>
    %340 = vector.broadcast %339 : vector<1x32xf32> to vector<2x32xf32>
    %341 = arith.addf %338, %340 : vector<2x32xf32>
    %342 = math.tanh %341 : vector<2x32xf32>
    %c0_106 = arith.constant 0 : index
    %c0_107 = arith.constant 0 : index
    %343 = vector.load %arg10[%c0_106, %c0_107] : memref<2x32xf32, #tpu.memory_space<vmem>>, vector<2x32xf32>
    tpu.vector_store %arg10[%c0_106, %c0_107], %342 {strides = array<i32>} : memref<2x32xf32, #tpu.memory_space<vmem>>, vector<2x32xf32>,
    %c0_108 = arith.constant 0 : index
    %c0_109 = arith.constant 0 : index
    %344 = vector.load %arg2[%c0_108, %c0_109] : memref<16x1xf32, #tpu.memory_space<vmem>>, vector<16x1xf32>
    %345 = vector.broadcast %344 : vector<16x1xf32> to vector<16x32xf32>
    %346 = arith.mulf %333, %345 : vector<16x32xf32>
    %347 = vector.shape_cast %346 : vector<16x32xf32> to vector<2x8x32xf32>
    %cst_110 = arith.constant dense<0.000000e+00> : vector<2x32xf32>
    %348 = vector.multi_reduction <add>, %347, %cst_110 [1] : vector<2x8x32xf32> to vector<2x32xf32>
    %cst_111 = arith.constant dense<0.000000e+00> : vector<2xf32>
    %349 = vector.multi_reduction <add>, %1, %cst_111 [1] : vector<2x8xf32> to vector<2xf32>
    %350 = vector.shape_cast %349 : vector<2xf32> to vector<2x1xf32>
    %cst_112 = arith.constant 9.99999971E-10 : f32
    %351 = vector.broadcast %cst_112 : f32 to vector<2x1xf32>
    %352 = arith.maximumf %350, %351 : vector<2x1xf32>
    %353 = vector.broadcast %352 : vector<2x1xf32> to vector<2x32xf32>
    %354 = arith.divf %348, %353 : vector<2x32xf32>
    %c0_113 = arith.constant 0 : index
    %c0_114 = arith.constant 0 : index
    %355 = vector.load %arg11[%c0_113, %c0_114] : memref<2x32xf32, #tpu.memory_space<vmem>>, vector<2x32xf32>
    tpu.vector_store %arg11[%c0_113, %c0_114], %354 {strides = array<i32>} : memref<2x32xf32, #tpu.memory_space<vmem>>, vector<2x32xf32>,
    return
  }
}

</mosaic_0001>

<llo_original>
// kernel: encoder_forward.1
$region0: #{encoder_forward.1}
  #allocation0 [shape = 'u32[]', space=smem, size = 0x4, offset = 0x4, fixed_abs, tag = 'smem constant byte address 0x4 - core index']
  #allocation1 [shape = 'u32[144,128]{1,0:T(1,128)}', space=vmem, size = 0x12000, scoped, tag = 'internal scratch']
  %s0 = inlined_call_operand.vmem [shape: f32[16,32], index: 0, kind: input, shape index: {}]
  %s1 = inlined_call_operand.vmem [shape: f32[2,8], index: 1, kind: input, shape index: {}]
  %s2 = inlined_call_operand.vmem [shape: f32[16,1], index: 2, kind: input, shape index: {}]
  %s3 = inlined_call_operand.vmem [shape: f32[2,32,96], index: 3, kind: input, shape index: {}]
  %s4 = inlined_call_operand.vmem [shape: f32[2,32,32], index: 4, kind: input, shape index: {}]
  %s5 = inlined_call_operand.vmem [shape: f32[2,32,64], index: 5, kind: input, shape index: {}]
  %s6 = inlined_call_operand.vmem [shape: f32[2,64,32], index: 6, kind: input, shape index: {}]
  %s7 = inlined_call_operand.vmem [shape: f32[2,8,128], index: 7, kind: input, shape index: {}]
  %s8 = inlined_call_operand.vmem [shape: f32[32,32], index: 8, kind: input, shape index: {}]
  %s9 = inlined_call_operand.vmem [shape: f32[1,32], index: 9, kind: input, shape index: {}]
  %s10 = inlined_call_operand.hbm [shape: f32[2,32], index: 10, kind: output, shape index: {0}]
  %s11 = inlined_call_operand.hbm [shape: f32[2,32], index: 11, kind: output, shape index: {1}]
  %12 = xla_tuple %s10, %s11
  %s13 = sld [smem:[#allocation0]]
  $region58: #{encoder_forward.1} parent=0
    _
  %s15 = ssub.s32 1, %s13
  %s16 = scalar_select 0, %s15, %s13
  $region1: #{encoder_forward.1} parent=0
    #allocation2 [shape = 'u8[1024]{0}', space=vmem, size = 0x400, scoped, tag = 'output window, operand 0, single buffered']
    #allocation3 [shape = 's32[1]{0}', space=sflag, size = 0x4, scoped, tag = 'scoped memory for encoder_forward.1']
    #allocation4 [shape = 'u8[1024]{0}', space=vmem, size = 0x400, scoped, tag = 'output window, operand 1, single buffered']
    #allocation5 [shape = 's32[1]{0}', space=sflag, size = 0x4, scoped, tag = 'scoped memory for encoder_forward.1']
    %17 = vsyncpa [#allocation3], 0
    %18 = vsyncpa [#allocation5], 0
    // Predicated region
    $region2: #{encoder_forward.1} parent=1 // pred_check
      _
    $region3: #{encoder_forward.1} parent=1 // pred_check_branch
      %20 = sbr.rel (0) target = $region5
    $region4: #{encoder_forward.1} parent=1 // pred_region
      _
    $region5: #{encoder_forward.1} parent=1 // pred_fallthru
      _
    // Predicated region
    $region6: #{encoder_forward.1} parent=1 // pred_check
      _
    $region7: #{encoder_forward.1} parent=1 // pred_check_branch
      %22 = sbr.rel (0) target = $region9
    $region8: #{encoder_forward.1} parent=1 // pred_region
      _
    $region9: #{encoder_forward.1} parent=1 // pred_fallthru
      _
    // Predicated region
    $region10: #{encoder_forward.1} parent=1 // pred_check
      _
    $region11: #{encoder_forward.1} parent=1 // pred_check_branch
      %24 = sbr.rel (0) target = $region13
    $region12: #{encoder_forward.1} parent=1 // pred_region
      _
    $region13: #{encoder_forward.1} parent=1 // pred_fallthru
      _
    // Predicated region
    $region14: #{encoder_forward.1} parent=1 // pred_check
      _
    $region15: #{encoder_forward.1} parent=1 // pred_check_branch
      %26 = sbr.rel (0) target = $region17
    $region16: #{encoder_forward.1} parent=1 // pred_region
      _
    $region17: #{encoder_forward.1} parent=1 // pred_fallthru
      _
    // Predicated region
    $region18: #{encoder_forward.1} parent=1 // pred_check
      _
    $region19: #{encoder_forward.1} parent=1 // pred_check_branch
      %28 = sbr.rel (0) target = $region21
    $region20: #{encoder_forward.1} parent=1 // pred_region
      _
    $region21: #{encoder_forward.1} parent=1 // pred_fallthru
      _
    // Predicated region
    $region22: #{encoder_forward.1} parent=1 // pred_check
      _
    $region23: #{encoder_forward.1} parent=1 // pred_check_branch
      %30 = sbr.rel (0) target = $region25
    $region24: #{encoder_forward.1} parent=1 // pred_region
      _
    $region25: #{encoder_forward.1} parent=1 // pred_fallthru
      _
    // Predicated region
    $region26: #{encoder_forward.1} parent=1 // pred_check
      _
    $region27: #{encoder_forward.1} parent=1 // pred_check_branch
      %32 = sbr.rel (0) target = $region29
    $region28: #{encoder_forward.1} parent=1 // pred_region
      _
    $region29: #{encoder_forward.1} parent=1 // pred_fallthru
      _
    // Predicated region
    $region30: #{encoder_forward.1} parent=1 // pred_check
      _
    $region31: #{encoder_forward.1} parent=1 // pred_check_branch
      %34 = sbr.rel (0) target = $region33
    $region32: #{encoder_forward.1} parent=1 // pred_region
      _
    $region33: #{encoder_forward.1} parent=1 // pred_fallthru
      _
    // Predicated region
    $region34: #{encoder_forward.1} parent=1 // pred_check
      _
    $region35: #{encoder_forward.1} parent=1 // pred_check_branch
      %36 = sbr.rel (0) target = $region37
    $region36: #{encoder_forward.1} parent=1 // pred_region
      _
    $region37: #{encoder_forward.1} parent=1 // pred_fallthru
      _
    // Predicated region
    $region38: #{encoder_forward.1} parent=1 // pred_check
      _
    $region39: #{encoder_forward.1} parent=1 // pred_check_branch
      %38 = sbr.rel (0) target = $region41
    $region40: #{encoder_forward.1} parent=1 // pred_region
      _
    $region41: #{encoder_forward.1} parent=1 // pred_fallthru
      _
    %v39 = vld [vmem:[%s0] sm:$0xff]
    %v40 = vld [vmem:[%s0 + $0x8] sm:$0xff]
    %v41 = vld [vmem:[%s1] sm:$0x3]
    %v42 = vsub.f32 1.0, %v41
    %v43 = vmul.f32 %v42, -1e+09
    %v44 = vld [vmem:[%s7] sm:$0xff]
    %v45 = vld [vmem:[%s3] sm:$0xff]
    %v46 = vld [vmem:[%s3 + $0x8] sm:$0xff]
    %v47 = vld [vmem:[%s3 + $0x10] sm:$0xff]
    %v48 = vld [vmem:[%s3 + $0x18] sm:$0xff]
    %v49 = vlaneseq
    %v50 = vshrl.u32 %v49, 7
    %v51 = vsub.s32 0, %v50
    %v52 = vrot.slane %v44, %v51
    %vm53 = vcmask 261120
    %v55 = vsel %vm53, %v39, 0
    %v58 = vsel %vm53, %v40, 0
    %60 = vmatprep.subr.mxu0 0.0
    %61 = vmatpush1.msra.mxu0 0.0
    %62 = vmatprep.subr.mxu0 0.0
    %63 = vmatpush1.msra.mxu0 0.0
    %64 = vmatprep.subr.mxu0 0.0
    %65 = vmatpush1.msra.mxu0 0.0
    %66 = vmatprep.subr.mxu0 0.0
    %67 = vmatpush1.msra.mxu0 0.0
    %68 = vmatprep.subr.mxu0 0.0
    %69 = vmatpush1.msra.mxu0 0.0
    %70 = vmatprep.subr.mxu0 0.0
    %71 = vmatpush1.msra.mxu0 0.0
    %72 = vmatprep.subr.mxu0 0.0
    %73 = vmatpush1.msra.mxu0 0.0
    %74 = vmatprep.subr.mxu0 0.0
    %75 = vmatpush1.msra.mxu0 0.0
    %76 = vmatprep.subr.mxu0 0.0
    %77 = vmatpush1.msra.mxu0 0.0
    %78 = vmatprep.subr.mxu0 0.0
    %79 = vmatpush1.msra.mxu0 0.0
    %80 = vmatprep.subr.mxu0 0.0
    %81 = vmatpush1.msra.mxu0 0.0
    %82 = vmatprep.subr.mxu0 0.0
    %83 = vmatpush1.msra.mxu0 0.0
    %84 = vmatprep.subr.mxu0 0.0
    %85 = vmatpush1.msra.mxu0 %v48
    %86 = vmatprep.subr.mxu0 0.0
    %87 = vmatpush1.msra.mxu0 %v47
    %88 = vmatprep.subr.mxu0 0.0
    %89 = vmatpush1.msra.mxu0 %v46
    %90 = vmatprep.subr.mxu0 0.0
    %91 = vmatpush1.msra.mxu0 %v45
    %92 = vmatprep.subr.mxu0 0.0
    %93 = vmatpush2.msra.mxu0 0.0
    %94 = vmatprep.subr.mxu0 0.0
    %95 = vmatpush2.msra.mxu0 0.0
    %96 = vmatprep.subr.mxu0 0.0
    %97 = vmatpush2.msra.mxu0 0.0
    %98 = vmatprep.subr.mxu0 0.0
    %99 = vmatpush2.msra.mxu0 0.0
    %100 = vmatprep.subr.mxu0 0.0
    %101 = vmatpush2.msra.mxu0 0.0
    %102 = vmatprep.subr.mxu0 0.0
    %103 = vmatpush2.msra.mxu0 0.0
    %104 = vmatprep.subr.mxu0 0.0
    %105 = vmatpush2.msra.mxu0 0.0
    %106 = vmatprep.subr.mxu0 0.0
    %107 = vmatpush2.msra.mxu0 0.0
    %108 = vmatprep.subr.mxu0 0.0
    %109 = vmatpush2.msra.mxu0 0.0
    %110 = vmatprep.subr.mxu0 0.0
    %111 = vmatpush2.msra.mxu0 0.0
    %112 = vmatprep.subr.mxu0 0.0
    %113 = vmatpush2.msra.mxu0 0.0
    %114 = vmatprep.subr.mxu0 0.0
    %115 = vmatpush2.msra.mxu0 0.0
    %116 = vmatprep.subr.mxu0 0.0
    %117 = vmatpush2.msra.mxu0 0.0
    %118 = vmatprep.subr.mxu0 0.0
    %119 = vmatpush2.msra.mxu0 0.0
    %120 = vmatprep.subr.mxu0 0.0
    %121 = vmatpush2.msra.mxu0 0.0
    %122 = vmatprep.subr.mxu0 0.0
    %123 = vmatpush2.msra.mxu0 0.0
    %124 = vmatprep.mubr.f32.mxu0 0.0
    %125 = vmatmul.mubr.f32.gmra.mxu0 %v55
    %v126 = vpop.f32.mrf.mxu0
    %v127 = vadd.f32 %v52, %v126
    %v128 = vpop.f32.mrf.mxu0
    %129 = vmatprep.mubr.f32.mxu0 0.0
    %130 = vmatmul.mubr.f32.gmra.mxu0 %v58
    %v131 = vpop.f32.mrf.mxu0
    %v132 = vadd.f32 %v52, %v131
    %v133 = vpop.f32.mrf.mxu0
    %134 = vdwg.mxu0
    %v137 = vunpack.c.l.s4 1966171168
    %v138 = vunpack.c.0.s8 %v137
    %v139 = vlaneseq
    %v140 = vshrl.u32 %v139, 7
    %v141 = vsub.s32 %v138, %v140
    %v142 = vrot.slane %v43, %v141
    %v143 = vcombine.high %v142, %v142
    %v145 = vunpack.c.l.s4 1966171168
    %v146 = vunpack.c.0.s8 %v145
    %v147 = vlaneseq
    %v148 = vshrl.u32 %v147, 7
    %v149 = vsub.s32 %v146, %v148
    %v150 = vrot.slane %v142, %v149
    %v152 = vunpack.c.l.s4 1966171168
    %v153 = vunpack.c.0.s8 %v152
    %v154 = vlaneseq
    %v155 = vshrl.u32 %v154, 7
    %v156 = vsub.s32 %v153, %v155
    %v157 = vrot.slane %v143, %v156
    %v158 = vlaneseq
    %v159 = vshrl.u32 %v158, 7
    %v160 = vsub.s32 0, %v159
    %v161 = vrot.slane %v150, %v160
    %v162 = vlaneseq
    %v163 = vshrl.u32 %v162, 7
    %v164 = vsub.s32 0, %v163
    %v165 = vrot.slane %v157, %v164
    %169 = vrot.lane.b32.xlu0 %v127, 96
    %v170 = vpop.permute.xlu0 %169
    %vm171 = vcmask 64512
    %v172 = vsel %vm171, %v127, 0
    %v174 = vsel %vm171, %v170, 0
    %176 = vmatprep.subr.mxu0 0.0
    %177 = vmatpush1.xpose.msra.mxu0 0.0
    %178 = vmatprep.subr.mxu0 0.0
    %179 = vmatpush1.xpose.msra.mxu0 0.0
    %180 = vmatprep.subr.mxu0 0.0
    %181 = vmatpush1.xpose.msra.mxu0 0.0
    %182 = vmatprep.subr.mxu0 0.0
    %183 = vmatpush1.xpose.msra.mxu0 0.0
    %184 = vmatprep.subr.mxu0 0.0
    %185 = vmatpush1.xpose.msra.mxu0 0.0
    %186 = vmatprep.subr.mxu0 0.0
    %187 = vmatpush1.xpose.msra.mxu0 0.0
    %188 = vmatprep.subr.mxu0 0.0
    %189 = vmatpush1.xpose.msra.mxu0 0.0
    %190 = vmatprep.subr.mxu0 0.0
    %191 = vmatpush1.xpose.msra.mxu0 0.0
    %192 = vmatprep.subr.mxu0 0.0
    %193 = vmatpush1.xpose.msra.mxu0 0.0
    %194 = vmatprep.subr.mxu0 0.0
    %195 = vmatpush1.xpose.msra.mxu0 0.0
    %196 = vmatprep.subr.mxu0 0.0
    %197 = vmatpush1.xpose.msra.mxu0 0.0
    %198 = vmatprep.subr.mxu0 0.0
    %199 = vmatpush1.xpose.msra.mxu0 0.0
    %200 = vmatprep.subr.mxu0 0.0
    %201 = vmatpush1.xpose.msra.mxu0 0.0
    %202 = vmatprep.subr.mxu0 0.0
    %203 = vmatpush1.xpose.msra.mxu0 0.0
    %204 = vmatprep.subr.mxu0 0.0
    %205 = vmatpush1.xpose.msra.mxu0 0.0
    %206 = vmatprep.subr.mxu0 0.0
    %207 = vmatpush1.xpose.msra.mxu0 %v174
    %208 = vmatprep.subr.mxu0 0.0
    %209 = vmatpush2.xpose.msra.mxu0 0.0
    %210 = vmatprep.subr.mxu0 0.0
    %211 = vmatpush2.xpose.msra.mxu0 0.0
    %212 = vmatprep.subr.mxu0 0.0
    %213 = vmatpush2.xpose.msra.mxu0 0.0
    %214 = vmatprep.subr.mxu0 0.0
    %215 = vmatpush2.xpose.msra.mxu0 0.0
    %216 = vmatprep.subr.mxu0 0.0
    %217 = vmatpush2.xpose.msra.mxu0 0.0
    %218 = vmatprep.subr.mxu0 0.0
    %219 = vmatpush2.xpose.msra.mxu0 0.0
    %220 = vmatprep.subr.mxu0 0.0
    %221 = vmatpush2.xpose.msra.mxu0 0.0
    %222 = vmatprep.subr.mxu0 0.0
    %223 = vmatpush2.xpose.msra.mxu0 0.0
    %224 = vmatprep.subr.mxu0 0.0
    %225 = vmatpush2.xpose.msra.mxu0 0.0
    %226 = vmatprep.subr.mxu0 0.0
    %227 = vmatpush2.xpose.msra.mxu0 0.0
    %228 = vmatprep.subr.mxu0 0.0
    %229 = vmatpush2.xpose.msra.mxu0 0.0
    %230 = vmatprep.subr.mxu0 0.0
    %231 = vmatpush2.xpose.msra.mxu0 0.0
    %232 = vmatprep.subr.mxu0 0.0
    %233 = vmatpush2.xpose.msra.mxu0 0.0
    %234 = vmatprep.subr.mxu0 0.0
    %235 = vmatpush2.xpose.msra.mxu0 0.0
    %236 = vmatprep.subr.mxu0 0.0
    %237 = vmatpush2.xpose.msra.mxu0 0.0
    %238 = vmatprep.subr.mxu0 0.0
    %239 = vmatpush2.xpose.msra.mxu0 0.0
    %240 = vmatprep.mubr.f32.mxu0 0.0
    %241 = vmatmul.mubr.f32.gmra.mxu0 %v172
    %v242 = vpop.f32.mrf.mxu0
    %v243 = vadd.f32 %v161, %v242
    %v244 = vpop.f32.mrf.mxu0
    %245 = vdwg.mxu0
    %247 = vrot.lane.b32.xlu0 %v132, 96
    %v248 = vpop.permute.xlu0 %247
    %v249 = vsel %vm171, %v132, 0
    %v251 = vsel %vm171, %v248, 0
    %253 = vmatprep.subr.mxu0 0.0
    %254 = vmatpush1.xpose.msra.mxu0 0.0
    %255 = vmatprep.subr.mxu0 0.0
    %256 = vmatpush1.xpose.msra.mxu0 0.0
    %257 = vmatprep.subr.mxu0 0.0
    %258 = vmatpush1.xpose.msra.mxu0 0.0
    %259 = vmatprep.subr.mxu0 0.0
    %260 = vmatpush1.xpose.msra.mxu0 0.0
    %261 = vmatprep.subr.mxu0 0.0
    %262 = vmatpush1.xpose.msra.mxu0 0.0
    %263 = vmatprep.subr.mxu0 0.0
    %264 = vmatpush1.xpose.msra.mxu0 0.0
    %265 = vmatprep.subr.mxu0 0.0
    %266 = vmatpush1.xpose.msra.mxu0 0.0
    %267 = vmatprep.subr.mxu0 0.0
    %268 = vmatpush1.xpose.msra.mxu0 0.0
    %269 = vmatprep.subr.mxu0 0.0
    %270 = vmatpush1.xpose.msra.mxu0 0.0
    %271 = vmatprep.subr.mxu0 0.0
    %272 = vmatpush1.xpose.msra.mxu0 0.0
    %273 = vmatprep.subr.mxu0 0.0
    %274 = vmatpush1.xpose.msra.mxu0 0.0
    %275 = vmatprep.subr.mxu0 0.0
    %276 = vmatpush1.xpose.msra.mxu0 0.0
    %277 = vmatprep.subr.mxu0 0.0
    %278 = vmatpush1.xpose.msra.mxu0 0.0
    %279 = vmatprep.subr.mxu0 0.0
    %280 = vmatpush1.xpose.msra.mxu0 0.0
    %281 = vmatprep.subr.mxu0 0.0
    %282 = vmatpush1.xpose.msra.mxu0 0.0
    %283 = vmatprep.subr.mxu0 0.0
    %284 = vmatpush1.xpose.msra.mxu0 %v251
    %285 = vmatprep.subr.mxu0 0.0
    %286 = vmatpush2.xpose.msra.mxu0 0.0
    %287 = vmatprep.subr.mxu0 0.0
    %288 = vmatpush2.xpose.msra.mxu0 0.0
    %289 = vmatprep.subr.mxu0 0.0
    %290 = vmatpush2.xpose.msra.mxu0 0.0
    %291 = vmatprep.subr.mxu0 0.0
    %292 = vmatpush2.xpose.msra.mxu0 0.0
    %293 = vmatprep.subr.mxu0 0.0
    %294 = vmatpush2.xpose.msra.mxu0 0.0
    %295 = vmatprep.subr.mxu0 0.0
    %296 = vmatpush2.xpose.msra.mxu0 0.0
    %297 = vmatprep.subr.mxu0 0.0
    %298 = vmatpush2.xpose.msra.mxu0 0.0
    %299 = vmatprep.subr.mxu0 0.0
    %300 = vmatpush2.xpose.msra.mxu0 0.0
    %301 = vmatprep.subr.mxu0 0.0
    %302 = vmatpush2.xpose.msra.mxu0 0.0
    %303 = vmatprep.subr.mxu0 0.0
    %304 = vmatpush2.xpose.msra.mxu0 0.0
    %305 = vmatprep.subr.mxu0 0.0
    %306 = vmatpush2.xpose.msra.mxu0 0.0
    %307 = vmatprep.subr.mxu0 0.0
    %308 = vmatpush2.xpose.msra.mxu0 0.0
    %309 = vmatprep.subr.mxu0 0.0
    %310 = vmatpush2.xpose.msra.mxu0 0.0
    %311 = vmatprep.subr.mxu0 0.0
    %312 = vmatpush2.xpose.msra.mxu0 0.0
    %313 = vmatprep.subr.mxu0 0.0
    %314 = vmatpush2.xpose.msra.mxu0 0.0
    %315 = vmatprep.subr.mxu0 0.0
    %316 = vmatpush2.xpose.msra.mxu0 0.0
    %317 = vmatprep.mubr.f32.mxu0 0.0
    %318 = vmatmul.mubr.f32.gmra.mxu0 %v249
    %v319 = vpop.f32.mrf.mxu0
    %v320 = vadd.f32 %v165, %v319
    %v321 = vpop.f32.mrf.mxu0
    %322 = vdwg.mxu0
    %v323 = vsel %vm171, %v243, -inf
    %324 = vmax.xlane.f32.xlu0 %v323
    %v325 = vpop.xlane.xlu0 %324
    %v326 = vsel %vm171, %v320, -inf
    %327 = vmax.xlane.f32.xlu0 %v326
    %v328 = vpop.xlane.xlu0 %327
    %v329 = vsub.f32 %v243, %v325
    %v330 = vsub.f32 %v320, %v328
    %v331 = vmul.f32 %v329, 1.442695
    %v332 = vpow.pop %v331
    %v333 = vmul.f32 %v330, 1.442695
    %v334 = vpow.pop %v333
    %v335 = vsel %vm171, %v332, 0.0
    %336 = vadd.xlane.f32.xlu0 %v335
    %v337 = vpop.xlane.xlu0 %336
    %v338 = vsel %vm171, %v334, 0.0
    %339 = vadd.xlane.f32.xlu0 %v338
    %v340 = vpop.xlane.xlu0 %339
    %v341 = vrcp.pop %v337
    %v342 = vrcp.pop %v340
    %v343 = vmul.f32 %v332, %v341
    %v344 = vmul.f32 %v334, %v342
    %345 = vrot.lane.b32.xlu0 %v127, 64
    %v346 = vpop.permute.xlu0 %345
    %v349 = vsel %vm171, %v343, 0
    %351 = vmatprep.subr.mxu0 0.0
    %352 = vmatpush1.msra.mxu0 0.0
    %353 = vmatprep.subr.mxu0 0.0
    %354 = vmatpush1.msra.mxu0 0.0
    %355 = vmatprep.subr.mxu0 0.0
    %356 = vmatpush1.msra.mxu0 0.0
    %357 = vmatprep.subr.mxu0 0.0
    %358 = vmatpush1.msra.mxu0 0.0
    %359 = vmatprep.subr.mxu0 0.0
    %360 = vmatpush1.msra.mxu0 0.0
    %361 = vmatprep.subr.mxu0 0.0
    %362 = vmatpush1.msra.mxu0 0.0
    %363 = vmatprep.subr.mxu0 0.0
    %364 = vmatpush1.msra.mxu0 0.0
    %365 = vmatprep.subr.mxu0 0.0
    %366 = vmatpush1.msra.mxu0 0.0
    %367 = vmatprep.subr.mxu0 0.0
    %368 = vmatpush1.msra.mxu0 0.0
    %369 = vmatprep.subr.mxu0 0.0
    %370 = vmatpush1.msra.mxu0 0.0
    %371 = vmatprep.subr.mxu0 0.0
    %372 = vmatpush1.msra.mxu0 0.0
    %373 = vmatprep.subr.mxu0 0.0
    %374 = vmatpush1.msra.mxu0 0.0
    %375 = vmatprep.subr.mxu0 0.0
    %376 = vmatpush1.msra.mxu0 0.0
    %377 = vmatprep.subr.mxu0 0.0
    %378 = vmatpush1.msra.mxu0 0.0
    %379 = vmatprep.subr.mxu0 0.0
    %380 = vmatpush1.msra.mxu0 0.0
    %381 = vmatprep.subr.mxu0 0.0
    %382 = vmatpush1.msra.mxu0 %v346
    %383 = vmatprep.subr.mxu0 0.0
    %384 = vmatpush2.msra.mxu0 0.0
    %385 = vmatprep.subr.mxu0 0.0
    %386 = vmatpush2.msra.mxu0 0.0
    %387 = vmatprep.subr.mxu0 0.0
    %388 = vmatpush2.msra.mxu0 0.0
    %389 = vmatprep.subr.mxu0 0.0
    %390 = vmatpush2.msra.mxu0 0.0
    %391 = vmatprep.subr.mxu0 0.0
    %392 = vmatpush2.msra.mxu0 0.0
    %393 = vmatprep.subr.mxu0 0.0
    %394 = vmatpush2.msra.mxu0 0.0
    %395 = vmatprep.subr.mxu0 0.0
    %396 = vmatpush2.msra.mxu0 0.0
    %397 = vmatprep.subr.mxu0 0.0
    %398 = vmatpush2.msra.mxu0 0.0
    %399 = vmatprep.subr.mxu0 0.0
    %400 = vmatpush2.msra.mxu0 0.0
    %401 = vmatprep.subr.mxu0 0.0
    %402 = vmatpush2.msra.mxu0 0.0
    %403 = vmatprep.subr.mxu0 0.0
    %404 = vmatpush2.msra.mxu0 0.0
    %405 = vmatprep.subr.mxu0 0.0
    %406 = vmatpush2.msra.mxu0 0.0
    %407 = vmatprep.subr.mxu0 0.0
    %408 = vmatpush2.msra.mxu0 0.0
    %409 = vmatprep.subr.mxu0 0.0
    %410 = vmatpush2.msra.mxu0 0.0
    %411 = vmatprep.subr.mxu0 0.0
    %412 = vmatpush2.msra.mxu0 0.0
    %413 = vmatprep.subr.mxu0 0.0
    %414 = vmatpush2.msra.mxu0 0.0
    %415 = vmatprep.mubr.f32.mxu0 0.0
    %416 = vmatmul.mubr.f32.gmra.mxu0 %v349
    %v417 = vpop.f32.mrf.mxu0
    %v418 = vadd.f32 0.0, %v417
    %v419 = vpop.f32.mrf.mxu0
    %420 = vdwg.mxu0
    %421 = vrot.lane.b32.xlu0 %v132, 64
    %v422 = vpop.permute.xlu0 %421
    %v425 = vsel %vm171, %v344, 0
    %427 = vmatprep.subr.mxu0 0.0
    %428 = vmatpush1.msra.mxu0 0.0
    %429 = vmatprep.subr.mxu0 0.0
    %430 = vmatpush1.msra.mxu0 0.0
    %431 = vmatprep.subr.mxu0 0.0
    %432 = vmatpush1.msra.mxu0 0.0
    %433 = vmatprep.subr.mxu0 0.0
    %434 = vmatpush1.msra.mxu0 0.0
    %435 = vmatprep.subr.mxu0 0.0
    %436 = vmatpush1.msra.mxu0 0.0
    %437 = vmatprep.subr.mxu0 0.0
    %438 = vmatpush1.msra.mxu0 0.0
    %439 = vmatprep.subr.mxu0 0.0
    %440 = vmatpush1.msra.mxu0 0.0
    %441 = vmatprep.subr.mxu0 0.0
    %442 = vmatpush1.msra.mxu0 0.0
    %443 = vmatprep.subr.mxu0 0.0
    %444 = vmatpush1.msra.mxu0 0.0
    %445 = vmatprep.subr.mxu0 0.0
    %446 = vmatpush1.msra.mxu0 0.0
    %447 = vmatprep.subr.mxu0 0.0
    %448 = vmatpush1.msra.mxu0 0.0
    %449 = vmatprep.subr.mxu0 0.0
    %450 = vmatpush1.msra.mxu0 0.0
    %451 = vmatprep.subr.mxu0 0.0
    %452 = vmatpush1.msra.mxu0 0.0
    %453 = vmatprep.subr.mxu0 0.0
    %454 = vmatpush1.msra.mxu0 0.0
    %455 = vmatprep.subr.mxu0 0.0
    %456 = vmatpush1.msra.mxu0 0.0
    %457 = vmatprep.subr.mxu0 0.0
    %458 = vmatpush1.msra.mxu0 %v422
    %459 = vmatprep.subr.mxu0 0.0
    %460 = vmatpush2.msra.mxu0 0.0
    %461 = vmatprep.subr.mxu0 0.0
    %462 = vmatpush2.msra.mxu0 0.0
    %463 = vmatprep.subr.mxu0 0.0
    %464 = vmatpush2.msra.mxu0 0.0
    %465 = vmatprep.subr.mxu0 0.0
    %466 = vmatpush2.msra.mxu0 0.0
    %467 = vmatprep.subr.mxu0 0.0
    %468 = vmatpush2.msra.mxu0 0.0
    %469 = vmatprep.subr.mxu0 0.0
    %470 = vmatpush2.msra.mxu0 0.0
    %471 = vmatprep.subr.mxu0 0.0
    %472 = vmatpush2.msra.mxu0 0.0
    %473 = vmatprep.subr.mxu0 0.0
    %474 = vmatpush2.msra.mxu0 0.0
    %475 = vmatprep.subr.mxu0 0.0
    %476 = vmatpush2.msra.mxu0 0.0
    %477 = vmatprep.subr.mxu0 0.0
    %478 = vmatpush2.msra.mxu0 0.0
    %479 = vmatprep.subr.mxu0 0.0
    %480 = vmatpush2.msra.mxu0 0.0
    %481 = vmatprep.subr.mxu0 0.0
    %482 = vmatpush2.msra.mxu0 0.0
    %483 = vmatprep.subr.mxu0 0.0
    %484 = vmatpush2.msra.mxu0 0.0
    %485 = vmatprep.subr.mxu0 0.0
    %486 = vmatpush2.msra.mxu0 0.0
    %487 = vmatprep.subr.mxu0 0.0
    %488 = vmatpush2.msra.mxu0 0.0
    %489 = vmatprep.subr.mxu0 0.0
    %490 = vmatpush2.msra.mxu0 0.0
    %491 = vmatprep.mubr.f32.mxu0 0.0
    %492 = vmatmul.mubr.f32.gmra.mxu0 %v425
    %v493 = vpop.f32.mrf.mxu0
    %v494 = vadd.f32 0.0, %v493
    %v495 = vpop.f32.mrf.mxu0
    %496 = vdwg.mxu0
    %497 = vrot.lane.b32.xlu0 %v127, 120
    %v498 = vpop.permute.xlu0 %497
    %499 = vrot.lane.b32.xlu0 %v127, 88
    %v500 = vpop.permute.xlu0 %499
    %v501 = vsel %vm171, %v498, 0
    %v503 = vsel %vm171, %v500, 0
    %505 = vmatprep.subr.mxu0 0.0
    %506 = vmatpush1.xpose.msra.mxu0 0.0
    %507 = vmatprep.subr.mxu0 0.0
    %508 = vmatpush1.xpose.msra.mxu0 0.0
    %509 = vmatprep.subr.mxu0 0.0
    %510 = vmatpush1.xpose.msra.mxu0 0.0
    %511 = vmatprep.subr.mxu0 0.0
    %512 = vmatpush1.xpose.msra.mxu0 0.0
    %513 = vmatprep.subr.mxu0 0.0
    %514 = vmatpush1.xpose.msra.mxu0 0.0
    %515 = vmatprep.subr.mxu0 0.0
    %516 = vmatpush1.xpose.msra.mxu0 0.0
    %517 = vmatprep.subr.mxu0 0.0
    %518 = vmatpush1.xpose.msra.mxu0 0.0
    %519 = vmatprep.subr.mxu0 0.0
    %520 = vmatpush1.xpose.msra.mxu0 0.0
    %521 = vmatprep.subr.mxu0 0.0
    %522 = vmatpush1.xpose.msra.mxu0 0.0
    %523 = vmatprep.subr.mxu0 0.0
    %524 = vmatpush1.xpose.msra.mxu0 0.0
    %525 = vmatprep.subr.mxu0 0.0
    %526 = vmatpush1.xpose.msra.mxu0 0.0
    %527 = vmatprep.subr.mxu0 0.0
    %528 = vmatpush1.xpose.msra.mxu0 0.0
    %529 = vmatprep.subr.mxu0 0.0
    %530 = vmatpush1.xpose.msra.mxu0 0.0
    %531 = vmatprep.subr.mxu0 0.0
    %532 = vmatpush1.xpose.msra.mxu0 0.0
    %533 = vmatprep.subr.mxu0 0.0
    %534 = vmatpush1.xpose.msra.mxu0 0.0
    %535 = vmatprep.subr.mxu0 0.0
    %536 = vmatpush1.xpose.msra.mxu0 %v503
    %537 = vmatprep.subr.mxu0 0.0
    %538 = vmatpush2.xpose.msra.mxu0 0.0
    %539 = vmatprep.subr.mxu0 0.0
    %540 = vmatpush2.xpose.msra.mxu0 0.0
    %541 = vmatprep.subr.mxu0 0.0
    %542 = vmatpush2.xpose.msra.mxu0 0.0
    %543 = vmatprep.subr.mxu0 0.0
    %544 = vmatpush2.xpose.msra.mxu0 0.0
    %545 = vmatprep.subr.mxu0 0.0
    %546 = vmatpush2.xpose.msra.mxu0 0.0
    %547 = vmatprep.subr.mxu0 0.0
    %548 = vmatpush2.xpose.msra.mxu0 0.0
    %549 = vmatprep.subr.mxu0 0.0
    %550 = vmatpush2.xpose.msra.mxu0 0.0
    %551 = vmatprep.subr.mxu0 0.0
    %552 = vmatpush2.xpose.msra.mxu0 0.0
    %553 = vmatprep.subr.mxu0 0.0
    %554 = vmatpush2.xpose.msra.mxu0 0.0
    %555 = vmatprep.subr.mxu0 0.0
    %556 = vmatpush2.xpose.msra.mxu0 0.0
    %557 = vmatprep.subr.mxu0 0.0
    %558 = vmatpush2.xpose.msra.mxu0 0.0
    %559 = vmatprep.subr.mxu0 0.0
    %560 = vmatpush2.xpose.msra.mxu0 0.0
    %561 = vmatprep.subr.mxu0 0.0
    %562 = vmatpush2.xpose.msra.mxu0 0.0
    %563 = vmatprep.subr.mxu0 0.0
    %564 = vmatpush2.xpose.msra.mxu0 0.0
    %565 = vmatprep.subr.mxu0 0.0
    %566 = vmatpush2.xpose.msra.mxu0 0.0
    %567 = vmatprep.subr.mxu0 0.0
    %568 = vmatpush2.xpose.msra.mxu0 0.0
    %569 = vmatprep.mubr.f32.mxu0 0.0
    %570 = vmatmul.mubr.f32.gmra.mxu0 %v501
    %v571 = vpop.f32.mrf.mxu0
    %v572 = vadd.f32 %v161, %v571
    %v573 = vpop.f32.mrf.mxu0
    %574 = vdwg.mxu0
    %575 = vrot.lane.b32.xlu0 %v132, 120
    %v576 = vpop.permute.xlu0 %575
    %577 = vrot.lane.b32.xlu0 %v132, 88
    %v578 = vpop.permute.xlu0 %577
    %v579 = vsel %vm171, %v576, 0
    %v581 = vsel %vm171, %v578, 0
    %583 = vmatprep.subr.mxu0 0.0
    %584 = vmatpush1.xpose.msra.mxu0 0.0
    %585 = vmatprep.subr.mxu0 0.0
    %586 = vmatpush1.xpose.msra.mxu0 0.0
    %587 = vmatprep.subr.mxu0 0.0
    %588 = vmatpush1.xpose.msra.mxu0 0.0
    %589 = vmatprep.subr.mxu0 0.0
    %590 = vmatpush1.xpose.msra.mxu0 0.0
    %591 = vmatprep.subr.mxu0 0.0
    %592 = vmatpush1.xpose.msra.mxu0 0.0
    %593 = vmatprep.subr.mxu0 0.0
    %594 = vmatpush1.xpose.msra.mxu0 0.0
    %595 = vmatprep.subr.mxu0 0.0
    %596 = vmatpush1.xpose.msra.mxu0 0.0
    %597 = vmatprep.subr.mxu0 0.0
    %598 = vmatpush1.xpose.msra.mxu0 0.0
    %599 = vmatprep.subr.mxu0 0.0
    %600 = vmatpush1.xpose.msra.mxu0 0.0
    %601 = vmatprep.subr.mxu0 0.0
    %602 = vmatpush1.xpose.msra.mxu0 0.0
    %603 = vmatprep.subr.mxu0 0.0
    %604 = vmatpush1.xpose.msra.mxu0 0.0
    %605 = vmatprep.subr.mxu0 0.0
    %606 = vmatpush1.xpose.msra.mxu0 0.0
    %607 = vmatprep.subr.mxu0 0.0
    %608 = vmatpush1.xpose.msra.mxu0 0.0
    %609 = vmatprep.subr.mxu0 0.0
    %610 = vmatpush1.xpose.msra.mxu0 0.0
    %611 = vmatprep.subr.mxu0 0.0
    %612 = vmatpush1.xpose.msra.mxu0 0.0
    %613 = vmatprep.subr.mxu0 0.0
    %614 = vmatpush1.xpose.msra.mxu0 %v581
    %615 = vmatprep.subr.mxu0 0.0
    %616 = vmatpush2.xpose.msra.mxu0 0.0
    %617 = vmatprep.subr.mxu0 0.0
    %618 = vmatpush2.xpose.msra.mxu0 0.0
    %619 = vmatprep.subr.mxu0 0.0
    %620 = vmatpush2.xpose.msra.mxu0 0.0
    %621 = vmatprep.subr.mxu0 0.0
    %622 = vmatpush2.xpose.msra.mxu0 0.0
    %623 = vmatprep.subr.mxu0 0.0
    %624 = vmatpush2.xpose.msra.mxu0 0.0
    %625 = vmatprep.subr.mxu0 0.0
    %626 = vmatpush2.xpose.msra.mxu0 0.0
    %627 = vmatprep.subr.mxu0 0.0
    %628 = vmatpush2.xpose.msra.mxu0 0.0
    %629 = vmatprep.subr.mxu0 0.0
    %630 = vmatpush2.xpose.msra.mxu0 0.0
    %631 = vmatprep.subr.mxu0 0.0
    %632 = vmatpush2.xpose.msra.mxu0 0.0
    %633 = vmatprep.subr.mxu0 0.0
    %634 = vmatpush2.xpose.msra.mxu0 0.0
    %635 = vmatprep.subr.mxu0 0.0
    %636 = vmatpush2.xpose.msra.mxu0 0.0
    %637 = vmatprep.subr.mxu0 0.0
    %638 = vmatpush2.xpose.msra.mxu0 0.0
    %639 = vmatprep.subr.mxu0 0.0
    %640 = vmatpush2.xpose.msra.mxu0 0.0
    %641 = vmatprep.subr.mxu0 0.0
    %642 = vmatpush2.xpose.msra.mxu0 0.0
    %643 = vmatprep.subr.mxu0 0.0
    %644 = vmatpush2.xpose.msra.mxu0 0.0
    %645 = vmatprep.subr.mxu0 0.0
    %646 = vmatpush2.xpose.msra.mxu0 0.0
    %647 = vmatprep.mubr.f32.mxu0 0.0
    %648 = vmatmul.mubr.f32.gmra.mxu0 %v579
    %v649 = vpop.f32.mrf.mxu0
    %v650 = vadd.f32 %v165, %v649
    %v651 = vpop.f32.mrf.mxu0
    %652 = vdwg.mxu0
    %v653 = vsel %vm171, %v572, -inf
    %654 = vmax.xlane.f32.xlu0 %v653
    %v655 = vpop.xlane.xlu0 %654
    %v656 = vsel %vm171, %v650, -inf
    %657 = vmax.xlane.f32.xlu0 %v656
    %v658 = vpop.xlane.xlu0 %657
    %v659 = vsub.f32 %v572, %v655
    %v660 = vsub.f32 %v650, %v658
    %v661 = vmul.f32 %v659, 1.442695
    %v662 = vpow.pop %v661
    %v663 = vmul.f32 %v660, 1.442695
    %v664 = vpow.pop %v663
    %v665 = vsel %vm171, %v662, 0.0
    %666 = vadd.xlane.f32.xlu0 %v665
    %v667 = vpop.xlane.xlu0 %666
    %v668 = vsel %vm171, %v664, 0.0
    %669 = vadd.xlane.f32.xlu0 %v668
    %v670 = vpop.xlane.xlu0 %669
    %v671 = vrcp.pop %v667
    %v672 = vrcp.pop %v670
    %v673 = vmul.f32 %v662, %v671
    %v674 = vmul.f32 %v664, %v672
    %675 = vrot.lane.b32.xlu0 %v127, 56
    %v676 = vpop.permute.xlu0 %675
    %v679 = vsel %vm171, %v673, 0
    %681 = vmatprep.subr.mxu0 0.0
    %682 = vmatpush1.msra.mxu0 0.0
    %683 = vmatprep.subr.mxu0 0.0
    %684 = vmatpush1.msra.mxu0 0.0
    %685 = vmatprep.subr.mxu0 0.0
    %686 = vmatpush1.msra.mxu0 0.0
    %687 = vmatprep.subr.mxu0 0.0
    %688 = vmatpush1.msra.mxu0 0.0
    %689 = vmatprep.subr.mxu0 0.0
    %690 = vmatpush1.msra.mxu0 0.0
    %691 = vmatprep.subr.mxu0 0.0
    %692 = vmatpush1.msra.mxu0 0.0
    %693 = vmatprep.subr.mxu0 0.0
    %694 = vmatpush1.msra.mxu0 0.0
    %695 = vmatprep.subr.mxu0 0.0
    %696 = vmatpush1.msra.mxu0 0.0
    %697 = vmatprep.subr.mxu0 0.0
    %698 = vmatpush1.msra.mxu0 0.0
    %699 = vmatprep.subr.mxu0 0.0
    %700 = vmatpush1.msra.mxu0 0.0
    %701 = vmatprep.subr.mxu0 0.0
    %702 = vmatpush1.msra.mxu0 0.0
    %703 = vmatprep.subr.mxu0 0.0
    %704 = vmatpush1.msra.mxu0 0.0
    %705 = vmatprep.subr.mxu0 0.0
    %706 = vmatpush1.msra.mxu0 0.0
    %707 = vmatprep.subr.mxu0 0.0
    %708 = vmatpush1.msra.mxu0 0.0
    %709 = vmatprep.subr.mxu0 0.0
    %710 = vmatpush1.msra.mxu0 0.0
    %711 = vmatprep.subr.mxu0 0.0
    %712 = vmatpush1.msra.mxu0 %v676
    %713 = vmatprep.subr.mxu0 0.0
    %714 = vmatpush2.msra.mxu0 0.0
    %715 = vmatprep.subr.mxu0 0.0
    %716 = vmatpush2.msra.mxu0 0.0
    %717 = vmatprep.subr.mxu0 0.0
    %718 = vmatpush2.msra.mxu0 0.0
    %719 = vmatprep.subr.mxu0 0.0
    %720 = vmatpush2.msra.mxu0 0.0
    %721 = vmatprep.subr.mxu0 0.0
    %722 = vmatpush2.msra.mxu0 0.0
    %723 = vmatprep.subr.mxu0 0.0
    %724 = vmatpush2.msra.mxu0 0.0
    %725 = vmatprep.subr.mxu0 0.0
    %726 = vmatpush2.msra.mxu0 0.0
    %727 = vmatprep.subr.mxu0 0.0
    %728 = vmatpush2.msra.mxu0 0.0
    %729 = vmatprep.subr.mxu0 0.0
    %730 = vmatpush2.msra.mxu0 0.0
    %731 = vmatprep.subr.mxu0 0.0
    %732 = vmatpush2.msra.mxu0 0.0
    %733 = vmatprep.subr.mxu0 0.0
    %734 = vmatpush2.msra.mxu0 0.0
    %735 = vmatprep.subr.mxu0 0.0
    %736 = vmatpush2.msra.mxu0 0.0
    %737 = vmatprep.subr.mxu0 0.0
    %738 = vmatpush2.msra.mxu0 0.0
    %739 = vmatprep.subr.mxu0 0.0
    %740 = vmatpush2.msra.mxu0 0.0
    %741 = vmatprep.subr.mxu0 0.0
    %742 = vmatpush2.msra.mxu0 0.0
    %743 = vmatprep.subr.mxu0 0.0
    %744 = vmatpush2.msra.mxu0 0.0
    %745 = vmatprep.mubr.f32.mxu0 0.0
    %746 = vmatmul.mubr.f32.gmra.mxu0 %v679
    %v747 = vpop.f32.mrf.mxu0
    %v748 = vadd.f32 0.0, %v747
    %v749 = vpop.f32.mrf.mxu0
    %750 = vdwg.mxu0
    %751 = vrot.lane.b32.xlu0 %v132, 56
    %v752 = vpop.permute.xlu0 %751
    %v755 = vsel %vm171, %v674, 0
    %757 = vmatprep.subr.mxu0 0.0
    %758 = vmatpush1.msra.mxu0 0.0
    %759 = vmatprep.subr.mxu0 0.0
    %760 = vmatpush1.msra.mxu0 0.0
    %761 = vmatprep.subr.mxu0 0.0
    %762 = vmatpush1.msra.mxu0 0.0
    %763 = vmatprep.subr.mxu0 0.0
    %764 = vmatpush1.msra.mxu0 0.0
    %765 = vmatprep.subr.mxu0 0.0
    %766 = vmatpush1.msra.mxu0 0.0
    %767 = vmatprep.subr.mxu0 0.0
    %768 = vmatpush1.msra.mxu0 0.0
    %769 = vmatprep.subr.mxu0 0.0
    %770 = vmatpush1.msra.mxu0 0.0
    %771 = vmatprep.subr.mxu0 0.0
    %772 = vmatpush1.msra.mxu0 0.0
    %773 = vmatprep.subr.mxu0 0.0
    %774 = vmatpush1.msra.mxu0 0.0
    %775 = vmatprep.subr.mxu0 0.0
    %776 = vmatpush1.msra.mxu0 0.0
    %777 = vmatprep.subr.mxu0 0.0
    %778 = vmatpush1.msra.mxu0 0.0
    %779 = vmatprep.subr.mxu0 0.0
    %780 = vmatpush1.msra.mxu0 0.0
    %781 = vmatprep.subr.mxu0 0.0
    %782 = vmatpush1.msra.mxu0 0.0
    %783 = vmatprep.subr.mxu0 0.0
    %784 = vmatpush1.msra.mxu0 0.0
    %785 = vmatprep.subr.mxu0 0.0
    %786 = vmatpush1.msra.mxu0 0.0
    %787 = vmatprep.subr.mxu0 0.0
    %788 = vmatpush1.msra.mxu0 %v752
    %789 = vmatprep.subr.mxu0 0.0
    %790 = vmatpush2.msra.mxu0 0.0
    %791 = vmatprep.subr.mxu0 0.0
    %792 = vmatpush2.msra.mxu0 0.0
    %793 = vmatprep.subr.mxu0 0.0
    %794 = vmatpush2.msra.mxu0 0.0
    %795 = vmatprep.subr.mxu0 0.0
    %796 = vmatpush2.msra.mxu0 0.0
    %797 = vmatprep.subr.mxu0 0.0
    %798 = vmatpush2.msra.mxu0 0.0
    %799 = vmatprep.subr.mxu0 0.0
    %800 = vmatpush2.msra.mxu0 0.0
    %801 = vmatprep.subr.mxu0 0.0
    %802 = vmatpush2.msra.mxu0 0.0
    %803 = vmatprep.subr.mxu0 0.0
    %804 = vmatpush2.msra.mxu0 0.0
    %805 = vmatprep.subr.mxu0 0.0
    %806 = vmatpush2.msra.mxu0 0.0
    %807 = vmatprep.subr.mxu0 0.0
    %808 = vmatpush2.msra.mxu0 0.0
    %809 = vmatprep.subr.mxu0 0.0
    %810 = vmatpush2.msra.mxu0 0.0
    %811 = vmatprep.subr.mxu0 0.0
    %812 = vmatpush2.msra.mxu0 0.0
    %813 = vmatprep.subr.mxu0 0.0
    %814 = vmatpush2.msra.mxu0 0.0
    %815 = vmatprep.subr.mxu0 0.0
    %816 = vmatpush2.msra.mxu0 0.0
    %817 = vmatprep.subr.mxu0 0.0
    %818 = vmatpush2.msra.mxu0 0.0
    %819 = vmatprep.subr.mxu0 0.0
    %820 = vmatpush2.msra.mxu0 0.0
    %821 = vmatprep.mubr.f32.mxu0 0.0
    %822 = vmatmul.mubr.f32.gmra.mxu0 %v755
    %v823 = vpop.f32.mrf.mxu0
    %v824 = vadd.f32 0.0, %v823
    %v825 = vpop.f32.mrf.mxu0
    %826 = vdwg.mxu0
    %827 = vrot.lane.b32.xlu0 %v127, 112
    %v828 = vpop.permute.xlu0 %827
    %829 = vrot.lane.b32.xlu0 %v127, 80
    %v830 = vpop.permute.xlu0 %829
    %v831 = vsel %vm171, %v828, 0
    %v833 = vsel %vm171, %v830, 0
    %835 = vmatprep.subr.mxu0 0.0
    %836 = vmatpush1.xpose.msra.mxu0 0.0
    %837 = vmatprep.subr.mxu0 0.0
    %838 = vmatpush1.xpose.msra.mxu0 0.0
    %839 = vmatprep.subr.mxu0 0.0
    %840 = vmatpush1.xpose.msra.mxu0 0.0
    %841 = vmatprep.subr.mxu0 0.0
    %842 = vmatpush1.xpose.msra.mxu0 0.0
    %843 = vmatprep.subr.mxu0 0.0
    %844 = vmatpush1.xpose.msra.mxu0 0.0
    %845 = vmatprep.subr.mxu0 0.0
    %846 = vmatpush1.xpose.msra.mxu0 0.0
    %847 = vmatprep.subr.mxu0 0.0
    %848 = vmatpush1.xpose.msra.mxu0 0.0
    %849 = vmatprep.subr.mxu0 0.0
    %850 = vmatpush1.xpose.msra.mxu0 0.0
    %851 = vmatprep.subr.mxu0 0.0
    %852 = vmatpush1.xpose.msra.mxu0 0.0
    %853 = vmatprep.subr.mxu0 0.0
    %854 = vmatpush1.xpose.msra.mxu0 0.0
    %855 = vmatprep.subr.mxu0 0.0
    %856 = vmatpush1.xpose.msra.mxu0 0.0
    %857 = vmatprep.subr.mxu0 0.0
    %858 = vmatpush1.xpose.msra.mxu0 0.0
    %859 = vmatprep.subr.mxu0 0.0
    %860 = vmatpush1.xpose.msra.mxu0 0.0
    %861 = vmatprep.subr.mxu0 0.0
    %862 = vmatpush1.xpose.msra.mxu0 0.0
    %863 = vmatprep.subr.mxu0 0.0
    %864 = vmatpush1.xpose.msra.mxu0 0.0
    %865 = vmatprep.subr.mxu0 0.0
    %866 = vmatpush1.xpose.msra.mxu0 %v833
    %867 = vmatprep.subr.mxu0 0.0
    %868 = vmatpush2.xpose.msra.mxu0 0.0
    %869 = vmatprep.subr.mxu0 0.0
    %870 = vmatpush2.xpose.msra.mxu0 0.0
    %871 = vmatprep.subr.mxu0 0.0
    %872 = vmatpush2.xpose.msra.mxu0 0.0
    %873 = vmatprep.subr.mxu0 0.0
    %874 = vmatpush2.xpose.msra.mxu0 0.0
    %875 = vmatprep.subr.mxu0 0.0
    %876 = vmatpush2.xpose.msra.mxu0 0.0
    %877 = vmatprep.subr.mxu0 0.0
    %878 = vmatpush2.xpose.msra.mxu0 0.0
    %879 = vmatprep.subr.mxu0 0.0
    %880 = vmatpush2.xpose.msra.mxu0 0.0
    %881 = vmatprep.subr.mxu0 0.0
    %882 = vmatpush2.xpose.msra.mxu0 0.0
    %883 = vmatprep.subr.mxu0 0.0
    %884 = vmatpush2.xpose.msra.mxu0 0.0
    %885 = vmatprep.subr.mxu0 0.0
    %886 = vmatpush2.xpose.msra.mxu0 0.0
    %887 = vmatprep.subr.mxu0 0.0
    %888 = vmatpush2.xpose.msra.mxu0 0.0
    %889 = vmatprep.subr.mxu0 0.0
    %890 = vmatpush2.xpose.msra.mxu0 0.0
    %891 = vmatprep.subr.mxu0 0.0
    %892 = vmatpush2.xpose.msra.mxu0 0.0
    %893 = vmatprep.subr.mxu0 0.0
    %894 = vmatpush2.xpose.msra.mxu0 0.0
    %895 = vmatprep.subr.mxu0 0.0
    %896 = vmatpush2.xpose.msra.mxu0 0.0
    %897 = vmatprep.subr.mxu0 0.0
    %898 = vmatpush2.xpose.msra.mxu0 0.0
    %899 = vmatprep.mubr.f32.mxu0 0.0
    %900 = vmatmul.mubr.f32.gmra.mxu0 %v831
    %v901 = vpop.f32.mrf.mxu0
    %v902 = vadd.f32 %v161, %v901
    %v903 = vpop.f32.mrf.mxu0
    %904 = vdwg.mxu0
    %905 = vrot.lane.b32.xlu0 %v132, 112
    %v906 = vpop.permute.xlu0 %905
    %907 = vrot.lane.b32.xlu0 %v132, 80
    %v908 = vpop.permute.xlu0 %907
    %v909 = vsel %vm171, %v906, 0
    %v911 = vsel %vm171, %v908, 0
    %913 = vmatprep.subr.mxu0 0.0
    %914 = vmatpush1.xpose.msra.mxu0 0.0
    %915 = vmatprep.subr.mxu0 0.0
    %916 = vmatpush1.xpose.msra.mxu0 0.0
    %917 = vmatprep.subr.mxu0 0.0
    %918 = vmatpush1.xpose.msra.mxu0 0.0
    %919 = vmatprep.subr.mxu0 0.0
    %920 = vmatpush1.xpose.msra.mxu0 0.0
    %921 = vmatprep.subr.mxu0 0.0
    %922 = vmatpush1.xpose.msra.mxu0 0.0
    %923 = vmatprep.subr.mxu0 0.0
    %924 = vmatpush1.xpose.msra.mxu0 0.0
    %925 = vmatprep.subr.mxu0 0.0
    %926 = vmatpush1.xpose.msra.mxu0 0.0
    %927 = vmatprep.subr.mxu0 0.0
    %928 = vmatpush1.xpose.msra.mxu0 0.0
    %929 = vmatprep.subr.mxu0 0.0
    %930 = vmatpush1.xpose.msra.mxu0 0.0
    %931 = vmatprep.subr.mxu0 0.0
    %932 = vmatpush1.xpose.msra.mxu0 0.0
    %933 = vmatprep.subr.mxu0 0.0
    %934 = vmatpush1.xpose.msra.mxu0 0.0
    %935 = vmatprep.subr.mxu0 0.0
    %936 = vmatpush1.xpose.msra.mxu0 0.0
    %937 = vmatprep.subr.mxu0 0.0
    %938 = vmatpush1.xpose.msra.mxu0 0.0
    %939 = vmatprep.subr.mxu0 0.0
    %940 = vmatpush1.xpose.msra.mxu0 0.0
    %941 = vmatprep.subr.mxu0 0.0
    %942 = vmatpush1.xpose.msra.mxu0 0.0
    %943 = vmatprep.subr.mxu0 0.0
    %944 = vmatpush1.xpose.msra.mxu0 %v911
    %945 = vmatprep.subr.mxu0 0.0
    %946 = vmatpush2.xpose.msra.mxu0 0.0
    %947 = vmatprep.subr.mxu0 0.0
    %948 = vmatpush2.xpose.msra.mxu0 0.0
    %949 = vmatprep.subr.mxu0 0.0
    %950 = vmatpush2.xpose.msra.mxu0 0.0
    %951 = vmatprep.subr.mxu0 0.0
    %952 = vmatpush2.xpose.msra.mxu0 0.0
    %953 = vmatprep.subr.mxu0 0.0
    %954 = vmatpush2.xpose.msra.mxu0 0.0
    %955 = vmatprep.subr.mxu0 0.0
    %956 = vmatpush2.xpose.msra.mxu0 0.0
    %957 = vmatprep.subr.mxu0 0.0
    %958 = vmatpush2.xpose.msra.mxu0 0.0
    %959 = vmatprep.subr.mxu0 0.0
    %960 = vmatpush2.xpose.msra.mxu0 0.0
    %961 = vmatprep.subr.mxu0 0.0
    %962 = vmatpush2.xpose.msra.mxu0 0.0
    %963 = vmatprep.subr.mxu0 0.0
    %964 = vmatpush2.xpose.msra.mxu0 0.0
    %965 = vmatprep.subr.mxu0 0.0
    %966 = vmatpush2.xpose.msra.mxu0 0.0
    %967 = vmatprep.subr.mxu0 0.0
    %968 = vmatpush2.xpose.msra.mxu0 0.0
    %969 = vmatprep.subr.mxu0 0.0
    %970 = vmatpush2.xpose.msra.mxu0 0.0
    %971 = vmatprep.subr.mxu0 0.0
    %972 = vmatpush2.xpose.msra.mxu0 0.0
    %973 = vmatprep.subr.mxu0 0.0
    %974 = vmatpush2.xpose.msra.mxu0 0.0
    %975 = vmatprep.subr.mxu0 0.0
    %976 = vmatpush2.xpose.msra.mxu0 0.0
    %977 = vmatprep.mubr.f32.mxu0 0.0
    %978 = vmatmul.mubr.f32.gmra.mxu0 %v909
    %v979 = vpop.f32.mrf.mxu0
    %v980 = vadd.f32 %v165, %v979
    %v981 = vpop.f32.mrf.mxu0
    %982 = vdwg.mxu0
    %v983 = vsel %vm171, %v902, -inf
    %984 = vmax.xlane.f32.xlu0 %v983
    %v985 = vpop.xlane.xlu0 %984
    %v986 = vsel %vm171, %v980, -inf
    %987 = vmax.xlane.f32.xlu0 %v986
    %v988 = vpop.xlane.xlu0 %987
    %v989 = vsub.f32 %v902, %v985
    %v990 = vsub.f32 %v980, %v988
    %v991 = vmul.f32 %v989, 1.442695
    %v992 = vpow.pop %v991
    %v993 = vmul.f32 %v990, 1.442695
    %v994 = vpow.pop %v993
    %v995 = vsel %vm171, %v992, 0.0
    %996 = vadd.xlane.f32.xlu0 %v995
    %v997 = vpop.xlane.xlu0 %996
    %v998 = vsel %vm171, %v994, 0.0
    %999 = vadd.xlane.f32.xlu0 %v998
    %v1000 = vpop.xlane.xlu0 %999
    %v1001 = vrcp.pop %v997
    %v1002 = vrcp.pop %v1000
    %v1003 = vmul.f32 %v992, %v1001
    %v1004 = vmul.f32 %v994, %v1002
    %1005 = vrot.lane.b32.xlu0 %v127, 48
    %v1006 = vpop.permute.xlu0 %1005
    %v1009 = vsel %vm171, %v1003, 0
    %1011 = vmatprep.subr.mxu0 0.0
    %1012 = vmatpush1.msra.mxu0 0.0
    %1013 = vmatprep.subr.mxu0 0.0
    %1014 = vmatpush1.msra.mxu0 0.0
    %1015 = vmatprep.subr.mxu0 0.0
    %1016 = vmatpush1.msra.mxu0 0.0
    %1017 = vmatprep.subr.mxu0 0.0
    %1018 = vmatpush1.msra.mxu0 0.0
    %1019 = vmatprep.subr.mxu0 0.0
    %1020 = vmatpush1.msra.mxu0 0.0
    %1021 = vmatprep.subr.mxu0 0.0
    %1022 = vmatpush1.msra.mxu0 0.0
    %1023 = vmatprep.subr.mxu0 0.0
    %1024 = vmatpush1.msra.mxu0 0.0
    %1025 = vmatprep.subr.mxu0 0.0
    %1026 = vmatpush1.msra.mxu0 0.0
    %1027 = vmatprep.subr.mxu0 0.0
    %1028 = vmatpush1.msra.mxu0 0.0
    %1029 = vmatprep.subr.mxu0 0.0
    %1030 = vmatpush1.msra.mxu0 0.0
    %1031 = vmatprep.subr.mxu0 0.0
    %1032 = vmatpush1.msra.mxu0 0.0
    %1033 = vmatprep.subr.mxu0 0.0
    %1034 = vmatpush1.msra.mxu0 0.0
    %1035 = vmatprep.subr.mxu0 0.0
    %1036 = vmatpush1.msra.mxu0 0.0
    %1037 = vmatprep.subr.mxu0 0.0
    %1038 = vmatpush1.msra.mxu0 0.0
    %1039 = vmatprep.subr.mxu0 0.0
    %1040 = vmatpush1.msra.mxu0 0.0
    %1041 = vmatprep.subr.mxu0 0.0
    %1042 = vmatpush1.msra.mxu0 %v1006
    %1043 = vmatprep.subr.mxu0 0.0
    %1044 = vmatpush2.msra.mxu0 0.0
    %1045 = vmatprep.subr.mxu0 0.0
    %1046 = vmatpush2.msra.mxu0 0.0
    %1047 = vmatprep.subr.mxu0 0.0
    %1048 = vmatpush2.msra.mxu0 0.0
    %1049 = vmatprep.subr.mxu0 0.0
    %1050 = vmatpush2.msra.mxu0 0.0
    %1051 = vmatprep.subr.mxu0 0.0
    %1052 = vmatpush2.msra.mxu0 0.0
    %1053 = vmatprep.subr.mxu0 0.0
    %1054 = vmatpush2.msra.mxu0 0.0
    %1055 = vmatprep.subr.mxu0 0.0
    %1056 = vmatpush2.msra.mxu0 0.0
    %1057 = vmatprep.subr.mxu0 0.0
    %1058 = vmatpush2.msra.mxu0 0.0
    %1059 = vmatprep.subr.mxu0 0.0
    %1060 = vmatpush2.msra.mxu0 0.0
    %1061 = vmatprep.subr.mxu0 0.0
    %1062 = vmatpush2.msra.mxu0 0.0
    %1063 = vmatprep.subr.mxu0 0.0
    %1064 = vmatpush2.msra.mxu0 0.0
    %1065 = vmatprep.subr.mxu0 0.0
    %1066 = vmatpush2.msra.mxu0 0.0
    %1067 = vmatprep.subr.mxu0 0.0
    %1068 = vmatpush2.msra.mxu0 0.0
    %1069 = vmatprep.subr.mxu0 0.0
    %1070 = vmatpush2.msra.mxu0 0.0
    %1071 = vmatprep.subr.mxu0 0.0
    %1072 = vmatpush2.msra.mxu0 0.0
    %1073 = vmatprep.subr.mxu0 0.0
    %1074 = vmatpush2.msra.mxu0 0.0
    %1075 = vmatprep.mubr.f32.mxu0 0.0
    %1076 = vmatmul.mubr.f32.gmra.mxu0 %v1009
    %v1077 = vpop.f32.mrf.mxu0
    %v1078 = vadd.f32 0.0, %v1077
    %v1079 = vpop.f32.mrf.mxu0
    %1080 = vdwg.mxu0
    %1081 = vrot.lane.b32.xlu0 %v132, 48
    %v1082 = vpop.permute.xlu0 %1081
    %v1085 = vsel %vm171, %v1004, 0
    %1087 = vmatprep.subr.mxu0 0.0
    %1088 = vmatpush1.msra.mxu0 0.0
    %1089 = vmatprep.subr.mxu0 0.0
    %1090 = vmatpush1.msra.mxu0 0.0
    %1091 = vmatprep.subr.mxu0 0.0
    %1092 = vmatpush1.msra.mxu0 0.0
    %1093 = vmatprep.subr.mxu0 0.0
    %1094 = vmatpush1.msra.mxu0 0.0
    %1095 = vmatprep.subr.mxu0 0.0
    %1096 = vmatpush1.msra.mxu0 0.0
    %1097 = vmatprep.subr.mxu0 0.0
    %1098 = vmatpush1.msra.mxu0 0.0
    %1099 = vmatprep.subr.mxu0 0.0
    %1100 = vmatpush1.msra.mxu0 0.0
    %1101 = vmatprep.subr.mxu0 0.0
    %1102 = vmatpush1.msra.mxu0 0.0
    %1103 = vmatprep.subr.mxu0 0.0
    %1104 = vmatpush1.msra.mxu0 0.0
    %1105 = vmatprep.subr.mxu0 0.0
    %1106 = vmatpush1.msra.mxu0 0.0
    %1107 = vmatprep.subr.mxu0 0.0
    %1108 = vmatpush1.msra.mxu0 0.0
    %1109 = vmatprep.subr.mxu0 0.0
    %1110 = vmatpush1.msra.mxu0 0.0
    %1111 = vmatprep.subr.mxu0 0.0
    %1112 = vmatpush1.msra.mxu0 0.0
    %1113 = vmatprep.subr.mxu0 0.0
    %1114 = vmatpush1.msra.mxu0 0.0
    %1115 = vmatprep.subr.mxu0 0.0
    %1116 = vmatpush1.msra.mxu0 0.0
    %1117 = vmatprep.subr.mxu0 0.0
    %1118 = vmatpush1.msra.mxu0 %v1082
    %1119 = vmatprep.subr.mxu0 0.0
    %1120 = vmatpush2.msra.mxu0 0.0
    %1121 = vmatprep.subr.mxu0 0.0
    %1122 = vmatpush2.msra.mxu0 0.0
    %1123 = vmatprep.subr.mxu0 0.0
    %1124 = vmatpush2.msra.mxu0 0.0
    %1125 = vmatprep.subr.mxu0 0.0
    %1126 = vmatpush2.msra.mxu0 0.0
    %1127 = vmatprep.subr.mxu0 0.0
    %1128 = vmatpush2.msra.mxu0 0.0
    %1129 = vmatprep.subr.mxu0 0.0
    %1130 = vmatpush2.msra.mxu0 0.0
    %1131 = vmatprep.subr.mxu0 0.0
    %1132 = vmatpush2.msra.mxu0 0.0
    %1133 = vmatprep.subr.mxu0 0.0
    %1134 = vmatpush2.msra.mxu0 0.0
    %1135 = vmatprep.subr.mxu0 0.0
    %1136 = vmatpush2.msra.mxu0 0.0
    %1137 = vmatprep.subr.mxu0 0.0
    %1138 = vmatpush2.msra.mxu0 0.0
    %1139 = vmatprep.subr.mxu0 0.0
    %1140 = vmatpush2.msra.mxu0 0.0
    %1141 = vmatprep.subr.mxu0 0.0
    %1142 = vmatpush2.msra.mxu0 0.0
    %1143 = vmatprep.subr.mxu0 0.0
    %1144 = vmatpush2.msra.mxu0 0.0
    %1145 = vmatprep.subr.mxu0 0.0
    %1146 = vmatpush2.msra.mxu0 0.0
    %1147 = vmatprep.subr.mxu0 0.0
    %1148 = vmatpush2.msra.mxu0 0.0
    %1149 = vmatprep.subr.mxu0 0.0
    %1150 = vmatpush2.msra.mxu0 0.0
    %1151 = vmatprep.mubr.f32.mxu0 0.0
    %1152 = vmatmul.mubr.f32.gmra.mxu0 %v1085
    %v1153 = vpop.f32.mrf.mxu0
    %v1154 = vadd.f32 0.0, %v1153
    %v1155 = vpop.f32.mrf.mxu0
    %1156 = vdwg.mxu0
    %1157 = vrot.lane.b32.xlu0 %v127, 104
    %v1158 = vpop.permute.xlu0 %1157
    %1159 = vrot.lane.b32.xlu0 %v127, 72
    %v1160 = vpop.permute.xlu0 %1159
    %v1161 = vsel %vm171, %v1158, 0
    %v1163 = vsel %vm171, %v1160, 0
    %1165 = vmatprep.subr.mxu0 0.0
    %1166 = vmatpush1.xpose.msra.mxu0 0.0
    %1167 = vmatprep.subr.mxu0 0.0
    %1168 = vmatpush1.xpose.msra.mxu0 0.0
    %1169 = vmatprep.subr.mxu0 0.0
    %1170 = vmatpush1.xpose.msra.mxu0 0.0
    %1171 = vmatprep.subr.mxu0 0.0
    %1172 = vmatpush1.xpose.msra.mxu0 0.0
    %1173 = vmatprep.subr.mxu0 0.0
    %1174 = vmatpush1.xpose.msra.mxu0 0.0
    %1175 = vmatprep.subr.mxu0 0.0
    %1176 = vmatpush1.xpose.msra.mxu0 0.0
    %1177 = vmatprep.subr.mxu0 0.0
    %1178 = vmatpush1.xpose.msra.mxu0 0.0
    %1179 = vmatprep.subr.mxu0 0.0
    %1180 = vmatpush1.xpose.msra.mxu0 0.0
    %1181 = vmatprep.subr.mxu0 0.0
    %1182 = vmatpush1.xpose.msra.mxu0 0.0
    %1183 = vmatprep.subr.mxu0 0.0
    %1184 = vmatpush1.xpose.msra.mxu0 0.0
    %1185 = vmatprep.subr.mxu0 0.0
    %1186 = vmatpush1.xpose.msra.mxu0 0.0
    %1187 = vmatprep.subr.mxu0 0.0
    %1188 = vmatpush1.xpose.msra.mxu0 0.0
    %1189 = vmatprep.subr.mxu0 0.0
    %1190 = vmatpush1.xpose.msra.mxu0 0.0
    %1191 = vmatprep.subr.mxu0 0.0
    %1192 = vmatpush1.xpose.msra.mxu0 0.0
    %1193 = vmatprep.subr.mxu0 0.0
    %1194 = vmatpush1.xpose.msra.mxu0 0.0
    %1195 = vmatprep.subr.mxu0 0.0
    %1196 = vmatpush1.xpose.msra.mxu0 %v1163
    %1197 = vmatprep.subr.mxu0 0.0
    %1198 = vmatpush2.xpose.msra.mxu0 0.0
    %1199 = vmatprep.subr.mxu0 0.0
    %1200 = vmatpush2.xpose.msra.mxu0 0.0
    %1201 = vmatprep.subr.mxu0 0.0
    %1202 = vmatpush2.xpose.msra.mxu0 0.0
    %1203 = vmatprep.subr.mxu0 0.0
    %1204 = vmatpush2.xpose.msra.mxu0 0.0
    %1205 = vmatprep.subr.mxu0 0.0
    %1206 = vmatpush2.xpose.msra.mxu0 0.0
    %1207 = vmatprep.subr.mxu0 0.0
    %1208 = vmatpush2.xpose.msra.mxu0 0.0
    %1209 = vmatprep.subr.mxu0 0.0
    %1210 = vmatpush2.xpose.msra.mxu0 0.0
    %1211 = vmatprep.subr.mxu0 0.0
    %1212 = vmatpush2.xpose.msra.mxu0 0.0
    %1213 = vmatprep.subr.mxu0 0.0
    %1214 = vmatpush2.xpose.msra.mxu0 0.0
    %1215 = vmatprep.subr.mxu0 0.0
    %1216 = vmatpush2.xpose.msra.mxu0 0.0
    %1217 = vmatprep.subr.mxu0 0.0
    %1218 = vmatpush2.xpose.msra.mxu0 0.0
    %1219 = vmatprep.subr.mxu0 0.0
    %1220 = vmatpush2.xpose.msra.mxu0 0.0
    %1221 = vmatprep.subr.mxu0 0.0
    %1222 = vmatpush2.xpose.msra.mxu0 0.0
    %1223 = vmatprep.subr.mxu0 0.0
    %1224 = vmatpush2.xpose.msra.mxu0 0.0
    %1225 = vmatprep.subr.mxu0 0.0
    %1226 = vmatpush2.xpose.msra.mxu0 0.0
    %1227 = vmatprep.subr.mxu0 0.0
    %1228 = vmatpush2.xpose.msra.mxu0 0.0
    %1229 = vmatprep.mubr.f32.mxu0 0.0
    %1230 = vmatmul.mubr.f32.gmra.mxu0 %v1161
    %v1231 = vpop.f32.mrf.mxu0
    %v1232 = vadd.f32 %v161, %v1231
    %v1233 = vpop.f32.mrf.mxu0
    %1234 = vdwg.mxu0
    %1235 = vrot.lane.b32.xlu0 %v132, 104
    %v1236 = vpop.permute.xlu0 %1235
    %1237 = vrot.lane.b32.xlu0 %v132, 72
    %v1238 = vpop.permute.xlu0 %1237
    %v1239 = vsel %vm171, %v1236, 0
    %v1241 = vsel %vm171, %v1238, 0
    %1243 = vmatprep.subr.mxu0 0.0
    %1244 = vmatpush1.xpose.msra.mxu0 0.0
    %1245 = vmatprep.subr.mxu0 0.0
    %1246 = vmatpush1.xpose.msra.mxu0 0.0
    %1247 = vmatprep.subr.mxu0 0.0
    %1248 = vmatpush1.xpose.msra.mxu0 0.0
    %1249 = vmatprep.subr.mxu0 0.0
    %1250 = vmatpush1.xpose.msra.mxu0 0.0
    %1251 = vmatprep.subr.mxu0 0.0
    %1252 = vmatpush1.xpose.msra.mxu0 0.0
    %1253 = vmatprep.subr.mxu0 0.0
    %1254 = vmatpush1.xpose.msra.mxu0 0.0
    %1255 = vmatprep.subr.mxu0 0.0
    %1256 = vmatpush1.xpose.msra.mxu0 0.0
    %1257 = vmatprep.subr.mxu0 0.0
    %1258 = vmatpush1.xpose.msra.mxu0 0.0
    %1259 = vmatprep.subr.mxu0 0.0
    %1260 = vmatpush1.xpose.msra.mxu0 0.0
    %1261 = vmatprep.subr.mxu0 0.0
    %1262 = vmatpush1.xpose.msra.mxu0 0.0
    %1263 = vmatprep.subr.mxu0 0.0
    %1264 = vmatpush1.xpose.msra.mxu0 0.0
    %1265 = vmatprep.subr.mxu0 0.0
    %1266 = vmatpush1.xpose.msra.mxu0 0.0
    %1267 = vmatprep.subr.mxu0 0.0
    %1268 = vmatpush1.xpose.msra.mxu0 0.0
    %1269 = vmatprep.subr.mxu0 0.0
    %1270 = vmatpush1.xpose.msra.mxu0 0.0
    %1271 = vmatprep.subr.mxu0 0.0
    %1272 = vmatpush1.xpose.msra.mxu0 0.0
    %1273 = vmatprep.subr.mxu0 0.0
    %1274 = vmatpush1.xpose.msra.mxu0 %v1241
    %1275 = vmatprep.subr.mxu0 0.0
    %1276 = vmatpush2.xpose.msra.mxu0 0.0
    %1277 = vmatprep.subr.mxu0 0.0
    %1278 = vmatpush2.xpose.msra.mxu0 0.0
    %1279 = vmatprep.subr.mxu0 0.0
    %1280 = vmatpush2.xpose.msra.mxu0 0.0
    %1281 = vmatprep.subr.mxu0 0.0
    %1282 = vmatpush2.xpose.msra.mxu0 0.0
    %1283 = vmatprep.subr.mxu0 0.0
    %1284 = vmatpush2.xpose.msra.mxu0 0.0
    %1285 = vmatprep.subr.mxu0 0.0
    %1286 = vmatpush2.xpose.msra.mxu0 0.0
    %1287 = vmatprep.subr.mxu0 0.0
    %1288 = vmatpush2.xpose.msra.mxu0 0.0
    %1289 = vmatprep.subr.mxu0 0.0
    %1290 = vmatpush2.xpose.msra.mxu0 0.0
    %1291 = vmatprep.subr.mxu0 0.0
    %1292 = vmatpush2.xpose.msra.mxu0 0.0
    %1293 = vmatprep.subr.mxu0 0.0
    %1294 = vmatpush2.xpose.msra.mxu0 0.0
    %1295 = vmatprep.subr.mxu0 0.0
    %1296 = vmatpush2.xpose.msra.mxu0 0.0
    %1297 = vmatprep.subr.mxu0 0.0
    %1298 = vmatpush2.xpose.msra.mxu0 0.0
    %1299 = vmatprep.subr.mxu0 0.0
    %1300 = vmatpush2.xpose.msra.mxu0 0.0
    %1301 = vmatprep.subr.mxu0 0.0
    %1302 = vmatpush2.xpose.msra.mxu0 0.0
    %1303 = vmatprep.subr.mxu0 0.0
    %1304 = vmatpush2.xpose.msra.mxu0 0.0
    %1305 = vmatprep.subr.mxu0 0.0
    %1306 = vmatpush2.xpose.msra.mxu0 0.0
    %1307 = vmatprep.mubr.f32.mxu0 0.0
    %1308 = vmatmul.mubr.f32.gmra.mxu0 %v1239
    %v1309 = vpop.f32.mrf.mxu0
    %v1310 = vadd.f32 %v165, %v1309
    %v1311 = vpop.f32.mrf.mxu0
    %1312 = vdwg.mxu0
    %v1313 = vsel %vm171, %v1232, -inf
    %1314 = vmax.xlane.f32.xlu0 %v1313
    %v1315 = vpop.xlane.xlu0 %1314
    %v1316 = vsel %vm171, %v1310, -inf
    %1317 = vmax.xlane.f32.xlu0 %v1316
    %v1318 = vpop.xlane.xlu0 %1317
    %v1319 = vsub.f32 %v1232, %v1315
    %v1320 = vsub.f32 %v1310, %v1318
    %v1321 = vmul.f32 %v1319, 1.442695
    %v1322 = vpow.pop %v1321
    %v1323 = vmul.f32 %v1320, 1.442695
    %v1324 = vpow.pop %v1323
    %v1325 = vsel %vm171, %v1322, 0.0
    %1326 = vadd.xlane.f32.xlu0 %v1325
    %v1327 = vpop.xlane.xlu0 %1326
    %v1328 = vsel %vm171, %v1324, 0.0
    %1329 = vadd.xlane.f32.xlu0 %v1328
    %v1330 = vpop.xlane.xlu0 %1329
    %v1331 = vrcp.pop %v1327
    %v1332 = vrcp.pop %v1330
    %v1333 = vmul.f32 %v1322, %v1331
    %v1334 = vmul.f32 %v1324, %v1332
    %1335 = vrot.lane.b32.xlu0 %v127, 40
    %v1336 = vpop.permute.xlu0 %1335
    %v1339 = vsel %vm171, %v1333, 0
    %1341 = vmatprep.subr.mxu0 0.0
    %1342 = vmatpush1.msra.mxu0 0.0
    %1343 = vmatprep.subr.mxu0 0.0
    %1344 = vmatpush1.msra.mxu0 0.0
    %1345 = vmatprep.subr.mxu0 0.0
    %1346 = vmatpush1.msra.mxu0 0.0
    %1347 = vmatprep.subr.mxu0 0.0
    %1348 = vmatpush1.msra.mxu0 0.0
    %1349 = vmatprep.subr.mxu0 0.0
    %1350 = vmatpush1.msra.mxu0 0.0
    %1351 = vmatprep.subr.mxu0 0.0
    %1352 = vmatpush1.msra.mxu0 0.0
    %1353 = vmatprep.subr.mxu0 0.0
    %1354 = vmatpush1.msra.mxu0 0.0
    %1355 = vmatprep.subr.mxu0 0.0
    %1356 = vmatpush1.msra.mxu0 0.0
    %1357 = vmatprep.subr.mxu0 0.0
    %1358 = vmatpush1.msra.mxu0 0.0
    %1359 = vmatprep.subr.mxu0 0.0
    %1360 = vmatpush1.msra.mxu0 0.0
    %1361 = vmatprep.subr.mxu0 0.0
    %1362 = vmatpush1.msra.mxu0 0.0
    %1363 = vmatprep.subr.mxu0 0.0
    %1364 = vmatpush1.msra.mxu0 0.0
    %1365 = vmatprep.subr.mxu0 0.0
    %1366 = vmatpush1.msra.mxu0 0.0
    %1367 = vmatprep.subr.mxu0 0.0
    %1368 = vmatpush1.msra.mxu0 0.0
    %1369 = vmatprep.subr.mxu0 0.0
    %1370 = vmatpush1.msra.mxu0 0.0
    %1371 = vmatprep.subr.mxu0 0.0
    %1372 = vmatpush1.msra.mxu0 %v1336
    %1373 = vmatprep.subr.mxu0 0.0
    %1374 = vmatpush2.msra.mxu0 0.0
    %1375 = vmatprep.subr.mxu0 0.0
    %1376 = vmatpush2.msra.mxu0 0.0
    %1377 = vmatprep.subr.mxu0 0.0
    %1378 = vmatpush2.msra.mxu0 0.0
    %1379 = vmatprep.subr.mxu0 0.0
    %1380 = vmatpush2.msra.mxu0 0.0
    %1381 = vmatprep.subr.mxu0 0.0
    %1382 = vmatpush2.msra.mxu0 0.0
    %1383 = vmatprep.subr.mxu0 0.0
    %1384 = vmatpush2.msra.mxu0 0.0
    %1385 = vmatprep.subr.mxu0 0.0
    %1386 = vmatpush2.msra.mxu0 0.0
    %1387 = vmatprep.subr.mxu0 0.0
    %1388 = vmatpush2.msra.mxu0 0.0
    %1389 = vmatprep.subr.mxu0 0.0
    %1390 = vmatpush2.msra.mxu0 0.0
    %1391 = vmatprep.subr.mxu0 0.0
    %1392 = vmatpush2.msra.mxu0 0.0
    %1393 = vmatprep.subr.mxu0 0.0
    %1394 = vmatpush2.msra.mxu0 0.0
    %1395 = vmatprep.subr.mxu0 0.0
    %1396 = vmatpush2.msra.mxu0 0.0
    %1397 = vmatprep.subr.mxu0 0.0
    %1398 = vmatpush2.msra.mxu0 0.0
    %1399 = vmatprep.subr.mxu0 0.0
    %1400 = vmatpush2.msra.mxu0 0.0
    %1401 = vmatprep.subr.mxu0 0.0
    %1402 = vmatpush2.msra.mxu0 0.0
    %1403 = vmatprep.subr.mxu0 0.0
    %1404 = vmatpush2.msra.mxu0 0.0
    %1405 = vmatprep.mubr.f32.mxu0 0.0
    %1406 = vmatmul.mubr.f32.gmra.mxu0 %v1339
    %v1407 = vpop.f32.mrf.mxu0
    %v1408 = vadd.f32 0.0, %v1407
    %v1409 = vpop.f32.mrf.mxu0
    %1410 = vdwg.mxu0
    %1411 = vrot.lane.b32.xlu0 %v132, 40
    %v1412 = vpop.permute.xlu0 %1411
    %v1415 = vsel %vm171, %v1334, 0
    %1417 = vmatprep.subr.mxu0 0.0
    %1418 = vmatpush1.msra.mxu0 0.0
    %1419 = vmatprep.subr.mxu0 0.0
    %1420 = vmatpush1.msra.mxu0 0.0
    %1421 = vmatprep.subr.mxu0 0.0
    %1422 = vmatpush1.msra.mxu0 0.0
    %1423 = vmatprep.subr.mxu0 0.0
    %1424 = vmatpush1.msra.mxu0 0.0
    %1425 = vmatprep.subr.mxu0 0.0
    %1426 = vmatpush1.msra.mxu0 0.0
    %1427 = vmatprep.subr.mxu0 0.0
    %1428 = vmatpush1.msra.mxu0 0.0
    %1429 = vmatprep.subr.mxu0 0.0
    %1430 = vmatpush1.msra.mxu0 0.0
    %1431 = vmatprep.subr.mxu0 0.0
    %1432 = vmatpush1.msra.mxu0 0.0
    %1433 = vmatprep.subr.mxu0 0.0
    %1434 = vmatpush1.msra.mxu0 0.0
    %1435 = vmatprep.subr.mxu0 0.0
    %1436 = vmatpush1.msra.mxu0 0.0
    %1437 = vmatprep.subr.mxu0 0.0
    %1438 = vmatpush1.msra.mxu0 0.0
    %1439 = vmatprep.subr.mxu0 0.0
    %1440 = vmatpush1.msra.mxu0 0.0
    %1441 = vmatprep.subr.mxu0 0.0
    %1442 = vmatpush1.msra.mxu0 0.0
    %1443 = vmatprep.subr.mxu0 0.0
    %1444 = vmatpush1.msra.mxu0 0.0
    %1445 = vmatprep.subr.mxu0 0.0
    %1446 = vmatpush1.msra.mxu0 0.0
    %1447 = vmatprep.subr.mxu0 0.0
    %1448 = vmatpush1.msra.mxu0 %v1412
    %1449 = vmatprep.subr.mxu0 0.0
    %1450 = vmatpush2.msra.mxu0 0.0
    %1451 = vmatprep.subr.mxu0 0.0
    %1452 = vmatpush2.msra.mxu0 0.0
    %1453 = vmatprep.subr.mxu0 0.0
    %1454 = vmatpush2.msra.mxu0 0.0
    %1455 = vmatprep.subr.mxu0 0.0
    %1456 = vmatpush2.msra.mxu0 0.0
    %1457 = vmatprep.subr.mxu0 0.0
    %1458 = vmatpush2.msra.mxu0 0.0
    %1459 = vmatprep.subr.mxu0 0.0
    %1460 = vmatpush2.msra.mxu0 0.0
    %1461 = vmatprep.subr.mxu0 0.0
    %1462 = vmatpush2.msra.mxu0 0.0
    %1463 = vmatprep.subr.mxu0 0.0
    %1464 = vmatpush2.msra.mxu0 0.0
    %1465 = vmatprep.subr.mxu0 0.0
    %1466 = vmatpush2.msra.mxu0 0.0
    %1467 = vmatprep.subr.mxu0 0.0
    %1468 = vmatpush2.msra.mxu0 0.0
    %1469 = vmatprep.subr.mxu0 0.0
    %1470 = vmatpush2.msra.mxu0 0.0
    %1471 = vmatprep.subr.mxu0 0.0
    %1472 = vmatpush2.msra.mxu0 0.0
    %1473 = vmatprep.subr.mxu0 0.0
    %1474 = vmatpush2.msra.mxu0 0.0
    %1475 = vmatprep.subr.mxu0 0.0
    %1476 = vmatpush2.msra.mxu0 0.0
    %1477 = vmatprep.subr.mxu0 0.0
    %1478 = vmatpush2.msra.mxu0 0.0
    %1479 = vmatprep.subr.mxu0 0.0
    %1480 = vmatpush2.msra.mxu0 0.0
    %1481 = vmatprep.mubr.f32.mxu0 0.0
    %1482 = vmatmul.mubr.f32.gmra.mxu0 %v1415
    %v1483 = vpop.f32.mrf.mxu0
    %v1484 = vadd.f32 0.0, %v1483
    %v1485 = vpop.f32.mrf.mxu0
    %1486 = vdwg.mxu0
    %1489 = vrot.lane.b32.xlu0 %v748, 8
    %v1490 = vpop.permute.xlu0 %1489
    %1491 = vrot.lane.b32.xlu0 %v824, 8
    %v1492 = vpop.permute.xlu0 %1491
    %1497 = vrot.lane.b32.xlu0 %v1078, 16
    %v1498 = vpop.permute.xlu0 %1497
    %1499 = vrot.lane.b32.xlu0 %v1154, 16
    %v1500 = vpop.permute.xlu0 %1499
    %1505 = vrot.lane.b32.xlu0 %v1408, 24
    %v1506 = vpop.permute.xlu0 %1505
    %1507 = vrot.lane.b32.xlu0 %v1484, 24
    %v1508 = vpop.permute.xlu0 %1507
    %v1511 = vsel %vm171, %v418, %v1490
    %v1512 = vsel %vm171, %v494, %v1492
    %vm1513 = vcmask 130048
    %v1514 = vsel %vm1513, %v1511, %v1498
    %v1515 = vsel %vm1513, %v1512, %v1500
    %vm1516 = vcmask 195584
    %v1517 = vsel %vm1516, %v1514, %v1506
    %v1518 = vsel %vm1516, %v1515, %v1508
    %v1519 = vld [vmem:[%s4] sm:$0xff]
    %v1520 = vld [vmem:[%s4 + $0x8] sm:$0xff]
    %v1521 = vld [vmem:[%s4 + $0x10] sm:$0xff]
    %v1522 = vld [vmem:[%s4 + $0x18] sm:$0xff]
    %v1523 = vlaneseq
    %v1524 = vshrl.u32 %v1523, 7
    %v1525 = vsub.s32 1, %v1524
    %v1526 = vrot.slane %v44, %v1525
    %v1528 = vsel %vm53, %v1517, 0
    %v1531 = vsel %vm53, %v1518, 0
    %1533 = vmatprep.subr.mxu0 0.0
    %1534 = vmatpush1.msra.mxu0 0.0
    %1535 = vmatprep.subr.mxu0 0.0
    %1536 = vmatpush1.msra.mxu0 0.0
    %1537 = vmatprep.subr.mxu0 0.0
    %1538 = vmatpush1.msra.mxu0 0.0
    %1539 = vmatprep.subr.mxu0 0.0
    %1540 = vmatpush1.msra.mxu0 0.0
    %1541 = vmatprep.subr.mxu0 0.0
    %1542 = vmatpush1.msra.mxu0 0.0
    %1543 = vmatprep.subr.mxu0 0.0
    %1544 = vmatpush1.msra.mxu0 0.0
    %1545 = vmatprep.subr.mxu0 0.0
    %1546 = vmatpush1.msra.mxu0 0.0
    %1547 = vmatprep.subr.mxu0 0.0
    %1548 = vmatpush1.msra.mxu0 0.0
    %1549 = vmatprep.subr.mxu0 0.0
    %1550 = vmatpush1.msra.mxu0 0.0
    %1551 = vmatprep.subr.mxu0 0.0
    %1552 = vmatpush1.msra.mxu0 0.0
    %1553 = vmatprep.subr.mxu0 0.0
    %1554 = vmatpush1.msra.mxu0 0.0
    %1555 = vmatprep.subr.mxu0 0.0
    %1556 = vmatpush1.msra.mxu0 0.0
    %1557 = vmatprep.subr.mxu0 0.0
    %1558 = vmatpush1.msra.mxu0 %v1522
    %1559 = vmatprep.subr.mxu0 0.0
    %1560 = vmatpush1.msra.mxu0 %v1521
    %1561 = vmatprep.subr.mxu0 0.0
    %1562 = vmatpush1.msra.mxu0 %v1520
    %1563 = vmatprep.subr.mxu0 0.0
    %1564 = vmatpush1.msra.mxu0 %v1519
    %1565 = vmatprep.subr.mxu0 0.0
    %1566 = vmatpush2.msra.mxu0 0.0
    %1567 = vmatprep.subr.mxu0 0.0
    %1568 = vmatpush2.msra.mxu0 0.0
    %1569 = vmatprep.subr.mxu0 0.0
    %1570 = vmatpush2.msra.mxu0 0.0
    %1571 = vmatprep.subr.mxu0 0.0
    %1572 = vmatpush2.msra.mxu0 0.0
    %1573 = vmatprep.subr.mxu0 0.0
    %1574 = vmatpush2.msra.mxu0 0.0
    %1575 = vmatprep.subr.mxu0 0.0
    %1576 = vmatpush2.msra.mxu0 0.0
    %1577 = vmatprep.subr.mxu0 0.0
    %1578 = vmatpush2.msra.mxu0 0.0
    %1579 = vmatprep.subr.mxu0 0.0
    %1580 = vmatpush2.msra.mxu0 0.0
    %1581 = vmatprep.subr.mxu0 0.0
    %1582 = vmatpush2.msra.mxu0 0.0
    %1583 = vmatprep.subr.mxu0 0.0
    %1584 = vmatpush2.msra.mxu0 0.0
    %1585 = vmatprep.subr.mxu0 0.0
    %1586 = vmatpush2.msra.mxu0 0.0
    %1587 = vmatprep.subr.mxu0 0.0
    %1588 = vmatpush2.msra.mxu0 0.0
    %1589 = vmatprep.subr.mxu0 0.0
    %1590 = vmatpush2.msra.mxu0 0.0
    %1591 = vmatprep.subr.mxu0 0.0
    %1592 = vmatpush2.msra.mxu0 0.0
    %1593 = vmatprep.subr.mxu0 0.0
    %1594 = vmatpush2.msra.mxu0 0.0
    %1595 = vmatprep.subr.mxu0 0.0
    %1596 = vmatpush2.msra.mxu0 0.0
    %1597 = vmatprep.mubr.f32.mxu0 0.0
    %1598 = vmatmul.mubr.f32.gmra.mxu0 %v1528
    %v1599 = vpop.f32.mrf.mxu0
    %v1600 = vadd.f32 %v1526, %v1599
    %v1601 = vpop.f32.mrf.mxu0
    %1602 = vmatprep.mubr.f32.mxu0 0.0
    %1603 = vmatmul.mubr.f32.gmra.mxu0 %v1531
    %v1604 = vpop.f32.mrf.mxu0
    %v1605 = vadd.f32 %v1526, %v1604
    %v1606 = vpop.f32.mrf.mxu0
    %1607 = vdwg.mxu0
    %v1608 = vadd.f32 %v39, %v1600
    %v1609 = vadd.f32 %v40, %v1605
    %v1610 = vsel %vm53, %v1608, 0.0
    %1611 = vadd.xlane.f32.xlu0 %v1610
    %v1612 = vpop.xlane.xlu0 %1611
    %v1613 = vsel %vm53, %v1609, 0.0
    %1614 = vadd.xlane.f32.xlu0 %v1613
    %v1615 = vpop.xlane.xlu0 %1614
    %v1616 = vrcp.pop 32.0
    %v1617 = vmul.f32 %v1612, %v1616
    %v1618 = vmul.f32 %v1615, %v1616
    %v1619 = vsub.f32 %v1608, %v1617
    %v1620 = vsub.f32 %v1609, %v1618
    %v1621 = vmul.f32 %v1619, %v1619
    %v1622 = vmul.f32 %v1620, %v1620
    %v1623 = vsel %vm53, %v1621, 0.0
    %1624 = vadd.xlane.f32.xlu0 %v1623
    %v1625 = vpop.xlane.xlu0 %1624
    %v1626 = vsel %vm53, %v1622, 0.0
    %1627 = vadd.xlane.f32.xlu0 %v1626
    %v1628 = vpop.xlane.xlu0 %1627
    %v1629 = vmul.f32 %v1625, %v1616
    %v1630 = vmul.f32 %v1628, %v1616
    %v1631 = vadd.f32 %v1629, 1e-12
    %v1632 = vadd.f32 %v1630, 1e-12
    %v1633 = vrsqrt.pop %v1631
    %v1634 = vrsqrt.pop %v1632
    %v1635 = vmul.f32 %v1619, %v1633
    %v1636 = vmul.f32 %v1620, %v1634
    %v1637 = vlaneseq
    %v1638 = vshrl.u32 %v1637, 7
    %v1639 = vsub.s32 2, %v1638
    %v1640 = vrot.slane %v44, %v1639
    %v1641 = vmul.f32 %v1635, %v1640
    %v1642 = vmul.f32 %v1636, %v1640
    %v1643 = vlaneseq
    %v1644 = vshrl.u32 %v1643, 7
    %v1645 = vsub.s32 3, %v1644
    %v1646 = vrot.slane %v44, %v1645
    %v1647 = vadd.f32 %v1641, %v1646
    %v1648 = vadd.f32 %v1642, %v1646
    %v1649 = vld [vmem:[%s5] sm:$0xff]
    %v1650 = vld [vmem:[%s5 + $0x8] sm:$0xff]
    %v1651 = vld [vmem:[%s5 + $0x10] sm:$0xff]
    %v1652 = vld [vmem:[%s5 + $0x18] sm:$0xff]
    %v1653 = vlaneseq
    %v1654 = vshrl.u32 %v1653, 7
    %v1655 = vsub.s32 4, %v1654
    %v1656 = vrot.slane %v44, %v1655
    %v1658 = vsel %vm53, %v1647, 0
    %v1661 = vsel %vm53, %v1648, 0
    %1663 = vmatprep.subr.mxu0 0.0
    %1664 = vmatpush1.msra.mxu0 0.0
    %1665 = vmatprep.subr.mxu0 0.0
    %1666 = vmatpush1.msra.mxu0 0.0
    %1667 = vmatprep.subr.mxu0 0.0
    %1668 = vmatpush1.msra.mxu0 0.0
    %1669 = vmatprep.subr.mxu0 0.0
    %1670 = vmatpush1.msra.mxu0 0.0
    %1671 = vmatprep.subr.mxu0 0.0
    %1672 = vmatpush1.msra.mxu0 0.0
    %1673 = vmatprep.subr.mxu0 0.0
    %1674 = vmatpush1.msra.mxu0 0.0
    %1675 = vmatprep.subr.mxu0 0.0
    %1676 = vmatpush1.msra.mxu0 0.0
    %1677 = vmatprep.subr.mxu0 0.0
    %1678 = vmatpush1.msra.mxu0 0.0
    %1679 = vmatprep.subr.mxu0 0.0
    %1680 = vmatpush1.msra.mxu0 0.0
    %1681 = vmatprep.subr.mxu0 0.0
    %1682 = vmatpush1.msra.mxu0 0.0
    %1683 = vmatprep.subr.mxu0 0.0
    %1684 = vmatpush1.msra.mxu0 0.0
    %1685 = vmatprep.subr.mxu0 0.0
    %1686 = vmatpush1.msra.mxu0 0.0
    %1687 = vmatprep.subr.mxu0 0.0
    %1688 = vmatpush1.msra.mxu0 %v1652
    %1689 = vmatprep.subr.mxu0 0.0
    %1690 = vmatpush1.msra.mxu0 %v1651
    %1691 = vmatprep.subr.mxu0 0.0
    %1692 = vmatpush1.msra.mxu0 %v1650
    %1693 = vmatprep.subr.mxu0 0.0
    %1694 = vmatpush1.msra.mxu0 %v1649
    %1695 = vmatprep.subr.mxu0 0.0
    %1696 = vmatpush2.msra.mxu0 0.0
    %1697 = vmatprep.subr.mxu0 0.0
    %1698 = vmatpush2.msra.mxu0 0.0
    %1699 = vmatprep.subr.mxu0 0.0
    %1700 = vmatpush2.msra.mxu0 0.0
    %1701 = vmatprep.subr.mxu0 0.0
    %1702 = vmatpush2.msra.mxu0 0.0
    %1703 = vmatprep.subr.mxu0 0.0
    %1704 = vmatpush2.msra.mxu0 0.0
    %1705 = vmatprep.subr.mxu0 0.0
    %1706 = vmatpush2.msra.mxu0 0.0
    %1707 = vmatprep.subr.mxu0 0.0
    %1708 = vmatpush2.msra.mxu0 0.0
    %1709 = vmatprep.subr.mxu0 0.0
    %1710 = vmatpush2.msra.mxu0 0.0
    %1711 = vmatprep.subr.mxu0 0.0
    %1712 = vmatpush2.msra.mxu0 0.0
    %1713 = vmatprep.subr.mxu0 0.0
    %1714 = vmatpush2.msra.mxu0 0.0
    %1715 = vmatprep.subr.mxu0 0.0
    %1716 = vmatpush2.msra.mxu0 0.0
    %1717 = vmatprep.subr.mxu0 0.0
    %1718 = vmatpush2.msra.mxu0 0.0
    %1719 = vmatprep.subr.mxu0 0.0
    %1720 = vmatpush2.msra.mxu0 0.0
    %1721 = vmatprep.subr.mxu0 0.0
    %1722 = vmatpush2.msra.mxu0 0.0
    %1723 = vmatprep.subr.mxu0 0.0
    %1724 = vmatpush2.msra.mxu0 0.0
    %1725 = vmatprep.subr.mxu0 0.0
    %1726 = vmatpush2.msra.mxu0 0.0
    %1727 = vmatprep.mubr.f32.mxu0 0.0
    %1728 = vmatmul.mubr.f32.gmra.mxu0 %v1658
    %v1729 = vpop.f32.mrf.mxu0
    %v1730 = vadd.f32 %v1656, %v1729
    %v1731 = vpop.f32.mrf.mxu0
    %1732 = vmatprep.mubr.f32.mxu0 0.0
    %1733 = vmatmul.mubr.f32.gmra.mxu0 %v1661
    %v1734 = vpop.f32.mrf.mxu0
    %v1735 = vadd.f32 %v1656, %v1734
    %v1736 = vpop.f32.mrf.mxu0
    %1737 = vdwg.mxu0
    %v1738 = vmul.f32 %v1730, %v1730
    %v1739 = vmul.f32 %v1735, %v1735
    %v1740 = vmul.f32 %v1730, %v1738
    %v1741 = vmul.f32 %v1735, %v1739
    %v1742 = vmul.f32 %v1740, 0.044715
    %v1743 = vmul.f32 %v1741, 0.044715
    %v1744 = vadd.f32 %v1730, %v1742
    %v1745 = vadd.f32 %v1735, %v1743
    %v1746 = vmul.f32 %v1744, 0.7978846
    %v1747 = vmul.f32 %v1745, 0.7978846
    %v1748 = vtanh.pop %v1746
    %v1749 = vtanh.pop %v1747
    %v1750 = vadd.f32 %v1748, 1.0
    %v1751 = vadd.f32 %v1749, 1.0
    %v1752 = vmul.f32 %v1750, 0.5
    %v1753 = vmul.f32 %v1751, 0.5
    %v1754 = vmul.f32 %v1730, %v1752
    %v1755 = vmul.f32 %v1735, %v1753
    %v1756 = vld [vmem:[%s6] sm:$0xff]
    %v1757 = vld [vmem:[%s6 + $0x8] sm:$0xff]
    %v1758 = vld [vmem:[%s6 + $0x10] sm:$0xff]
    %v1759 = vld [vmem:[%s6 + $0x18] sm:$0xff]
    %v1760 = vld [vmem:[%s6 + $0x20] sm:$0xff]
    %v1761 = vld [vmem:[%s6 + $0x28] sm:$0xff]
    %v1762 = vld [vmem:[%s6 + $0x30] sm:$0xff]
    %v1763 = vld [vmem:[%s6 + $0x38] sm:$0xff]
    %v1764 = vlaneseq
    %v1765 = vshrl.u32 %v1764, 7
    %v1766 = vsub.s32 5, %v1765
    %v1767 = vrot.slane %v44, %v1766
    %vm1768 = vcmask 523264
    %v1770 = vsel %vm1768, %v1754, 0
    %v1773 = vsel %vm1768, %v1755, 0
    %1775 = vmatprep.subr.mxu0 0.0
    %1776 = vmatpush1.msra.mxu0 0.0
    %1777 = vmatprep.subr.mxu0 0.0
    %1778 = vmatpush1.msra.mxu0 0.0
    %1779 = vmatprep.subr.mxu0 0.0
    %1780 = vmatpush1.msra.mxu0 0.0
    %1781 = vmatprep.subr.mxu0 0.0
    %1782 = vmatpush1.msra.mxu0 0.0
    %1783 = vmatprep.subr.mxu0 0.0
    %1784 = vmatpush1.msra.mxu0 0.0
    %1785 = vmatprep.subr.mxu0 0.0
    %1786 = vmatpush1.msra.mxu0 0.0
    %1787 = vmatprep.subr.mxu0 0.0
    %1788 = vmatpush1.msra.mxu0 0.0
    %1789 = vmatprep.subr.mxu0 0.0
    %1790 = vmatpush1.msra.mxu0 0.0
    %1791 = vmatprep.subr.mxu0 0.0
    %1792 = vmatpush1.msra.mxu0 %v1763
    %1793 = vmatprep.subr.mxu0 0.0
    %1794 = vmatpush1.msra.mxu0 %v1762
    %1795 = vmatprep.subr.mxu0 0.0
    %1796 = vmatpush1.msra.mxu0 %v1761
    %1797 = vmatprep.subr.mxu0 0.0
    %1798 = vmatpush1.msra.mxu0 %v1760
    %1799 = vmatprep.subr.mxu0 0.0
    %1800 = vmatpush1.msra.mxu0 %v1759
    %1801 = vmatprep.subr.mxu0 0.0
    %1802 = vmatpush1.msra.mxu0 %v1758
    %1803 = vmatprep.subr.mxu0 0.0
    %1804 = vmatpush1.msra.mxu0 %v1757
    %1805 = vmatprep.subr.mxu0 0.0
    %1806 = vmatpush1.msra.mxu0 %v1756
    %1807 = vmatprep.subr.mxu0 0.0
    %1808 = vmatpush2.msra.mxu0 0.0
    %1809 = vmatprep.subr.mxu0 0.0
    %1810 = vmatpush2.msra.mxu0 0.0
    %1811 = vmatprep.subr.mxu0 0.0
    %1812 = vmatpush2.msra.mxu0 0.0
    %1813 = vmatprep.subr.mxu0 0.0
    %1814 = vmatpush2.msra.mxu0 0.0
    %1815 = vmatprep.subr.mxu0 0.0
    %1816 = vmatpush2.msra.mxu0 0.0
    %1817 = vmatprep.subr.mxu0 0.0
    %1818 = vmatpush2.msra.mxu0 0.0
    %1819 = vmatprep.subr.mxu0 0.0
    %1820 = vmatpush2.msra.mxu0 0.0
    %1821 = vmatprep.subr.mxu0 0.0
    %1822 = vmatpush2.msra.mxu0 0.0
    %1823 = vmatprep.subr.mxu0 0.0
    %1824 = vmatpush2.msra.mxu0 0.0
    %1825 = vmatprep.subr.mxu0 0.0
    %1826 = vmatpush2.msra.mxu0 0.0
    %1827 = vmatprep.subr.mxu0 0.0
    %1828 = vmatpush2.msra.mxu0 0.0
    %1829 = vmatprep.subr.mxu0 0.0
    %1830 = vmatpush2.msra.mxu0 0.0
    %1831 = vmatprep.subr.mxu0 0.0
    %1832 = vmatpush2.msra.mxu0 0.0
    %1833 = vmatprep.subr.mxu0 0.0
    %1834 = vmatpush2.msra.mxu0 0.0
    %1835 = vmatprep.subr.mxu0 0.0
    %1836 = vmatpush2.msra.mxu0 0.0
    %1837 = vmatprep.subr.mxu0 0.0
    %1838 = vmatpush2.msra.mxu0 0.0
    %1839 = vmatprep.mubr.f32.mxu0 0.0
    %1840 = vmatmul.mubr.f32.gmra.mxu0 %v1770
    %v1841 = vpop.f32.mrf.mxu0
    %v1842 = vadd.f32 %v1767, %v1841
    %v1843 = vpop.f32.mrf.mxu0
    %1844 = vmatprep.mubr.f32.mxu0 0.0
    %1845 = vmatmul.mubr.f32.gmra.mxu0 %v1773
    %v1846 = vpop.f32.mrf.mxu0
    %v1847 = vadd.f32 %v1767, %v1846
    %v1848 = vpop.f32.mrf.mxu0
    %1849 = vdwg.mxu0
    %v1850 = vadd.f32 %v1647, %v1842
    %v1851 = vadd.f32 %v1648, %v1847
    %v1852 = vsel %vm53, %v1850, 0.0
    %1853 = vadd.xlane.f32.xlu0 %v1852
    %v1854 = vpop.xlane.xlu0 %1853
    %v1855 = vsel %vm53, %v1851, 0.0
    %1856 = vadd.xlane.f32.xlu0 %v1855
    %v1857 = vpop.xlane.xlu0 %1856
    %v1858 = vmul.f32 %v1854, %v1616
    %v1859 = vmul.f32 %v1857, %v1616
    %v1860 = vsub.f32 %v1850, %v1858
    %v1861 = vsub.f32 %v1851, %v1859
    %v1862 = vmul.f32 %v1860, %v1860
    %v1863 = vmul.f32 %v1861, %v1861
    %v1864 = vsel %vm53, %v1862, 0.0
    %1865 = vadd.xlane.f32.xlu0 %v1864
    %v1866 = vpop.xlane.xlu0 %1865
    %v1867 = vsel %vm53, %v1863, 0.0
    %1868 = vadd.xlane.f32.xlu0 %v1867
    %v1869 = vpop.xlane.xlu0 %1868
    %v1870 = vmul.f32 %v1866, %v1616
    %v1871 = vmul.f32 %v1869, %v1616
    %v1872 = vadd.f32 %v1870, 1e-12
    %v1873 = vadd.f32 %v1871, 1e-12
    %v1874 = vrsqrt.pop %v1872
    %v1875 = vrsqrt.pop %v1873
    %v1876 = vmul.f32 %v1860, %v1874
    %v1877 = vmul.f32 %v1861, %v1875
    %v1878 = vlaneseq
    %v1879 = vshrl.u32 %v1878, 7
    %v1880 = vsub.s32 6, %v1879
    %v1881 = vrot.slane %v44, %v1880
    %v1882 = vmul.f32 %v1876, %v1881
    %v1883 = vmul.f32 %v1877, %v1881
    %v1884 = vlaneseq
    %v1885 = vshrl.u32 %v1884, 7
    %v1886 = vsub.s32 7, %v1885
    %v1887 = vrot.slane %v44, %v1886
    %v1888 = vadd.f32 %v1882, %v1887
    %v1889 = vadd.f32 %v1883, %v1887
    %s1890 = scalar_lea.vmem %s7, 8
    %v1891 = vld [vmem:[%s1890] sm:$0xff]
    %s1892 = scalar_lea.vmem %s3, 32
    %v1893 = vld [vmem:[%s1892] sm:$0xff]
    %v1894 = vld [vmem:[%s1892 + $0x8] sm:$0xff]
    %v1895 = vld [vmem:[%s1892 + $0x10] sm:$0xff]
    %v1896 = vld [vmem:[%s1892 + $0x18] sm:$0xff]
    %v1897 = vlaneseq
    %v1898 = vshrl.u32 %v1897, 7
    %v1899 = vsub.s32 0, %v1898
    %v1900 = vrot.slane %v1891, %v1899
    %v1902 = vsel %vm53, %v1888, 0
    %v1905 = vsel %vm53, %v1889, 0
    %1907 = vmatprep.subr.mxu0 0.0
    %1908 = vmatpush1.msra.mxu0 0.0
    %1909 = vmatprep.subr.mxu0 0.0
    %1910 = vmatpush1.msra.mxu0 0.0
    %1911 = vmatprep.subr.mxu0 0.0
    %1912 = vmatpush1.msra.mxu0 0.0
    %1913 = vmatprep.subr.mxu0 0.0
    %1914 = vmatpush1.msra.mxu0 0.0
    %1915 = vmatprep.subr.mxu0 0.0
    %1916 = vmatpush1.msra.mxu0 0.0
    %1917 = vmatprep.subr.mxu0 0.0
    %1918 = vmatpush1.msra.mxu0 0.0
    %1919 = vmatprep.subr.mxu0 0.0
    %1920 = vmatpush1.msra.mxu0 0.0
    %1921 = vmatprep.subr.mxu0 0.0
    %1922 = vmatpush1.msra.mxu0 0.0
    %1923 = vmatprep.subr.mxu0 0.0
    %1924 = vmatpush1.msra.mxu0 0.0
    %1925 = vmatprep.subr.mxu0 0.0
    %1926 = vmatpush1.msra.mxu0 0.0
    %1927 = vmatprep.subr.mxu0 0.0
    %1928 = vmatpush1.msra.mxu0 0.0
    %1929 = vmatprep.subr.mxu0 0.0
    %1930 = vmatpush1.msra.mxu0 0.0
    %1931 = vmatprep.subr.mxu0 0.0
    %1932 = vmatpush1.msra.mxu0 %v1896
    %1933 = vmatprep.subr.mxu0 0.0
    %1934 = vmatpush1.msra.mxu0 %v1895
    %1935 = vmatprep.subr.mxu0 0.0
    %1936 = vmatpush1.msra.mxu0 %v1894
    %1937 = vmatprep.subr.mxu0 0.0
    %1938 = vmatpush1.msra.mxu0 %v1893
    %1939 = vmatprep.subr.mxu0 0.0
    %1940 = vmatpush2.msra.mxu0 0.0
    %1941 = vmatprep.subr.mxu0 0.0
    %1942 = vmatpush2.msra.mxu0 0.0
    %1943 = vmatprep.subr.mxu0 0.0
    %1944 = vmatpush2.msra.mxu0 0.0
    %1945 = vmatprep.subr.mxu0 0.0
    %1946 = vmatpush2.msra.mxu0 0.0
    %1947 = vmatprep.subr.mxu0 0.0
    %1948 = vmatpush2.msra.mxu0 0.0
    %1949 = vmatprep.subr.mxu0 0.0
    %1950 = vmatpush2.msra.mxu0 0.0
    %1951 = vmatprep.subr.mxu0 0.0
    %1952 = vmatpush2.msra.mxu0 0.0
    %1953 = vmatprep.subr.mxu0 0.0
    %1954 = vmatpush2.msra.mxu0 0.0
    %1955 = vmatprep.subr.mxu0 0.0
    %1956 = vmatpush2.msra.mxu0 0.0
    %1957 = vmatprep.subr.mxu0 0.0
    %1958 = vmatpush2.msra.mxu0 0.0
    %1959 = vmatprep.subr.mxu0 0.0
    %1960 = vmatpush2.msra.mxu0 0.0
    %1961 = vmatprep.subr.mxu0 0.0
    %1962 = vmatpush2.msra.mxu0 0.0
    %1963 = vmatprep.subr.mxu0 0.0
    %1964 = vmatpush2.msra.mxu0 0.0
    %1965 = vmatprep.subr.mxu0 0.0
    %1966 = vmatpush2.msra.mxu0 0.0
    %1967 = vmatprep.subr.mxu0 0.0
    %1968 = vmatpush2.msra.mxu0 0.0
    %1969 = vmatprep.subr.mxu0 0.0
    %1970 = vmatpush2.msra.mxu0 0.0
    %1971 = vmatprep.mubr.f32.mxu0 0.0
    %1972 = vmatmul.mubr.f32.gmra.mxu0 %v1902
    %v1973 = vpop.f32.mrf.mxu0
    %v1974 = vadd.f32 %v1900, %v1973
    %v1975 = vpop.f32.mrf.mxu0
    %1976 = vmatprep.mubr.f32.mxu0 0.0
    %1977 = vmatmul.mubr.f32.gmra.mxu0 %v1905
    %v1978 = vpop.f32.mrf.mxu0
    %v1979 = vadd.f32 %v1900, %v1978
    %v1980 = vpop.f32.mrf.mxu0
    %1981 = vdwg.mxu0
    %1983 = vrot.lane.b32.xlu0 %v1974, 96
    %v1984 = vpop.permute.xlu0 %1983
    %v1985 = vsel %vm171, %v1974, 0
    %v1987 = vsel %vm171, %v1984, 0
    %1989 = vmatprep.subr.mxu0 0.0
    %1990 = vmatpush1.xpose.msra.mxu0 0.0
    %1991 = vmatprep.subr.mxu0 0.0
    %1992 = vmatpush1.xpose.msra.mxu0 0.0
    %1993 = vmatprep.subr.mxu0 0.0
    %1994 = vmatpush1.xpose.msra.mxu0 0.0
    %1995 = vmatprep.subr.mxu0 0.0
    %1996 = vmatpush1.xpose.msra.mxu0 0.0
    %1997 = vmatprep.subr.mxu0 0.0
    %1998 = vmatpush1.xpose.msra.mxu0 0.0
    %1999 = vmatprep.subr.mxu0 0.0
    %2000 = vmatpush1.xpose.msra.mxu0 0.0
    %2001 = vmatprep.subr.mxu0 0.0
    %2002 = vmatpush1.xpose.msra.mxu0 0.0
    %2003 = vmatprep.subr.mxu0 0.0
    %2004 = vmatpush1.xpose.msra.mxu0 0.0
    %2005 = vmatprep.subr.mxu0 0.0
    %2006 = vmatpush1.xpose.msra.mxu0 0.0
    %2007 = vmatprep.subr.mxu0 0.0
    %2008 = vmatpush1.xpose.msra.mxu0 0.0
    %2009 = vmatprep.subr.mxu0 0.0
    %2010 = vmatpush1.xpose.msra.mxu0 0.0
    %2011 = vmatprep.subr.mxu0 0.0
    %2012 = vmatpush1.xpose.msra.mxu0 0.0
    %2013 = vmatprep.subr.mxu0 0.0
    %2014 = vmatpush1.xpose.msra.mxu0 0.0
    %2015 = vmatprep.subr.mxu0 0.0
    %2016 = vmatpush1.xpose.msra.mxu0 0.0
    %2017 = vmatprep.subr.mxu0 0.0
    %2018 = vmatpush1.xpose.msra.mxu0 0.0
    %2019 = vmatprep.subr.mxu0 0.0
    %2020 = vmatpush1.xpose.msra.mxu0 %v1987
    %2021 = vmatprep.subr.mxu0 0.0
    %2022 = vmatpush2.xpose.msra.mxu0 0.0
    %2023 = vmatprep.subr.mxu0 0.0
    %2024 = vmatpush2.xpose.msra.mxu0 0.0
    %2025 = vmatprep.subr.mxu0 0.0
    %2026 = vmatpush2.xpose.msra.mxu0 0.0
    %2027 = vmatprep.subr.mxu0 0.0
    %2028 = vmatpush2.xpose.msra.mxu0 0.0
    %2029 = vmatprep.subr.mxu0 0.0
    %2030 = vmatpush2.xpose.msra.mxu0 0.0
    %2031 = vmatprep.subr.mxu0 0.0
    %2032 = vmatpush2.xpose.msra.mxu0 0.0
    %2033 = vmatprep.subr.mxu0 0.0
    %2034 = vmatpush2.xpose.msra.mxu0 0.0
    %2035 = vmatprep.subr.mxu0 0.0
    %2036 = vmatpush2.xpose.msra.mxu0 0.0
    %2037 = vmatprep.subr.mxu0 0.0
    %2038 = vmatpush2.xpose.msra.mxu0 0.0
    %2039 = vmatprep.subr.mxu0 0.0
    %2040 = vmatpush2.xpose.msra.mxu0 0.0
    %2041 = vmatprep.subr.mxu0 0.0
    %2042 = vmatpush2.xpose.msra.mxu0 0.0
    %2043 = vmatprep.subr.mxu0 0.0
    %2044 = vmatpush2.xpose.msra.mxu0 0.0
    %2045 = vmatprep.subr.mxu0 0.0
    %2046 = vmatpush2.xpose.msra.mxu0 0.0
    %2047 = vmatprep.subr.mxu0 0.0
    %2048 = vmatpush2.xpose.msra.mxu0 0.0
    %2049 = vmatprep.subr.mxu0 0.0
    %2050 = vmatpush2.xpose.msra.mxu0 0.0
    %2051 = vmatprep.subr.mxu0 0.0
    %2052 = vmatpush2.xpose.msra.mxu0 0.0
    %2053 = vmatprep.mubr.f32.mxu0 0.0
    %2054 = vmatmul.mubr.f32.gmra.mxu0 %v1985
    %v2055 = vpop.f32.mrf.mxu0
    %v2056 = vadd.f32 %v161, %v2055
    %v2057 = vpop.f32.mrf.mxu0
    %2058 = vdwg.mxu0
    %2060 = vrot.lane.b32.xlu0 %v1979, 96
    %v2061 = vpop.permute.xlu0 %2060
    %v2062 = vsel %vm171, %v1979, 0
    %v2064 = vsel %vm171, %v2061, 0
    %2066 = vmatprep.subr.mxu0 0.0
    %2067 = vmatpush1.xpose.msra.mxu0 0.0
    %2068 = vmatprep.subr.mxu0 0.0
    %2069 = vmatpush1.xpose.msra.mxu0 0.0
    %2070 = vmatprep.subr.mxu0 0.0
    %2071 = vmatpush1.xpose.msra.mxu0 0.0
    %2072 = vmatprep.subr.mxu0 0.0
    %2073 = vmatpush1.xpose.msra.mxu0 0.0
    %2074 = vmatprep.subr.mxu0 0.0
    %2075 = vmatpush1.xpose.msra.mxu0 0.0
    %2076 = vmatprep.subr.mxu0 0.0
    %2077 = vmatpush1.xpose.msra.mxu0 0.0
    %2078 = vmatprep.subr.mxu0 0.0
    %2079 = vmatpush1.xpose.msra.mxu0 0.0
    %2080 = vmatprep.subr.mxu0 0.0
    %2081 = vmatpush1.xpose.msra.mxu0 0.0
    %2082 = vmatprep.subr.mxu0 0.0
    %2083 = vmatpush1.xpose.msra.mxu0 0.0
    %2084 = vmatprep.subr.mxu0 0.0
    %2085 = vmatpush1.xpose.msra.mxu0 0.0
    %2086 = vmatprep.subr.mxu0 0.0
    %2087 = vmatpush1.xpose.msra.mxu0 0.0
    %2088 = vmatprep.subr.mxu0 0.0
    %2089 = vmatpush1.xpose.msra.mxu0 0.0
    %2090 = vmatprep.subr.mxu0 0.0
    %2091 = vmatpush1.xpose.msra.mxu0 0.0
    %2092 = vmatprep.subr.mxu0 0.0
    %2093 = vmatpush1.xpose.msra.mxu0 0.0
    %2094 = vmatprep.subr.mxu0 0.0
    %2095 = vmatpush1.xpose.msra.mxu0 0.0
    %2096 = vmatprep.subr.mxu0 0.0
    %2097 = vmatpush1.xpose.msra.mxu0 %v2064
    %2098 = vmatprep.subr.mxu0 0.0
    %2099 = vmatpush2.xpose.msra.mxu0 0.0
    %2100 = vmatprep.subr.mxu0 0.0
    %2101 = vmatpush2.xpose.msra.mxu0 0.0
    %2102 = vmatprep.subr.mxu0 0.0
    %2103 = vmatpush2.xpose.msra.mxu0 0.0
    %2104 = vmatprep.subr.mxu0 0.0
    %2105 = vmatpush2.xpose.msra.mxu0 0.0
    %2106 = vmatprep.subr.mxu0 0.0
    %2107 = vmatpush2.xpose.msra.mxu0 0.0
    %2108 = vmatprep.subr.mxu0 0.0
    %2109 = vmatpush2.xpose.msra.mxu0 0.0
    %2110 = vmatprep.subr.mxu0 0.0
    %2111 = vmatpush2.xpose.msra.mxu0 0.0
    %2112 = vmatprep.subr.mxu0 0.0
    %2113 = vmatpush2.xpose.msra.mxu0 0.0
    %2114 = vmatprep.subr.mxu0 0.0
    %2115 = vmatpush2.xpose.msra.mxu0 0.0
    %2116 = vmatprep.subr.mxu0 0.0
    %2117 = vmatpush2.xpose.msra.mxu0 0.0
    %2118 = vmatprep.subr.mxu0 0.0
    %2119 = vmatpush2.xpose.msra.mxu0 0.0
    %2120 = vmatprep.subr.mxu0 0.0
    %2121 = vmatpush2.xpose.msra.mxu0 0.0
    %2122 = vmatprep.subr.mxu0 0.0
    %2123 = vmatpush2.xpose.msra.mxu0 0.0
    %2124 = vmatprep.subr.mxu0 0.0
    %2125 = vmatpush2.xpose.msra.mxu0 0.0
    %2126 = vmatprep.subr.mxu0 0.0
    %2127 = vmatpush2.xpose.msra.mxu0 0.0
    %2128 = vmatprep.subr.mxu0 0.0
    %2129 = vmatpush2.xpose.msra.mxu0 0.0
    %2130 = vmatprep.mubr.f32.mxu0 0.0
    %2131 = vmatmul.mubr.f32.gmra.mxu0 %v2062
    %v2132 = vpop.f32.mrf.mxu0
    %v2133 = vadd.f32 %v165, %v2132
    %v2134 = vpop.f32.mrf.mxu0
    %2135 = vdwg.mxu0
    %v2136 = vsel %vm171, %v2056, -inf
    %2137 = vmax.xlane.f32.xlu0 %v2136
    %v2138 = vpop.xlane.xlu0 %2137
    %v2139 = vsel %vm171, %v2133, -inf
    %2140 = vmax.xlane.f32.xlu0 %v2139
    %v2141 = vpop.xlane.xlu0 %2140
    %v2142 = vsub.f32 %v2056, %v2138
    %v2143 = vsub.f32 %v2133, %v2141
    %v2144 = vmul.f32 %v2142, 1.442695
    %v2145 = vpow.pop %v2144
    %v2146 = vmul.f32 %v2143, 1.442695
    %v2147 = vpow.pop %v2146
    %v2148 = vsel %vm171, %v2145, 0.0
    %2149 = vadd.xlane.f32.xlu0 %v2148
    %v2150 = vpop.xlane.xlu0 %2149
    %v2151 = vsel %vm171, %v2147, 0.0
    %2152 = vadd.xlane.f32.xlu0 %v2151
    %v2153 = vpop.xlane.xlu0 %2152
    %v2154 = vrcp.pop %v2150
    %v2155 = vrcp.pop %v2153
    %v2156 = vmul.f32 %v2145, %v2154
    %v2157 = vmul.f32 %v2147, %v2155
    %2158 = vrot.lane.b32.xlu0 %v1974, 64
    %v2159 = vpop.permute.xlu0 %2158
    %v2162 = vsel %vm171, %v2156, 0
    %2164 = vmatprep.subr.mxu0 0.0
    %2165 = vmatpush1.msra.mxu0 0.0
    %2166 = vmatprep.subr.mxu0 0.0
    %2167 = vmatpush1.msra.mxu0 0.0
    %2168 = vmatprep.subr.mxu0 0.0
    %2169 = vmatpush1.msra.mxu0 0.0
    %2170 = vmatprep.subr.mxu0 0.0
    %2171 = vmatpush1.msra.mxu0 0.0
    %2172 = vmatprep.subr.mxu0 0.0
    %2173 = vmatpush1.msra.mxu0 0.0
    %2174 = vmatprep.subr.mxu0 0.0
    %2175 = vmatpush1.msra.mxu0 0.0
    %2176 = vmatprep.subr.mxu0 0.0
    %2177 = vmatpush1.msra.mxu0 0.0
    %2178 = vmatprep.subr.mxu0 0.0
    %2179 = vmatpush1.msra.mxu0 0.0
    %2180 = vmatprep.subr.mxu0 0.0
    %2181 = vmatpush1.msra.mxu0 0.0
    %2182 = vmatprep.subr.mxu0 0.0
    %2183 = vmatpush1.msra.mxu0 0.0
    %2184 = vmatprep.subr.mxu0 0.0
    %2185 = vmatpush1.msra.mxu0 0.0
    %2186 = vmatprep.subr.mxu0 0.0
    %2187 = vmatpush1.msra.mxu0 0.0
    %2188 = vmatprep.subr.mxu0 0.0
    %2189 = vmatpush1.msra.mxu0 0.0
    %2190 = vmatprep.subr.mxu0 0.0
    %2191 = vmatpush1.msra.mxu0 0.0
    %2192 = vmatprep.subr.mxu0 0.0
    %2193 = vmatpush1.msra.mxu0 0.0
    %2194 = vmatprep.subr.mxu0 0.0
    %2195 = vmatpush1.msra.mxu0 %v2159
    %2196 = vmatprep.subr.mxu0 0.0
    %2197 = vmatpush2.msra.mxu0 0.0
    %2198 = vmatprep.subr.mxu0 0.0
    %2199 = vmatpush2.msra.mxu0 0.0
    %2200 = vmatprep.subr.mxu0 0.0
    %2201 = vmatpush2.msra.mxu0 0.0
    %2202 = vmatprep.subr.mxu0 0.0
    %2203 = vmatpush2.msra.mxu0 0.0
    %2204 = vmatprep.subr.mxu0 0.0
    %2205 = vmatpush2.msra.mxu0 0.0
    %2206 = vmatprep.subr.mxu0 0.0
    %2207 = vmatpush2.msra.mxu0 0.0
    %2208 = vmatprep.subr.mxu0 0.0
    %2209 = vmatpush2.msra.mxu0 0.0
    %2210 = vmatprep.subr.mxu0 0.0
    %2211 = vmatpush2.msra.mxu0 0.0
    %2212 = vmatprep.subr.mxu0 0.0
    %2213 = vmatpush2.msra.mxu0 0.0
    %2214 = vmatprep.subr.mxu0 0.0
    %2215 = vmatpush2.msra.mxu0 0.0
    %2216 = vmatprep.subr.mxu0 0.0
    %2217 = vmatpush2.msra.mxu0 0.0
    %2218 = vmatprep.subr.mxu0 0.0
    %2219 = vmatpush2.msra.mxu0 0.0
    %2220 = vmatprep.subr.mxu0 0.0
    %2221 = vmatpush2.msra.mxu0 0.0
    %2222 = vmatprep.subr.mxu0 0.0
    %2223 = vmatpush2.msra.mxu0 0.0
    %2224 = vmatprep.subr.mxu0 0.0
    %2225 = vmatpush2.msra.mxu0 0.0
    %2226 = vmatprep.subr.mxu0 0.0
    %2227 = vmatpush2.msra.mxu0 0.0
    %2228 = vmatprep.mubr.f32.mxu0 0.0
    %2229 = vmatmul.mubr.f32.gmra.mxu0 %v2162
    %v2230 = vpop.f32.mrf.mxu0
    %v2231 = vadd.f32 0.0, %v2230
    %v2232 = vpop.f32.mrf.mxu0
    %2233 = vdwg.mxu0
    %2234 = vrot.lane.b32.xlu0 %v1979, 64
    %v2235 = vpop.permute.xlu0 %2234
    %v2238 = vsel %vm171, %v2157, 0
    %2240 = vmatprep.subr.mxu0 0.0
    %2241 = vmatpush1.msra.mxu0 0.0
    %2242 = vmatprep.subr.mxu0 0.0
    %2243 = vmatpush1.msra.mxu0 0.0
    %2244 = vmatprep.subr.mxu0 0.0
    %2245 = vmatpush1.msra.mxu0 0.0
    %2246 = vmatprep.subr.mxu0 0.0
    %2247 = vmatpush1.msra.mxu0 0.0
    %2248 = vmatprep.subr.mxu0 0.0
    %2249 = vmatpush1.msra.mxu0 0.0
    %2250 = vmatprep.subr.mxu0 0.0
    %2251 = vmatpush1.msra.mxu0 0.0
    %2252 = vmatprep.subr.mxu0 0.0
    %2253 = vmatpush1.msra.mxu0 0.0
    %2254 = vmatprep.subr.mxu0 0.0
    %2255 = vmatpush1.msra.mxu0 0.0
    %2256 = vmatprep.subr.mxu0 0.0
    %2257 = vmatpush1.msra.mxu0 0.0
    %2258 = vmatprep.subr.mxu0 0.0
    %2259 = vmatpush1.msra.mxu0 0.0
    %2260 = vmatprep.subr.mxu0 0.0
    %2261 = vmatpush1.msra.mxu0 0.0
    %2262 = vmatprep.subr.mxu0 0.0
    %2263 = vmatpush1.msra.mxu0 0.0
    %2264 = vmatprep.subr.mxu0 0.0
    %2265 = vmatpush1.msra.mxu0 0.0
    %2266 = vmatprep.subr.mxu0 0.0
    %2267 = vmatpush1.msra.mxu0 0.0
    %2268 = vmatprep.subr.mxu0 0.0
    %2269 = vmatpush1.msra.mxu0 0.0
    %2270 = vmatprep.subr.mxu0 0.0
    %2271 = vmatpush1.msra.mxu0 %v2235
    %2272 = vmatprep.subr.mxu0 0.0
    %2273 = vmatpush2.msra.mxu0 0.0
    %2274 = vmatprep.subr.mxu0 0.0
    %2275 = vmatpush2.msra.mxu0 0.0
    %2276 = vmatprep.subr.mxu0 0.0
    %2277 = vmatpush2.msra.mxu0 0.0
    %2278 = vmatprep.subr.mxu0 0.0
    %2279 = vmatpush2.msra.mxu0 0.0
    %2280 = vmatprep.subr.mxu0 0.0
    %2281 = vmatpush2.msra.mxu0 0.0
    %2282 = vmatprep.subr.mxu0 0.0
    %2283 = vmatpush2.msra.mxu0 0.0
    %2284 = vmatprep.subr.mxu0 0.0
    %2285 = vmatpush2.msra.mxu0 0.0
    %2286 = vmatprep.subr.mxu0 0.0
    %2287 = vmatpush2.msra.mxu0 0.0
    %2288 = vmatprep.subr.mxu0 0.0
    %2289 = vmatpush2.msra.mxu0 0.0
    %2290 = vmatprep.subr.mxu0 0.0
    %2291 = vmatpush2.msra.mxu0 0.0
    %2292 = vmatprep.subr.mxu0 0.0
    %2293 = vmatpush2.msra.mxu0 0.0
    %2294 = vmatprep.subr.mxu0 0.0
    %2295 = vmatpush2.msra.mxu0 0.0
    %2296 = vmatprep.subr.mxu0 0.0
    %2297 = vmatpush2.msra.mxu0 0.0
    %2298 = vmatprep.subr.mxu0 0.0
    %2299 = vmatpush2.msra.mxu0 0.0
    %2300 = vmatprep.subr.mxu0 0.0
    %2301 = vmatpush2.msra.mxu0 0.0
    %2302 = vmatprep.subr.mxu0 0.0
    %2303 = vmatpush2.msra.mxu0 0.0
    %2304 = vmatprep.mubr.f32.mxu0 0.0
    %2305 = vmatmul.mubr.f32.gmra.mxu0 %v2238
    %v2306 = vpop.f32.mrf.mxu0
    %v2307 = vadd.f32 0.0, %v2306
    %v2308 = vpop.f32.mrf.mxu0
    %2309 = vdwg.mxu0
    %2310 = vrot.lane.b32.xlu0 %v1974, 120
    %v2311 = vpop.permute.xlu0 %2310
    %2312 = vrot.lane.b32.xlu0 %v1974, 88
    %v2313 = vpop.permute.xlu0 %2312
    %v2314 = vsel %vm171, %v2311, 0
    %v2316 = vsel %vm171, %v2313, 0
    %2318 = vmatprep.subr.mxu0 0.0
    %2319 = vmatpush1.xpose.msra.mxu0 0.0
    %2320 = vmatprep.subr.mxu0 0.0
    %2321 = vmatpush1.xpose.msra.mxu0 0.0
    %2322 = vmatprep.subr.mxu0 0.0
    %2323 = vmatpush1.xpose.msra.mxu0 0.0
    %2324 = vmatprep.subr.mxu0 0.0
    %2325 = vmatpush1.xpose.msra.mxu0 0.0
    %2326 = vmatprep.subr.mxu0 0.0
    %2327 = vmatpush1.xpose.msra.mxu0 0.0
    %2328 = vmatprep.subr.mxu0 0.0
    %2329 = vmatpush1.xpose.msra.mxu0 0.0
    %2330 = vmatprep.subr.mxu0 0.0
    %2331 = vmatpush1.xpose.msra.mxu0 0.0
    %2332 = vmatprep.subr.mxu0 0.0
    %2333 = vmatpush1.xpose.msra.mxu0 0.0
    %2334 = vmatprep.subr.mxu0 0.0
    %2335 = vmatpush1.xpose.msra.mxu0 0.0
    %2336 = vmatprep.subr.mxu0 0.0
    %2337 = vmatpush1.xpose.msra.mxu0 0.0
    %2338 = vmatprep.subr.mxu0 0.0
    %2339 = vmatpush1.xpose.msra.mxu0 0.0
    %2340 = vmatprep.subr.mxu0 0.0
    %2341 = vmatpush1.xpose.msra.mxu0 0.0
    %2342 = vmatprep.subr.mxu0 0.0
    %2343 = vmatpush1.xpose.msra.mxu0 0.0
    %2344 = vmatprep.subr.mxu0 0.0
    %2345 = vmatpush1.xpose.msra.mxu0 0.0
    %2346 = vmatprep.subr.mxu0 0.0
    %2347 = vmatpush1.xpose.msra.mxu0 0.0
    %2348 = vmatprep.subr.mxu0 0.0
    %2349 = vmatpush1.xpose.msra.mxu0 %v2316
    %2350 = vmatprep.subr.mxu0 0.0
    %2351 = vmatpush2.xpose.msra.mxu0 0.0
    %2352 = vmatprep.subr.mxu0 0.0
    %2353 = vmatpush2.xpose.msra.mxu0 0.0
    %2354 = vmatprep.subr.mxu0 0.0
    %2355 = vmatpush2.xpose.msra.mxu0 0.0
    %2356 = vmatprep.subr.mxu0 0.0
    %2357 = vmatpush2.xpose.msra.mxu0 0.0
    %2358 = vmatprep.subr.mxu0 0.0
    %2359 = vmatpush2.xpose.msra.mxu0 0.0
    %2360 = vmatprep.subr.mxu0 0.0
    %2361 = vmatpush2.xpose.msra.mxu0 0.0
    %2362 = vmatprep.subr.mxu0 0.0
    %2363 = vmatpush2.xpose.msra.mxu0 0.0
    %2364 = vmatprep.subr.mxu0 0.0
    %2365 = vmatpush2.xpose.msra.mxu0 0.0
    %2366 = vmatprep.subr.mxu0 0.0
    %2367 = vmatpush2.xpose.msra.mxu0 0.0
    %2368 = vmatprep.subr.mxu0 0.0
    %2369 = vmatpush2.xpose.msra.mxu0 0.0
    %2370 = vmatprep.subr.mxu0 0.0
    %2371 = vmatpush2.xpose.msra.mxu0 0.0
    %2372 = vmatprep.subr.mxu0 0.0
    %2373 = vmatpush2.xpose.msra.mxu0 0.0
    %2374 = vmatprep.subr.mxu0 0.0
    %2375 = vmatpush2.xpose.msra.mxu0 0.0
    %2376 = vmatprep.subr.mxu0 0.0
    %2377 = vmatpush2.xpose.msra.mxu0 0.0
    %2378 = vmatprep.subr.mxu0 0.0
    %2379 = vmatpush2.xpose.msra.mxu0 0.0
    %2380 = vmatprep.subr.mxu0 0.0
    %2381 = vmatpush2.xpose.msra.mxu0 0.0
    %2382 = vmatprep.mubr.f32.mxu0 0.0
    %2383 = vmatmul.mubr.f32.gmra.mxu0 %v2314
    %v2384 = vpop.f32.mrf.mxu0
    %v2385 = vadd.f32 %v161, %v2384
    %v2386 = vpop.f32.mrf.mxu0
    %2387 = vdwg.mxu0
    %2388 = vrot.lane.b32.xlu0 %v1979, 120
    %v2389 = vpop.permute.xlu0 %2388
    %2390 = vrot.lane.b32.xlu0 %v1979, 88
    %v2391 = vpop.permute.xlu0 %2390
    %v2392 = vsel %vm171, %v2389, 0
    %v2394 = vsel %vm171, %v2391, 0
    %2396 = vmatprep.subr.mxu0 0.0
    %2397 = vmatpush1.xpose.msra.mxu0 0.0
    %2398 = vmatprep.subr.mxu0 0.0
    %2399 = vmatpush1.xpose.msra.mxu0 0.0
    %2400 = vmatprep.subr.mxu0 0.0
    %2401 = vmatpush1.xpose.msra.mxu0 0.0
    %2402 = vmatprep.subr.mxu0 0.0
    %2403 = vmatpush1.xpose.msra.mxu0 0.0
    %2404 = vmatprep.subr.mxu0 0.0
    %2405 = vmatpush1.xpose.msra.mxu0 0.0
    %2406 = vmatprep.subr.mxu0 0.0
    %2407 = vmatpush1.xpose.msra.mxu0 0.0
    %2408 = vmatprep.subr.mxu0 0.0
    %2409 = vmatpush1.xpose.msra.mxu0 0.0
    %2410 = vmatprep.subr.mxu0 0.0
    %2411 = vmatpush1.xpose.msra.mxu0 0.0
    %2412 = vmatprep.subr.mxu0 0.0
    %2413 = vmatpush1.xpose.msra.mxu0 0.0
    %2414 = vmatprep.subr.mxu0 0.0
    %2415 = vmatpush1.xpose.msra.mxu0 0.0
    %2416 = vmatprep.subr.mxu0 0.0
    %2417 = vmatpush1.xpose.msra.mxu0 0.0
    %2418 = vmatprep.subr.mxu0 0.0
    %2419 = vmatpush1.xpose.msra.mxu0 0.0
    %2420 = vmatprep.subr.mxu0 0.0
    %2421 = vmatpush1.xpose.msra.mxu0 0.0
    %2422 = vmatprep.subr.mxu0 0.0
    %2423 = vmatpush1.xpose.msra.mxu0 0.0
    %2424 = vmatprep.subr.mxu0 0.0
    %2425 = vmatpush1.xpose.msra.mxu0 0.0
    %2426 = vmatprep.subr.mxu0 0.0
    %2427 = vmatpush1.xpose.msra.mxu0 %v2394
    %2428 = vmatprep.subr.mxu0 0.0
    %2429 = vmatpush2.xpose.msra.mxu0 0.0
    %2430 = vmatprep.subr.mxu0 0.0
    %2431 = vmatpush2.xpose.msra.mxu0 0.0
    %2432 = vmatprep.subr.mxu0 0.0
    %2433 = vmatpush2.xpose.msra.mxu0 0.0
    %2434 = vmatprep.subr.mxu0 0.0
    %2435 = vmatpush2.xpose.msra.mxu0 0.0
    %2436 = vmatprep.subr.mxu0 0.0
    %2437 = vmatpush2.xpose.msra.mxu0 0.0
    %2438 = vmatprep.subr.mxu0 0.0
    %2439 = vmatpush2.xpose.msra.mxu0 0.0
    %2440 = vmatprep.subr.mxu0 0.0
    %2441 = vmatpush2.xpose.msra.mxu0 0.0
    %2442 = vmatprep.subr.mxu0 0.0
    %2443 = vmatpush2.xpose.msra.mxu0 0.0
    %2444 = vmatprep.subr.mxu0 0.0
    %2445 = vmatpush2.xpose.msra.mxu0 0.0
    %2446 = vmatprep.subr.mxu0 0.0
    %2447 = vmatpush2.xpose.msra.mxu0 0.0
    %2448 = vmatprep.subr.mxu0 0.0
    %2449 = vmatpush2.xpose.msra.mxu0 0.0
    %2450 = vmatprep.subr.mxu0 0.0
    %2451 = vmatpush2.xpose.msra.mxu0 0.0
    %2452 = vmatprep.subr.mxu0 0.0
    %2453 = vmatpush2.xpose.msra.mxu0 0.0
    %2454 = vmatprep.subr.mxu0 0.0
    %2455 = vmatpush2.xpose.msra.mxu0 0.0
    %2456 = vmatprep.subr.mxu0 0.0
    %2457 = vmatpush2.xpose.msra.mxu0 0.0
    %2458 = vmatprep.subr.mxu0 0.0
    %2459 = vmatpush2.xpose.msra.mxu0 0.0
    %2460 = vmatprep.mubr.f32.mxu0 0.0
    %2461 = vmatmul.mubr.f32.gmra.mxu0 %v2392
    %v2462 = vpop.f32.mrf.mxu0
    %v2463 = vadd.f32 %v165, %v2462
    %v2464 = vpop.f32.mrf.mxu0
    %2465 = vdwg.mxu0
    %v2466 = vsel %vm171, %v2385, -inf
    %2467 = vmax.xlane.f32.xlu0 %v2466
    %v2468 = vpop.xlane.xlu0 %2467
    %v2469 = vsel %vm171, %v2463, -inf
    %2470 = vmax.xlane.f32.xlu0 %v2469
    %v2471 = vpop.xlane.xlu0 %2470
    %v2472 = vsub.f32 %v2385, %v2468
    %v2473 = vsub.f32 %v2463, %v2471
    %v2474 = vmul.f32 %v2472, 1.442695
    %v2475 = vpow.pop %v2474
    %v2476 = vmul.f32 %v2473, 1.442695
    %v2477 = vpow.pop %v2476
    %v2478 = vsel %vm171, %v2475, 0.0
    %2479 = vadd.xlane.f32.xlu0 %v2478
    %v2480 = vpop.xlane.xlu0 %2479
    %v2481 = vsel %vm171, %v2477, 0.0
    %2482 = vadd.xlane.f32.xlu0 %v2481
    %v2483 = vpop.xlane.xlu0 %2482
    %v2484 = vrcp.pop %v2480
    %v2485 = vrcp.pop %v2483
    %v2486 = vmul.f32 %v2475, %v2484
    %v2487 = vmul.f32 %v2477, %v2485
    %2488 = vrot.lane.b32.xlu0 %v1974, 56
    %v2489 = vpop.permute.xlu0 %2488
    %v2492 = vsel %vm171, %v2486, 0
    %2494 = vmatprep.subr.mxu0 0.0
    %2495 = vmatpush1.msra.mxu0 0.0
    %2496 = vmatprep.subr.mxu0 0.0
    %2497 = vmatpush1.msra.mxu0 0.0
    %2498 = vmatprep.subr.mxu0 0.0
    %2499 = vmatpush1.msra.mxu0 0.0
    %2500 = vmatprep.subr.mxu0 0.0
    %2501 = vmatpush1.msra.mxu0 0.0
    %2502 = vmatprep.subr.mxu0 0.0
    %2503 = vmatpush1.msra.mxu0 0.0
    %2504 = vmatprep.subr.mxu0 0.0
    %2505 = vmatpush1.msra.mxu0 0.0
    %2506 = vmatprep.subr.mxu0 0.0
    %2507 = vmatpush1.msra.mxu0 0.0
    %2508 = vmatprep.subr.mxu0 0.0
    %2509 = vmatpush1.msra.mxu0 0.0
    %2510 = vmatprep.subr.mxu0 0.0
    %2511 = vmatpush1.msra.mxu0 0.0
    %2512 = vmatprep.subr.mxu0 0.0
    %2513 = vmatpush1.msra.mxu0 0.0
    %2514 = vmatprep.subr.mxu0 0.0
    %2515 = vmatpush1.msra.mxu0 0.0
    %2516 = vmatprep.subr.mxu0 0.0
    %2517 = vmatpush1.msra.mxu0 0.0
    %2518 = vmatprep.subr.mxu0 0.0
    %2519 = vmatpush1.msra.mxu0 0.0
    %2520 = vmatprep.subr.mxu0 0.0
    %2521 = vmatpush1.msra.mxu0 0.0
    %2522 = vmatprep.subr.mxu0 0.0
    %2523 = vmatpush1.msra.mxu0 0.0
    %2524 = vmatprep.subr.mxu0 0.0
    %2525 = vmatpush1.msra.mxu0 %v2489
    %2526 = vmatprep.subr.mxu0 0.0
    %2527 = vmatpush2.msra.mxu0 0.0
    %2528 = vmatprep.subr.mxu0 0.0
    %2529 = vmatpush2.msra.mxu0 0.0
    %2530 = vmatprep.subr.mxu0 0.0
    %2531 = vmatpush2.msra.mxu0 0.0
    %2532 = vmatprep.subr.mxu0 0.0
    %2533 = vmatpush2.msra.mxu0 0.0
    %2534 = vmatprep.subr.mxu0 0.0
    %2535 = vmatpush2.msra.mxu0 0.0
    %2536 = vmatprep.subr.mxu0 0.0
    %2537 = vmatpush2.msra.mxu0 0.0
    %2538 = vmatprep.subr.mxu0 0.0
    %2539 = vmatpush2.msra.mxu0 0.0
    %2540 = vmatprep.subr.mxu0 0.0
    %2541 = vmatpush2.msra.mxu0 0.0
    %2542 = vmatprep.subr.mxu0 0.0
    %2543 = vmatpush2.msra.mxu0 0.0
    %2544 = vmatprep.subr.mxu0 0.0
    %2545 = vmatpush2.msra.mxu0 0.0
    %2546 = vmatprep.subr.mxu0 0.0
    %2547 = vmatpush2.msra.mxu0 0.0
    %2548 = vmatprep.subr.mxu0 0.0
    %2549 = vmatpush2.msra.mxu0 0.0
    %2550 = vmatprep.subr.mxu0 0.0
    %2551 = vmatpush2.msra.mxu0 0.0
    %2552 = vmatprep.subr.mxu0 0.0
    %2553 = vmatpush2.msra.mxu0 0.0
    %2554 = vmatprep.subr.mxu0 0.0
    %2555 = vmatpush2.msra.mxu0 0.0
    %2556 = vmatprep.subr.mxu0 0.0
    %2557 = vmatpush2.msra.mxu0 0.0
    %2558 = vmatprep.mubr.f32.mxu0 0.0
    %2559 = vmatmul.mubr.f32.gmra.mxu0 %v2492
    %v2560 = vpop.f32.mrf.mxu0
    %v2561 = vadd.f32 0.0, %v2560
    %v2562 = vpop.f32.mrf.mxu0
    %2563 = vdwg.mxu0
    %2564 = vrot.lane.b32.xlu0 %v1979, 56
    %v2565 = vpop.permute.xlu0 %2564
    %v2568 = vsel %vm171, %v2487, 0
    %2570 = vmatprep.subr.mxu0 0.0
    %2571 = vmatpush1.msra.mxu0 0.0
    %2572 = vmatprep.subr.mxu0 0.0
    %2573 = vmatpush1.msra.mxu0 0.0
    %2574 = vmatprep.subr.mxu0 0.0
    %2575 = vmatpush1.msra.mxu0 0.0
    %2576 = vmatprep.subr.mxu0 0.0
    %2577 = vmatpush1.msra.mxu0 0.0
    %2578 = vmatprep.subr.mxu0 0.0
    %2579 = vmatpush1.msra.mxu0 0.0
    %2580 = vmatprep.subr.mxu0 0.0
    %2581 = vmatpush1.msra.mxu0 0.0
    %2582 = vmatprep.subr.mxu0 0.0
    %2583 = vmatpush1.msra.mxu0 0.0
    %2584 = vmatprep.subr.mxu0 0.0
    %2585 = vmatpush1.msra.mxu0 0.0
    %2586 = vmatprep.subr.mxu0 0.0
    %2587 = vmatpush1.msra.mxu0 0.0
    %2588 = vmatprep.subr.mxu0 0.0
    %2589 = vmatpush1.msra.mxu0 0.0
    %2590 = vmatprep.subr.mxu0 0.0
    %2591 = vmatpush1.msra.mxu0 0.0
    %2592 = vmatprep.subr.mxu0 0.0
    %2593 = vmatpush1.msra.mxu0 0.0
    %2594 = vmatprep.subr.mxu0 0.0
    %2595 = vmatpush1.msra.mxu0 0.0
    %2596 = vmatprep.subr.mxu0 0.0
    %2597 = vmatpush1.msra.mxu0 0.0
    %2598 = vmatprep.subr.mxu0 0.0
    %2599 = vmatpush1.msra.mxu0 0.0
    %2600 = vmatprep.subr.mxu0 0.0
    %2601 = vmatpush1.msra.mxu0 %v2565
    %2602 = vmatprep.subr.mxu0 0.0
    %2603 = vmatpush2.msra.mxu0 0.0
    %2604 = vmatprep.subr.mxu0 0.0
    %2605 = vmatpush2.msra.mxu0 0.0
    %2606 = vmatprep.subr.mxu0 0.0
    %2607 = vmatpush2.msra.mxu0 0.0
    %2608 = vmatprep.subr.mxu0 0.0
    %2609 = vmatpush2.msra.mxu0 0.0
    %2610 = vmatprep.subr.mxu0 0.0
    %2611 = vmatpush2.msra.mxu0 0.0
    %2612 = vmatprep.subr.mxu0 0.0
    %2613 = vmatpush2.msra.mxu0 0.0
    %2614 = vmatprep.subr.mxu0 0.0
    %2615 = vmatpush2.msra.mxu0 0.0
    %2616 = vmatprep.subr.mxu0 0.0
    %2617 = vmatpush2.msra.mxu0 0.0
    %2618 = vmatprep.subr.mxu0 0.0
    %2619 = vmatpush2.msra.mxu0 0.0
    %2620 = vmatprep.subr.mxu0 0.0
    %2621 = vmatpush2.msra.mxu0 0.0
    %2622 = vmatprep.subr.mxu0 0.0
    %2623 = vmatpush2.msra.mxu0 0.0
    %2624 = vmatprep.subr.mxu0 0.0
    %2625 = vmatpush2.msra.mxu0 0.0
    %2626 = vmatprep.subr.mxu0 0.0
    %2627 = vmatpush2.msra.mxu0 0.0
    %2628 = vmatprep.subr.mxu0 0.0
    %2629 = vmatpush2.msra.mxu0 0.0
    %2630 = vmatprep.subr.mxu0 0.0
    %2631 = vmatpush2.msra.mxu0 0.0
    %2632 = vmatprep.subr.mxu0 0.0
    %2633 = vmatpush2.msra.mxu0 0.0
    %2634 = vmatprep.mubr.f32.mxu0 0.0
    %2635 = vmatmul.mubr.f32.gmra.mxu0 %v2568
    %v2636 = vpop.f32.mrf.mxu0
    %v2637 = vadd.f32 0.0, %v2636
    %v2638 = vpop.f32.mrf.mxu0
    %2639 = vdwg.mxu0
    %2640 = vrot.lane.b32.xlu0 %v1974, 112
    %v2641 = vpop.permute.xlu0 %2640
    %2642 = vrot.lane.b32.xlu0 %v1974, 80
    %v2643 = vpop.permute.xlu0 %2642
    %v2644 = vsel %vm171, %v2641, 0
    %v2646 = vsel %vm171, %v2643, 0
    %2648 = vmatprep.subr.mxu0 0.0
    %2649 = vmatpush1.xpose.msra.mxu0 0.0
    %2650 = vmatprep.subr.mxu0 0.0
    %2651 = vmatpush1.xpose.msra.mxu0 0.0
    %2652 = vmatprep.subr.mxu0 0.0
    %2653 = vmatpush1.xpose.msra.mxu0 0.0
    %2654 = vmatprep.subr.mxu0 0.0
    %2655 = vmatpush1.xpose.msra.mxu0 0.0
    %2656 = vmatprep.subr.mxu0 0.0
    %2657 = vmatpush1.xpose.msra.mxu0 0.0
    %2658 = vmatprep.subr.mxu0 0.0
    %2659 = vmatpush1.xpose.msra.mxu0 0.0
    %2660 = vmatprep.subr.mxu0 0.0
    %2661 = vmatpush1.xpose.msra.mxu0 0.0
    %2662 = vmatprep.subr.mxu0 0.0
    %2663 = vmatpush1.xpose.msra.mxu0 0.0
    %2664 = vmatprep.subr.mxu0 0.0
    %2665 = vmatpush1.xpose.msra.mxu0 0.0
    %2666 = vmatprep.subr.mxu0 0.0
    %2667 = vmatpush1.xpose.msra.mxu0 0.0
    %2668 = vmatprep.subr.mxu0 0.0
    %2669 = vmatpush1.xpose.msra.mxu0 0.0
    %2670 = vmatprep.subr.mxu0 0.0
    %2671 = vmatpush1.xpose.msra.mxu0 0.0
    %2672 = vmatprep.subr.mxu0 0.0
    %2673 = vmatpush1.xpose.msra.mxu0 0.0
    %2674 = vmatprep.subr.mxu0 0.0
    %2675 = vmatpush1.xpose.msra.mxu0 0.0
    %2676 = vmatprep.subr.mxu0 0.0
    %2677 = vmatpush1.xpose.msra.mxu0 0.0
    %2678 = vmatprep.subr.mxu0 0.0
    %2679 = vmatpush1.xpose.msra.mxu0 %v2646
    %2680 = vmatprep.subr.mxu0 0.0
    %2681 = vmatpush2.xpose.msra.mxu0 0.0
    %2682 = vmatprep.subr.mxu0 0.0
    %2683 = vmatpush2.xpose.msra.mxu0 0.0
    %2684 = vmatprep.subr.mxu0 0.0
    %2685 = vmatpush2.xpose.msra.mxu0 0.0
    %2686 = vmatprep.subr.mxu0 0.0
    %2687 = vmatpush2.xpose.msra.mxu0 0.0
    %2688 = vmatprep.subr.mxu0 0.0
    %2689 = vmatpush2.xpose.msra.mxu0 0.0
    %2690 = vmatprep.subr.mxu0 0.0
    %2691 = vmatpush2.xpose.msra.mxu0 0.0
    %2692 = vmatprep.subr.mxu0 0.0
    %2693 = vmatpush2.xpose.msra.mxu0 0.0
    %2694 = vmatprep.subr.mxu0 0.0
    %2695 = vmatpush2.xpose.msra.mxu0 0.0
    %2696 = vmatprep.subr.mxu0 0.0
    %2697 = vmatpush2.xpose.msra.mxu0 0.0
    %2698 = vmatprep.subr.mxu0 0.0
    %2699 = vmatpush2.xpose.msra.mxu0 0.0
    %2700 = vmatprep.subr.mxu0 0.0
    %2701 = vmatpush2.xpose.msra.mxu0 0.0
    %2702 = vmatprep.subr.mxu0 0.0
    %2703 = vmatpush2.xpose.msra.mxu0 0.0
    %2704 = vmatprep.subr.mxu0 0.0
    %2705 = vmatpush2.xpose.msra.mxu0 0.0
    %2706 = vmatprep.subr.mxu0 0.0
    %2707 = vmatpush2.xpose.msra.mxu0 0.0
    %2708 = vmatprep.subr.mxu0 0.0
    %2709 = vmatpush2.xpose.msra.mxu0 0.0
    %2710 = vmatprep.subr.mxu0 0.0
    %2711 = vmatpush2.xpose.msra.mxu0 0.0
    %2712 = vmatprep.mubr.f32.mxu0 0.0
    %2713 = vmatmul.mubr.f32.gmra.mxu0 %v2644
    %v2714 = vpop.f32.mrf.mxu0
    %v2715 = vadd.f32 %v161, %v2714
    %v2716 = vpop.f32.mrf.mxu0
    %2717 = vdwg.mxu0
    %2718 = vrot.lane.b32.xlu0 %v1979, 112
    %v2719 = vpop.permute.xlu0 %2718
    %2720 = vrot.lane.b32.xlu0 %v1979, 80
    %v2721 = vpop.permute.xlu0 %2720
    %v2722 = vsel %vm171, %v2719, 0
    %v2724 = vsel %vm171, %v2721, 0
    %2726 = vmatprep.subr.mxu0 0.0
    %2727 = vmatpush1.xpose.msra.mxu0 0.0
    %2728 = vmatprep.subr.mxu0 0.0
    %2729 = vmatpush1.xpose.msra.mxu0 0.0
    %2730 = vmatprep.subr.mxu0 0.0
    %2731 = vmatpush1.xpose.msra.mxu0 0.0
    %2732 = vmatprep.subr.mxu0 0.0
    %2733 = vmatpush1.xpose.msra.mxu0 0.0
    %2734 = vmatprep.subr.mxu0 0.0
    %2735 = vmatpush1.xpose.msra.mxu0 0.0
    %2736 = vmatprep.subr.mxu0 0.0
    %2737 = vmatpush1.xpose.msra.mxu0 0.0
    %2738 = vmatprep.subr.mxu0 0.0
    %2739 = vmatpush1.xpose.msra.mxu0 0.0
    %2740 = vmatprep.subr.mxu0 0.0
    %2741 = vmatpush1.xpose.msra.mxu0 0.0
    %2742 = vmatprep.subr.mxu0 0.0
    %2743 = vmatpush1.xpose.msra.mxu0 0.0
    %2744 = vmatprep.subr.mxu0 0.0
    %2745 = vmatpush1.xpose.msra.mxu0 0.0
    %2746 = vmatprep.subr.mxu0 0.0
    %2747 = vmatpush1.xpose.msra.mxu0 0.0
    %2748 = vmatprep.subr.mxu0 0.0
    %2749 = vmatpush1.xpose.msra.mxu0 0.0
    %2750 = vmatprep.subr.mxu0 0.0
    %2751 = vmatpush1.xpose.msra.mxu0 0.0
    %2752 = vmatprep.subr.mxu0 0.0
    %2753 = vmatpush1.xpose.msra.mxu0 0.0
    %2754 = vmatprep.subr.mxu0 0.0
    %2755 = vmatpush1.xpose.msra.mxu0 0.0
    %2756 = vmatprep.subr.mxu0 0.0
    %2757 = vmatpush1.xpose.msra.mxu0 %v2724
    %2758 = vmatprep.subr.mxu0 0.0
    %2759 = vmatpush2.xpose.msra.mxu0 0.0
    %2760 = vmatprep.subr.mxu0 0.0
    %2761 = vmatpush2.xpose.msra.mxu0 0.0
    %2762 = vmatprep.subr.mxu0 0.0
    %2763 = vmatpush2.xpose.msra.mxu0 0.0
    %2764 = vmatprep.subr.mxu0 0.0
    %2765 = vmatpush2.xpose.msra.mxu0 0.0
    %2766 = vmatprep.subr.mxu0 0.0
    %2767 = vmatpush2.xpose.msra.mxu0 0.0
    %2768 = vmatprep.subr.mxu0 0.0
    %2769 = vmatpush2.xpose.msra.mxu0 0.0
    %2770 = vmatprep.subr.mxu0 0.0
    %2771 = vmatpush2.xpose.msra.mxu0 0.0
    %2772 = vmatprep.subr.mxu0 0.0
    %2773 = vmatpush2.xpose.msra.mxu0 0.0
    %2774 = vmatprep.subr.mxu0 0.0
    %2775 = vmatpush2.xpose.msra.mxu0 0.0
    %2776 = vmatprep.subr.mxu0 0.0
    %2777 = vmatpush2.xpose.msra.mxu0 0.0
    %2778 = vmatprep.subr.mxu0 0.0
    %2779 = vmatpush2.xpose.msra.mxu0 0.0
    %2780 = vmatprep.subr.mxu0 0.0
    %2781 = vmatpush2.xpose.msra.mxu0 0.0
    %2782 = vmatprep.subr.mxu0 0.0
    %2783 = vmatpush2.xpose.msra.mxu0 0.0
    %2784 = vmatprep.subr.mxu0 0.0
    %2785 = vmatpush2.xpose.msra.mxu0 0.0
    %2786 = vmatprep.subr.mxu0 0.0
    %2787 = vmatpush2.xpose.msra.mxu0 0.0
    %2788 = vmatprep.subr.mxu0 0.0
    %2789 = vmatpush2.xpose.msra.mxu0 0.0
    %2790 = vmatprep.mubr.f32.mxu0 0.0
    %2791 = vmatmul.mubr.f32.gmra.mxu0 %v2722
    %v2792 = vpop.f32.mrf.mxu0
    %v2793 = vadd.f32 %v165, %v2792
    %v2794 = vpop.f32.mrf.mxu0
    %2795 = vdwg.mxu0
    %v2796 = vsel %vm171, %v2715, -inf
    %2797 = vmax.xlane.f32.xlu0 %v2796
    %v2798 = vpop.xlane.xlu0 %2797
    %v2799 = vsel %vm171, %v2793, -inf
    %2800 = vmax.xlane.f32.xlu0 %v2799
    %v2801 = vpop.xlane.xlu0 %2800
    %v2802 = vsub.f32 %v2715, %v2798
    %v2803 = vsub.f32 %v2793, %v2801
    %v2804 = vmul.f32 %v2802, 1.442695
    %v2805 = vpow.pop %v2804
    %v2806 = vmul.f32 %v2803, 1.442695
    %v2807 = vpow.pop %v2806
    %v2808 = vsel %vm171, %v2805, 0.0
    %2809 = vadd.xlane.f32.xlu0 %v2808
    %v2810 = vpop.xlane.xlu0 %2809
    %v2811 = vsel %vm171, %v2807, 0.0
    %2812 = vadd.xlane.f32.xlu0 %v2811
    %v2813 = vpop.xlane.xlu0 %2812
    %v2814 = vrcp.pop %v2810
    %v2815 = vrcp.pop %v2813
    %v2816 = vmul.f32 %v2805, %v2814
    %v2817 = vmul.f32 %v2807, %v2815
    %2818 = vrot.lane.b32.xlu0 %v1974, 48
    %v2819 = vpop.permute.xlu0 %2818
    %v2822 = vsel %vm171, %v2816, 0
    %2824 = vmatprep.subr.mxu0 0.0
    %2825 = vmatpush1.msra.mxu0 0.0
    %2826 = vmatprep.subr.mxu0 0.0
    %2827 = vmatpush1.msra.mxu0 0.0
    %2828 = vmatprep.subr.mxu0 0.0
    %2829 = vmatpush1.msra.mxu0 0.0
    %2830 = vmatprep.subr.mxu0 0.0
    %2831 = vmatpush1.msra.mxu0 0.0
    %2832 = vmatprep.subr.mxu0 0.0
    %2833 = vmatpush1.msra.mxu0 0.0
    %2834 = vmatprep.subr.mxu0 0.0
    %2835 = vmatpush1.msra.mxu0 0.0
    %2836 = vmatprep.subr.mxu0 0.0
    %2837 = vmatpush1.msra.mxu0 0.0
    %2838 = vmatprep.subr.mxu0 0.0
    %2839 = vmatpush1.msra.mxu0 0.0
    %2840 = vmatprep.subr.mxu0 0.0
    %2841 = vmatpush1.msra.mxu0 0.0
    %2842 = vmatprep.subr.mxu0 0.0
    %2843 = vmatpush1.msra.mxu0 0.0
    %2844 = vmatprep.subr.mxu0 0.0
    %2845 = vmatpush1.msra.mxu0 0.0
    %2846 = vmatprep.subr.mxu0 0.0
    %2847 = vmatpush1.msra.mxu0 0.0
    %2848 = vmatprep.subr.mxu0 0.0
    %2849 = vmatpush1.msra.mxu0 0.0
    %2850 = vmatprep.subr.mxu0 0.0
    %2851 = vmatpush1.msra.mxu0 0.0
    %2852 = vmatprep.subr.mxu0 0.0
    %2853 = vmatpush1.msra.mxu0 0.0
    %2854 = vmatprep.subr.mxu0 0.0
    %2855 = vmatpush1.msra.mxu0 %v2819
    %2856 = vmatprep.subr.mxu0 0.0
    %2857 = vmatpush2.msra.mxu0 0.0
    %2858 = vmatprep.subr.mxu0 0.0
    %2859 = vmatpush2.msra.mxu0 0.0
    %2860 = vmatprep.subr.mxu0 0.0
    %2861 = vmatpush2.msra.mxu0 0.0
    %2862 = vmatprep.subr.mxu0 0.0
    %2863 = vmatpush2.msra.mxu0 0.0
    %2864 = vmatprep.subr.mxu0 0.0
    %2865 = vmatpush2.msra.mxu0 0.0
    %2866 = vmatprep.subr.mxu0 0.0
    %2867 = vmatpush2.msra.mxu0 0.0
    %2868 = vmatprep.subr.mxu0 0.0
    %2869 = vmatpush2.msra.mxu0 0.0
    %2870 = vmatprep.subr.mxu0 0.0
    %2871 = vmatpush2.msra.mxu0 0.0
    %2872 = vmatprep.subr.mxu0 0.0
    %2873 = vmatpush2.msra.mxu0 0.0
    %2874 = vmatprep.subr.mxu0 0.0
    %2875 = vmatpush2.msra.mxu0 0.0
    %2876 = vmatprep.subr.mxu0 0.0
    %2877 = vmatpush2.msra.mxu0 0.0
    %2878 = vmatprep.subr.mxu0 0.0
    %2879 = vmatpush2.msra.mxu0 0.0
    %2880 = vmatprep.subr.mxu0 0.0
    %2881 = vmatpush2.msra.mxu0 0.0
    %2882 = vmatprep.subr.mxu0 0.0
    %2883 = vmatpush2.msra.mxu0 0.0
    %2884 = vmatprep.subr.mxu0 0.0
    %2885 = vmatpush2.msra.mxu0 0.0
    %2886 = vmatprep.subr.mxu0 0.0
    %2887 = vmatpush2.msra.mxu0 0.0
    %2888 = vmatprep.mubr.f32.mxu0 0.0
    %2889 = vmatmul.mubr.f32.gmra.mxu0 %v2822
    %v2890 = vpop.f32.mrf.mxu0
    %v2891 = vadd.f32 0.0, %v2890
    %v2892 = vpop.f32.mrf.mxu0
    %2893 = vdwg.mxu0
    %2894 = vrot.lane.b32.xlu0 %v1979, 48
    %v2895 = vpop.permute.xlu0 %2894
    %v2898 = vsel %vm171, %v2817, 0
    %2900 = vmatprep.subr.mxu0 0.0
    %2901 = vmatpush1.msra.mxu0 0.0
    %2902 = vmatprep.subr.mxu0 0.0
    %2903 = vmatpush1.msra.mxu0 0.0
    %2904 = vmatprep.subr.mxu0 0.0
    %2905 = vmatpush1.msra.mxu0 0.0
    %2906 = vmatprep.subr.mxu0 0.0
    %2907 = vmatpush1.msra.mxu0 0.0
    %2908 = vmatprep.subr.mxu0 0.0
    %2909 = vmatpush1.msra.mxu0 0.0
    %2910 = vmatprep.subr.mxu0 0.0
    %2911 = vmatpush1.msra.mxu0 0.0
    %2912 = vmatprep.subr.mxu0 0.0
    %2913 = vmatpush1.msra.mxu0 0.0
    %2914 = vmatprep.subr.mxu0 0.0
    %2915 = vmatpush1.msra.mxu0 0.0
    %2916 = vmatprep.subr.mxu0 0.0
    %2917 = vmatpush1.msra.mxu0 0.0
    %2918 = vmatprep.subr.mxu0 0.0
    %2919 = vmatpush1.msra.mxu0 0.0
    %2920 = vmatprep.subr.mxu0 0.0
    %2921 = vmatpush1.msra.mxu0 0.0
    %2922 = vmatprep.subr.mxu0 0.0
    %2923 = vmatpush1.msra.mxu0 0.0
    %2924 = vmatprep.subr.mxu0 0.0
    %2925 = vmatpush1.msra.mxu0 0.0
    %2926 = vmatprep.subr.mxu0 0.0
    %2927 = vmatpush1.msra.mxu0 0.0
    %2928 = vmatprep.subr.mxu0 0.0
    %2929 = vmatpush1.msra.mxu0 0.0
    %2930 = vmatprep.subr.mxu0 0.0
    %2931 = vmatpush1.msra.mxu0 %v2895
    %2932 = vmatprep.subr.mxu0 0.0
    %2933 = vmatpush2.msra.mxu0 0.0
    %2934 = vmatprep.subr.mxu0 0.0
    %2935 = vmatpush2.msra.mxu0 0.0
    %2936 = vmatprep.subr.mxu0 0.0
    %2937 = vmatpush2.msra.mxu0 0.0
    %2938 = vmatprep.subr.mxu0 0.0
    %2939 = vmatpush2.msra.mxu0 0.0
    %2940 = vmatprep.subr.mxu0 0.0
    %2941 = vmatpush2.msra.mxu0 0.0
    %2942 = vmatprep.subr.mxu0 0.0
    %2943 = vmatpush2.msra.mxu0 0.0
    %2944 = vmatprep.subr.mxu0 0.0
    %2945 = vmatpush2.msra.mxu0 0.0
    %2946 = vmatprep.subr.mxu0 0.0
    %2947 = vmatpush2.msra.mxu0 0.0
    %2948 = vmatprep.subr.mxu0 0.0
    %2949 = vmatpush2.msra.mxu0 0.0
    %2950 = vmatprep.subr.mxu0 0.0
    %2951 = vmatpush2.msra.mxu0 0.0
    %2952 = vmatprep.subr.mxu0 0.0
    %2953 = vmatpush2.msra.mxu0 0.0
    %2954 = vmatprep.subr.mxu0 0.0
    %2955 = vmatpush2.msra.mxu0 0.0
    %2956 = vmatprep.subr.mxu0 0.0
    %2957 = vmatpush2.msra.mxu0 0.0
    %2958 = vmatprep.subr.mxu0 0.0
    %2959 = vmatpush2.msra.mxu0 0.0
    %2960 = vmatprep.subr.mxu0 0.0
    %2961 = vmatpush2.msra.mxu0 0.0
    %2962 = vmatprep.subr.mxu0 0.0
    %2963 = vmatpush2.msra.mxu0 0.0
    %2964 = vmatprep.mubr.f32.mxu0 0.0
    %2965 = vmatmul.mubr.f32.gmra.mxu0 %v2898
    %v2966 = vpop.f32.mrf.mxu0
    %v2967 = vadd.f32 0.0, %v2966
    %v2968 = vpop.f32.mrf.mxu0
    %2969 = vdwg.mxu0
    %2970 = vrot.lane.b32.xlu0 %v1974, 104
    %v2971 = vpop.permute.xlu0 %2970
    %2972 = vrot.lane.b32.xlu0 %v1974, 72
    %v2973 = vpop.permute.xlu0 %2972
    %v2974 = vsel %vm171, %v2971, 0
    %v2976 = vsel %vm171, %v2973, 0
    %2978 = vmatprep.subr.mxu0 0.0
    %2979 = vmatpush1.xpose.msra.mxu0 0.0
    %2980 = vmatprep.subr.mxu0 0.0
    %2981 = vmatpush1.xpose.msra.mxu0 0.0
    %2982 = vmatprep.subr.mxu0 0.0
    %2983 = vmatpush1.xpose.msra.mxu0 0.0
    %2984 = vmatprep.subr.mxu0 0.0
    %2985 = vmatpush1.xpose.msra.mxu0 0.0
    %2986 = vmatprep.subr.mxu0 0.0
    %2987 = vmatpush1.xpose.msra.mxu0 0.0
    %2988 = vmatprep.subr.mxu0 0.0
    %2989 = vmatpush1.xpose.msra.mxu0 0.0
    %2990 = vmatprep.subr.mxu0 0.0
    %2991 = vmatpush1.xpose.msra.mxu0 0.0
    %2992 = vmatprep.subr.mxu0 0.0
    %2993 = vmatpush1.xpose.msra.mxu0 0.0
    %2994 = vmatprep.subr.mxu0 0.0
    %2995 = vmatpush1.xpose.msra.mxu0 0.0
    %2996 = vmatprep.subr.mxu0 0.0
    %2997 = vmatpush1.xpose.msra.mxu0 0.0
    %2998 = vmatprep.subr.mxu0 0.0
    %2999 = vmatpush1.xpose.msra.mxu0 0.0
    %3000 = vmatprep.subr.mxu0 0.0
    %3001 = vmatpush1.xpose.msra.mxu0 0.0
    %3002 = vmatprep.subr.mxu0 0.0
    %3003 = vmatpush1.xpose.msra.mxu0 0.0
    %3004 = vmatprep.subr.mxu0 0.0
    %3005 = vmatpush1.xpose.msra.mxu0 0.0
    %3006 = vmatprep.subr.mxu0 0.0
    %3007 = vmatpush1.xpose.msra.mxu0 0.0
    %3008 = vmatprep.subr.mxu0 0.0
    %3009 = vmatpush1.xpose.msra.mxu0 %v2976
    %3010 = vmatprep.subr.mxu0 0.0
    %3011 = vmatpush2.xpose.msra.mxu0 0.0
    %3012 = vmatprep.subr.mxu0 0.0
    %3013 = vmatpush2.xpose.msra.mxu0 0.0
    %3014 = vmatprep.subr.mxu0 0.0
    %3015 = vmatpush2.xpose.msra.mxu0 0.0
    %3016 = vmatprep.subr.mxu0 0.0
    %3017 = vmatpush2.xpose.msra.mxu0 0.0
    %3018 = vmatprep.subr.mxu0 0.0
    %3019 = vmatpush2.xpose.msra.mxu0 0.0
    %3020 = vmatprep.subr.mxu0 0.0
    %3021 = vmatpush2.xpose.msra.mxu0 0.0
    %3022 = vmatprep.subr.mxu0 0.0
    %3023 = vmatpush2.xpose.msra.mxu0 0.0
    %3024 = vmatprep.subr.mxu0 0.0
    %3025 = vmatpush2.xpose.msra.mxu0 0.0
    %3026 = vmatprep.subr.mxu0 0.0
    %3027 = vmatpush2.xpose.msra.mxu0 0.0
    %3028 = vmatprep.subr.mxu0 0.0
    %3029 = vmatpush2.xpose.msra.mxu0 0.0
    %3030 = vmatprep.subr.mxu0 0.0
    %3031 = vmatpush2.xpose.msra.mxu0 0.0
    %3032 = vmatprep.subr.mxu0 0.0
    %3033 = vmatpush2.xpose.msra.mxu0 0.0
    %3034 = vmatprep.subr.mxu0 0.0
    %3035 = vmatpush2.xpose.msra.mxu0 0.0
    %3036 = vmatprep.subr.mxu0 0.0
    %3037 = vmatpush2.xpose.msra.mxu0 0.0
    %3038 = vmatprep.subr.mxu0 0.0
    %3039 = vmatpush2.xpose.msra.mxu0 0.0
    %3040 = vmatprep.subr.mxu0 0.0
    %3041 = vmatpush2.xpose.msra.mxu0 0.0
    %3042 = vmatprep.mubr.f32.mxu0 0.0
    %3043 = vmatmul.mubr.f32.gmra.mxu0 %v2974
    %v3044 = vpop.f32.mrf.mxu0
    %v3045 = vadd.f32 %v161, %v3044
    %v3046 = vpop.f32.mrf.mxu0
    %3047 = vdwg.mxu0
    %3048 = vrot.lane.b32.xlu0 %v1979, 104
    %v3049 = vpop.permute.xlu0 %3048
    %3050 = vrot.lane.b32.xlu0 %v1979, 72
    %v3051 = vpop.permute.xlu0 %3050
    %v3052 = vsel %vm171, %v3049, 0
    %v3054 = vsel %vm171, %v3051, 0
    %3056 = vmatprep.subr.mxu0 0.0
    %3057 = vmatpush1.xpose.msra.mxu0 0.0
    %3058 = vmatprep.subr.mxu0 0.0
    %3059 = vmatpush1.xpose.msra.mxu0 0.0
    %3060 = vmatprep.subr.mxu0 0.0
    %3061 = vmatpush1.xpose.msra.mxu0 0.0
    %3062 = vmatprep.subr.mxu0 0.0
    %3063 = vmatpush1.xpose.msra.mxu0 0.0
    %3064 = vmatprep.subr.mxu0 0.0
    %3065 = vmatpush1.xpose.msra.mxu0 0.0
    %3066 = vmatprep.subr.mxu0 0.0
    %3067 = vmatpush1.xpose.msra.mxu0 0.0
    %3068 = vmatprep.subr.mxu0 0.0
    %3069 = vmatpush1.xpose.msra.mxu0 0.0
    %3070 = vmatprep.subr.mxu0 0.0
    %3071 = vmatpush1.xpose.msra.mxu0 0.0
    %3072 = vmatprep.subr.mxu0 0.0
    %3073 = vmatpush1.xpose.msra.mxu0 0.0
    %3074 = vmatprep.subr.mxu0 0.0
    %3075 = vmatpush1.xpose.msra.mxu0 0.0
    %3076 = vmatprep.subr.mxu0 0.0
    %3077 = vmatpush1.xpose.msra.mxu0 0.0
    %3078 = vmatprep.subr.mxu0 0.0
    %3079 = vmatpush1.xpose.msra.mxu0 0.0
    %3080 = vmatprep.subr.mxu0 0.0
    %3081 = vmatpush1.xpose.msra.mxu0 0.0
    %3082 = vmatprep.subr.mxu0 0.0
    %3083 = vmatpush1.xpose.msra.mxu0 0.0
    %3084 = vmatprep.subr.mxu0 0.0
    %3085 = vmatpush1.xpose.msra.mxu0 0.0
    %3086 = vmatprep.subr.mxu0 0.0
    %3087 = vmatpush1.xpose.msra.mxu0 %v3054
    %3088 = vmatprep.subr.mxu0 0.0
    %3089 = vmatpush2.xpose.msra.mxu0 0.0
    %3090 = vmatprep.subr.mxu0 0.0
    %3091 = vmatpush2.xpose.msra.mxu0 0.0
    %3092 = vmatprep.subr.mxu0 0.0
    %3093 = vmatpush2.xpose.msra.mxu0 0.0
    %3094 = vmatprep.subr.mxu0 0.0
    %3095 = vmatpush2.xpose.msra.mxu0 0.0
    %3096 = vmatprep.subr.mxu0 0.0
    %3097 = vmatpush2.xpose.msra.mxu0 0.0
    %3098 = vmatprep.subr.mxu0 0.0
    %3099 = vmatpush2.xpose.msra.mxu0 0.0
    %3100 = vmatprep.subr.mxu0 0.0
    %3101 = vmatpush2.xpose.msra.mxu0 0.0
    %3102 = vmatprep.subr.mxu0 0.0
    %3103 = vmatpush2.xpose.msra.mxu0 0.0
    %3104 = vmatprep.subr.mxu0 0.0
    %3105 = vmatpush2.xpose.msra.mxu0 0.0
    %3106 = vmatprep.subr.mxu0 0.0
    %3107 = vmatpush2.xpose.msra.mxu0 0.0
    %3108 = vmatprep.subr.mxu0 0.0
    %3109 = vmatpush2.xpose.msra.mxu0 0.0
    %3110 = vmatprep.subr.mxu0 0.0
    %3111 = vmatpush2.xpose.msra.mxu0 0.0
    %3112 = vmatprep.subr.mxu0 0.0
    %3113 = vmatpush2.xpose.msra.mxu0 0.0
    %3114 = vmatprep.subr.mxu0 0.0
    %3115 = vmatpush2.xpose.msra.mxu0 0.0
    %3116 = vmatprep.subr.mxu0 0.0
    %3117 = vmatpush2.xpose.msra.mxu0 0.0
    %3118 = vmatprep.subr.mxu0 0.0
    %3119 = vmatpush2.xpose.msra.mxu0 0.0
    %3120 = vmatprep.mubr.f32.mxu0 0.0
    %3121 = vmatmul.mubr.f32.gmra.mxu0 %v3052
    %v3122 = vpop.f32.mrf.mxu0
    %v3123 = vadd.f32 %v165, %v3122
    %v3124 = vpop.f32.mrf.mxu0
    %3125 = vdwg.mxu0
    %v3126 = vsel %vm171, %v3045, -inf
    %3127 = vmax.xlane.f32.xlu0 %v3126
    %v3128 = vpop.xlane.xlu0 %3127
    %v3129 = vsel %vm171, %v3123, -inf
    %3130 = vmax.xlane.f32.xlu0 %v3129
    %v3131 = vpop.xlane.xlu0 %3130
    %v3132 = vsub.f32 %v3045, %v3128
    %v3133 = vsub.f32 %v3123, %v3131
    %v3134 = vmul.f32 %v3132, 1.442695
    %v3135 = vpow.pop %v3134
    %v3136 = vmul.f32 %v3133, 1.442695
    %v3137 = vpow.pop %v3136
    %v3138 = vsel %vm171, %v3135, 0.0
    %3139 = vadd.xlane.f32.xlu0 %v3138
    %v3140 = vpop.xlane.xlu0 %3139
    %v3141 = vsel %vm171, %v3137, 0.0
    %3142 = vadd.xlane.f32.xlu0 %v3141
    %v3143 = vpop.xlane.xlu0 %3142
    %v3144 = vrcp.pop %v3140
    %v3145 = vrcp.pop %v3143
    %v3146 = vmul.f32 %v3135, %v3144
    %v3147 = vmul.f32 %v3137, %v3145
    %3148 = vrot.lane.b32.xlu0 %v1974, 40
    %v3149 = vpop.permute.xlu0 %3148
    %v3152 = vsel %vm171, %v3146, 0
    %3154 = vmatprep.subr.mxu0 0.0
    %3155 = vmatpush1.msra.mxu0 0.0
    %3156 = vmatprep.subr.mxu0 0.0
    %3157 = vmatpush1.msra.mxu0 0.0
    %3158 = vmatprep.subr.mxu0 0.0
    %3159 = vmatpush1.msra.mxu0 0.0
    %3160 = vmatprep.subr.mxu0 0.0
    %3161 = vmatpush1.msra.mxu0 0.0
    %3162 = vmatprep.subr.mxu0 0.0
    %3163 = vmatpush1.msra.mxu0 0.0
    %3164 = vmatprep.subr.mxu0 0.0
    %3165 = vmatpush1.msra.mxu0 0.0
    %3166 = vmatprep.subr.mxu0 0.0
    %3167 = vmatpush1.msra.mxu0 0.0
    %3168 = vmatprep.subr.mxu0 0.0
    %3169 = vmatpush1.msra.mxu0 0.0
    %3170 = vmatprep.subr.mxu0 0.0
    %3171 = vmatpush1.msra.mxu0 0.0
    %3172 = vmatprep.subr.mxu0 0.0
    %3173 = vmatpush1.msra.mxu0 0.0
    %3174 = vmatprep.subr.mxu0 0.0
    %3175 = vmatpush1.msra.mxu0 0.0
    %3176 = vmatprep.subr.mxu0 0.0
    %3177 = vmatpush1.msra.mxu0 0.0
    %3178 = vmatprep.subr.mxu0 0.0
    %3179 = vmatpush1.msra.mxu0 0.0
    %3180 = vmatprep.subr.mxu0 0.0
    %3181 = vmatpush1.msra.mxu0 0.0
    %3182 = vmatprep.subr.mxu0 0.0
    %3183 = vmatpush1.msra.mxu0 0.0
    %3184 = vmatprep.subr.mxu0 0.0
    %3185 = vmatpush1.msra.mxu0 %v3149
    %3186 = vmatprep.subr.mxu0 0.0
    %3187 = vmatpush2.msra.mxu0 0.0
    %3188 = vmatprep.subr.mxu0 0.0
    %3189 = vmatpush2.msra.mxu0 0.0
    %3190 = vmatprep.subr.mxu0 0.0
    %3191 = vmatpush2.msra.mxu0 0.0
    %3192 = vmatprep.subr.mxu0 0.0
    %3193 = vmatpush2.msra.mxu0 0.0
    %3194 = vmatprep.subr.mxu0 0.0
    %3195 = vmatpush2.msra.mxu0 0.0
    %3196 = vmatprep.subr.mxu0 0.0
    %3197 = vmatpush2.msra.mxu0 0.0
    %3198 = vmatprep.subr.mxu0 0.0
    %3199 = vmatpush2.msra.mxu0 0.0
    %3200 = vmatprep.subr.mxu0 0.0
    %3201 = vmatpush2.msra.mxu0 0.0
    %3202 = vmatprep.subr.mxu0 0.0
    %3203 = vmatpush2.msra.mxu0 0.0
    %3204 = vmatprep.subr.mxu0 0.0
    %3205 = vmatpush2.msra.mxu0 0.0
    %3206 = vmatprep.subr.mxu0 0.0
    %3207 = vmatpush2.msra.mxu0 0.0
    %3208 = vmatprep.subr.mxu0 0.0
    %3209 = vmatpush2.msra.mxu0 0.0
    %3210 = vmatprep.subr.mxu0 0.0
    %3211 = vmatpush2.msra.mxu0 0.0
    %3212 = vmatprep.subr.mxu0 0.0
    %3213 = vmatpush2.msra.mxu0 0.0
    %3214 = vmatprep.subr.mxu0 0.0
    %3215 = vmatpush2.msra.mxu0 0.0
    %3216 = vmatprep.subr.mxu0 0.0
    %3217 = vmatpush2.msra.mxu0 0.0
    %3218 = vmatprep.mubr.f32.mxu0 0.0
    %3219 = vmatmul.mubr.f32.gmra.mxu0 %v3152
    %v3220 = vpop.f32.mrf.mxu0
    %v3221 = vadd.f32 0.0, %v3220
    %v3222 = vpop.f32.mrf.mxu0
    %3223 = vdwg.mxu0
    %3224 = vrot.lane.b32.xlu0 %v1979, 40
    %v3225 = vpop.permute.xlu0 %3224
    %v3228 = vsel %vm171, %v3147, 0
    %3230 = vmatprep.subr.mxu0 0.0
    %3231 = vmatpush1.msra.mxu0 0.0
    %3232 = vmatprep.subr.mxu0 0.0
    %3233 = vmatpush1.msra.mxu0 0.0
    %3234 = vmatprep.subr.mxu0 0.0
    %3235 = vmatpush1.msra.mxu0 0.0
    %3236 = vmatprep.subr.mxu0 0.0
    %3237 = vmatpush1.msra.mxu0 0.0
    %3238 = vmatprep.subr.mxu0 0.0
    %3239 = vmatpush1.msra.mxu0 0.0
    %3240 = vmatprep.subr.mxu0 0.0
    %3241 = vmatpush1.msra.mxu0 0.0
    %3242 = vmatprep.subr.mxu0 0.0
    %3243 = vmatpush1.msra.mxu0 0.0
    %3244 = vmatprep.subr.mxu0 0.0
    %3245 = vmatpush1.msra.mxu0 0.0
    %3246 = vmatprep.subr.mxu0 0.0
    %3247 = vmatpush1.msra.mxu0 0.0
    %3248 = vmatprep.subr.mxu0 0.0
    %3249 = vmatpush1.msra.mxu0 0.0
    %3250 = vmatprep.subr.mxu0 0.0
    %3251 = vmatpush1.msra.mxu0 0.0
    %3252 = vmatprep.subr.mxu0 0.0
    %3253 = vmatpush1.msra.mxu0 0.0
    %3254 = vmatprep.subr.mxu0 0.0
    %3255 = vmatpush1.msra.mxu0 0.0
    %3256 = vmatprep.subr.mxu0 0.0
    %3257 = vmatpush1.msra.mxu0 0.0
    %3258 = vmatprep.subr.mxu0 0.0
    %3259 = vmatpush1.msra.mxu0 0.0
    %3260 = vmatprep.subr.mxu0 0.0
    %3261 = vmatpush1.msra.mxu0 %v3225
    %3262 = vmatprep.subr.mxu0 0.0
    %3263 = vmatpush2.msra.mxu0 0.0
    %3264 = vmatprep.subr.mxu0 0.0
    %3265 = vmatpush2.msra.mxu0 0.0
    %3266 = vmatprep.subr.mxu0 0.0
    %3267 = vmatpush2.msra.mxu0 0.0
    %3268 = vmatprep.subr.mxu0 0.0
    %3269 = vmatpush2.msra.mxu0 0.0
    %3270 = vmatprep.subr.mxu0 0.0
    %3271 = vmatpush2.msra.mxu0 0.0
    %3272 = vmatprep.subr.mxu0 0.0
    %3273 = vmatpush2.msra.mxu0 0.0
    %3274 = vmatprep.subr.mxu0 0.0
    %3275 = vmatpush2.msra.mxu0 0.0
    %3276 = vmatprep.subr.mxu0 0.0
    %3277 = vmatpush2.msra.mxu0 0.0
    %3278 = vmatprep.subr.mxu0 0.0
    %3279 = vmatpush2.msra.mxu0 0.0
    %3280 = vmatprep.subr.mxu0 0.0
    %3281 = vmatpush2.msra.mxu0 0.0
    %3282 = vmatprep.subr.mxu0 0.0
    %3283 = vmatpush2.msra.mxu0 0.0
    %3284 = vmatprep.subr.mxu0 0.0
    %3285 = vmatpush2.msra.mxu0 0.0
    %3286 = vmatprep.subr.mxu0 0.0
    %3287 = vmatpush2.msra.mxu0 0.0
    %3288 = vmatprep.subr.mxu0 0.0
    %3289 = vmatpush2.msra.mxu0 0.0
    %3290 = vmatprep.subr.mxu0 0.0
    %3291 = vmatpush2.msra.mxu0 0.0
    %3292 = vmatprep.subr.mxu0 0.0
    %3293 = vmatpush2.msra.mxu0 0.0
    %3294 = vmatprep.mubr.f32.mxu0 0.0
    %3295 = vmatmul.mubr.f32.gmra.mxu0 %v3228
    %v3296 = vpop.f32.mrf.mxu0
    %v3297 = vadd.f32 0.0, %v3296
    %v3298 = vpop.f32.mrf.mxu0
    %3299 = vdwg.mxu0
    %3302 = vrot.lane.b32.xlu0 %v2561, 8
    %v3303 = vpop.permute.xlu0 %3302
    %3304 = vrot.lane.b32.xlu0 %v2637, 8
    %v3305 = vpop.permute.xlu0 %3304
    %3310 = vrot.lane.b32.xlu0 %v2891, 16
    %v3311 = vpop.permute.xlu0 %3310
    %3312 = vrot.lane.b32.xlu0 %v2967, 16
    %v3313 = vpop.permute.xlu0 %3312
    %3318 = vrot.lane.b32.xlu0 %v3221, 24
    %v3319 = vpop.permute.xlu0 %3318
    %3320 = vrot.lane.b32.xlu0 %v3297, 24
    %v3321 = vpop.permute.xlu0 %3320
    %v3324 = vsel %vm171, %v2231, %v3303
    %v3325 = vsel %vm171, %v2307, %v3305
    %v3326 = vsel %vm1513, %v3324, %v3311
    %v3327 = vsel %vm1513, %v3325, %v3313
    %v3328 = vsel %vm1516, %v3326, %v3319
    %v3329 = vsel %vm1516, %v3327, %v3321
    %s3330 = scalar_lea.vmem %s4, 32
    %v3331 = vld [vmem:[%s3330] sm:$0xff]
    %v3332 = vld [vmem:[%s3330 + $0x8] sm:$0xff]
    %v3333 = vld [vmem:[%s3330 + $0x10] sm:$0xff]
    %v3334 = vld [vmem:[%s3330 + $0x18] sm:$0xff]
    %v3335 = vlaneseq
    %v3336 = vshrl.u32 %v3335, 7
    %v3337 = vsub.s32 1, %v3336
    %v3338 = vrot.slane %v1891, %v3337
    %v3340 = vsel %vm53, %v3328, 0
    %v3343 = vsel %vm53, %v3329, 0
    %3345 = vmatprep.subr.mxu0 0.0
    %3346 = vmatpush1.msra.mxu0 0.0
    %3347 = vmatprep.subr.mxu0 0.0
    %3348 = vmatpush1.msra.mxu0 0.0
    %3349 = vmatprep.subr.mxu0 0.0
    %3350 = vmatpush1.msra.mxu0 0.0
    %3351 = vmatprep.subr.mxu0 0.0
    %3352 = vmatpush1.msra.mxu0 0.0
    %3353 = vmatprep.subr.mxu0 0.0
    %3354 = vmatpush1.msra.mxu0 0.0
    %3355 = vmatprep.subr.mxu0 0.0
    %3356 = vmatpush1.msra.mxu0 0.0
    %3357 = vmatprep.subr.mxu0 0.0
    %3358 = vmatpush1.msra.mxu0 0.0
    %3359 = vmatprep.subr.mxu0 0.0
    %3360 = vmatpush1.msra.mxu0 0.0
    %3361 = vmatprep.subr.mxu0 0.0
    %3362 = vmatpush1.msra.mxu0 0.0
    %3363 = vmatprep.subr.mxu0 0.0
    %3364 = vmatpush1.msra.mxu0 0.0
    %3365 = vmatprep.subr.mxu0 0.0
    %3366 = vmatpush1.msra.mxu0 0.0
    %3367 = vmatprep.subr.mxu0 0.0
    %3368 = vmatpush1.msra.mxu0 0.0
    %3369 = vmatprep.subr.mxu0 0.0
    %3370 = vmatpush1.msra.mxu0 %v3334
    %3371 = vmatprep.subr.mxu0 0.0
    %3372 = vmatpush1.msra.mxu0 %v3333
    %3373 = vmatprep.subr.mxu0 0.0
    %3374 = vmatpush1.msra.mxu0 %v3332
    %3375 = vmatprep.subr.mxu0 0.0
    %3376 = vmatpush1.msra.mxu0 %v3331
    %3377 = vmatprep.subr.mxu0 0.0
    %3378 = vmatpush2.msra.mxu0 0.0
    %3379 = vmatprep.subr.mxu0 0.0
    %3380 = vmatpush2.msra.mxu0 0.0
    %3381 = vmatprep.subr.mxu0 0.0
    %3382 = vmatpush2.msra.mxu0 0.0
    %3383 = vmatprep.subr.mxu0 0.0
    %3384 = vmatpush2.msra.mxu0 0.0
    %3385 = vmatprep.subr.mxu0 0.0
    %3386 = vmatpush2.msra.mxu0 0.0
    %3387 = vmatprep.subr.mxu0 0.0
    %3388 = vmatpush2.msra.mxu0 0.0
    %3389 = vmatprep.subr.mxu0 0.0
    %3390 = vmatpush2.msra.mxu0 0.0
    %3391 = vmatprep.subr.mxu0 0.0
    %3392 = vmatpush2.msra.mxu0 0.0
    %3393 = vmatprep.subr.mxu0 0.0
    %3394 = vmatpush2.msra.mxu0 0.0
    %3395 = vmatprep.subr.mxu0 0.0
    %3396 = vmatpush2.msra.mxu0 0.0
    %3397 = vmatprep.subr.mxu0 0.0
    %3398 = vmatpush2.msra.mxu0 0.0
    %3399 = vmatprep.subr.mxu0 0.0
    %3400 = vmatpush2.msra.mxu0 0.0
    %3401 = vmatprep.subr.mxu0 0.0
    %3402 = vmatpush2.msra.mxu0 0.0
    %3403 = vmatprep.subr.mxu0 0.0
    %3404 = vmatpush2.msra.mxu0 0.0
    %3405 = vmatprep.subr.mxu0 0.0
    %3406 = vmatpush2.msra.mxu0 0.0
    %3407 = vmatprep.subr.mxu0 0.0
    %3408 = vmatpush2.msra.mxu0 0.0
    %3409 = vmatprep.mubr.f32.mxu0 0.0
    %3410 = vmatmul.mubr.f32.gmra.mxu0 %v3340
    %v3411 = vpop.f32.mrf.mxu0
    %v3412 = vadd.f32 %v3338, %v3411
    %v3413 = vpop.f32.mrf.mxu0
    %3414 = vmatprep.mubr.f32.mxu0 0.0
    %3415 = vmatmul.mubr.f32.gmra.mxu0 %v3343
    %v3416 = vpop.f32.mrf.mxu0
    %v3417 = vadd.f32 %v3338, %v3416
    %v3418 = vpop.f32.mrf.mxu0
    %3419 = vdwg.mxu0
    %v3420 = vadd.f32 %v1888, %v3412
    %v3421 = vadd.f32 %v1889, %v3417
    %v3422 = vsel %vm53, %v3420, 0.0
    %3423 = vadd.xlane.f32.xlu0 %v3422
    %v3424 = vpop.xlane.xlu0 %3423
    %v3425 = vsel %vm53, %v3421, 0.0
    %3426 = vadd.xlane.f32.xlu0 %v3425
    %v3427 = vpop.xlane.xlu0 %3426
    %v3428 = vmul.f32 %v3424, %v1616
    %v3429 = vmul.f32 %v3427, %v1616
    %v3430 = vsub.f32 %v3420, %v3428
    %v3431 = vsub.f32 %v3421, %v3429
    %v3432 = vmul.f32 %v3430, %v3430
    %v3433 = vmul.f32 %v3431, %v3431
    %v3434 = vsel %vm53, %v3432, 0.0
    %3435 = vadd.xlane.f32.xlu0 %v3434
    %v3436 = vpop.xlane.xlu0 %3435
    %v3437 = vsel %vm53, %v3433, 0.0
    %3438 = vadd.xlane.f32.xlu0 %v3437
    %v3439 = vpop.xlane.xlu0 %3438
    %v3440 = vmul.f32 %v3436, %v1616
    %v3441 = vmul.f32 %v3439, %v1616
    %v3442 = vadd.f32 %v3440, 1e-12
    %v3443 = vadd.f32 %v3441, 1e-12
    %v3444 = vrsqrt.pop %v3442
    %v3445 = vrsqrt.pop %v3443
    %v3446 = vmul.f32 %v3430, %v3444
    %v3447 = vmul.f32 %v3431, %v3445
    %v3448 = vlaneseq
    %v3449 = vshrl.u32 %v3448, 7
    %v3450 = vsub.s32 2, %v3449
    %v3451 = vrot.slane %v1891, %v3450
    %v3452 = vmul.f32 %v3446, %v3451
    %v3453 = vmul.f32 %v3447, %v3451
    %v3454 = vlaneseq
    %v3455 = vshrl.u32 %v3454, 7
    %v3456 = vsub.s32 3, %v3455
    %v3457 = vrot.slane %v1891, %v3456
    %v3458 = vadd.f32 %v3452, %v3457
    %v3459 = vadd.f32 %v3453, %v3457
    %s3460 = scalar_lea.vmem %s5, 32
    %v3461 = vld [vmem:[%s3460] sm:$0xff]
    %v3462 = vld [vmem:[%s3460 + $0x8] sm:$0xff]
    %v3463 = vld [vmem:[%s3460 + $0x10] sm:$0xff]
    %v3464 = vld [vmem:[%s3460 + $0x18] sm:$0xff]
    %v3465 = vlaneseq
    %v3466 = vshrl.u32 %v3465, 7
    %v3467 = vsub.s32 4, %v3466
    %v3468 = vrot.slane %v1891, %v3467
    %v3470 = vsel %vm53, %v3458, 0
    %v3473 = vsel %vm53, %v3459, 0
    %3475 = vmatprep.subr.mxu0 0.0
    %3476 = vmatpush1.msra.mxu0 0.0
    %3477 = vmatprep.subr.mxu0 0.0
    %3478 = vmatpush1.msra.mxu0 0.0
    %3479 = vmatprep.subr.mxu0 0.0
    %3480 = vmatpush1.msra.mxu0 0.0
    %3481 = vmatprep.subr.mxu0 0.0
    %3482 = vmatpush1.msra.mxu0 0.0
    %3483 = vmatprep.subr.mxu0 0.0
    %3484 = vmatpush1.msra.mxu0 0.0
    %3485 = vmatprep.subr.mxu0 0.0
    %3486 = vmatpush1.msra.mxu0 0.0
    %3487 = vmatprep.subr.mxu0 0.0
    %3488 = vmatpush1.msra.mxu0 0.0
    %3489 = vmatprep.subr.mxu0 0.0
    %3490 = vmatpush1.msra.mxu0 0.0
    %3491 = vmatprep.subr.mxu0 0.0
    %3492 = vmatpush1.msra.mxu0 0.0
    %3493 = vmatprep.subr.mxu0 0.0
    %3494 = vmatpush1.msra.mxu0 0.0
    %3495 = vmatprep.subr.mxu0 0.0
    %3496 = vmatpush1.msra.mxu0 0.0
    %3497 = vmatprep.subr.mxu0 0.0
    %3498 = vmatpush1.msra.mxu0 0.0
    %3499 = vmatprep.subr.mxu0 0.0
    %3500 = vmatpush1.msra.mxu0 %v3464
    %3501 = vmatprep.subr.mxu0 0.0
    %3502 = vmatpush1.msra.mxu0 %v3463
    %3503 = vmatprep.subr.mxu0 0.0
    %3504 = vmatpush1.msra.mxu0 %v3462
    %3505 = vmatprep.subr.mxu0 0.0
    %3506 = vmatpush1.msra.mxu0 %v3461
    %3507 = vmatprep.subr.mxu0 0.0
    %3508 = vmatpush2.msra.mxu0 0.0
    %3509 = vmatprep.subr.mxu0 0.0
    %3510 = vmatpush2.msra.mxu0 0.0
    %3511 = vmatprep.subr.mxu0 0.0
    %3512 = vmatpush2.msra.mxu0 0.0
    %3513 = vmatprep.subr.mxu0 0.0
    %3514 = vmatpush2.msra.mxu0 0.0
    %3515 = vmatprep.subr.mxu0 0.0
    %3516 = vmatpush2.msra.mxu0 0.0
    %3517 = vmatprep.subr.mxu0 0.0
    %3518 = vmatpush2.msra.mxu0 0.0
    %3519 = vmatprep.subr.mxu0 0.0
    %3520 = vmatpush2.msra.mxu0 0.0
    %3521 = vmatprep.subr.mxu0 0.0
    %3522 = vmatpush2.msra.mxu0 0.0
    %3523 = vmatprep.subr.mxu0 0.0
    %3524 = vmatpush2.msra.mxu0 0.0
    %3525 = vmatprep.subr.mxu0 0.0
    %3526 = vmatpush2.msra.mxu0 0.0
    %3527 = vmatprep.subr.mxu0 0.0
    %3528 = vmatpush2.msra.mxu0 0.0
    %3529 = vmatprep.subr.mxu0 0.0
    %3530 = vmatpush2.msra.mxu0 0.0
    %3531 = vmatprep.subr.mxu0 0.0
    %3532 = vmatpush2.msra.mxu0 0.0
    %3533 = vmatprep.subr.mxu0 0.0
    %3534 = vmatpush2.msra.mxu0 0.0
    %3535 = vmatprep.subr.mxu0 0.0
    %3536 = vmatpush2.msra.mxu0 0.0
    %3537 = vmatprep.subr.mxu0 0.0
    %3538 = vmatpush2.msra.mxu0 0.0
    %3539 = vmatprep.mubr.f32.mxu0 0.0
    %3540 = vmatmul.mubr.f32.gmra.mxu0 %v3470
    %v3541 = vpop.f32.mrf.mxu0
    %v3542 = vadd.f32 %v3468, %v3541
    %v3543 = vpop.f32.mrf.mxu0
    %3544 = vmatprep.mubr.f32.mxu0 0.0
    %3545 = vmatmul.mubr.f32.gmra.mxu0 %v3473
    %v3546 = vpop.f32.mrf.mxu0
    %v3547 = vadd.f32 %v3468, %v3546
    %v3548 = vpop.f32.mrf.mxu0
    %3549 = vdwg.mxu0
    %v3550 = vmul.f32 %v3542, %v3542
    %v3551 = vmul.f32 %v3547, %v3547
    %v3552 = vmul.f32 %v3542, %v3550
    %v3553 = vmul.f32 %v3547, %v3551
    %v3554 = vmul.f32 %v3552, 0.044715
    %v3555 = vmul.f32 %v3553, 0.044715
    %v3556 = vadd.f32 %v3542, %v3554
    %v3557 = vadd.f32 %v3547, %v3555
    %v3558 = vmul.f32 %v3556, 0.7978846
    %v3559 = vmul.f32 %v3557, 0.7978846
    %v3560 = vtanh.pop %v3558
    %v3561 = vtanh.pop %v3559
    %v3562 = vadd.f32 %v3560, 1.0
    %v3563 = vadd.f32 %v3561, 1.0
    %v3564 = vmul.f32 %v3562, 0.5
    %v3565 = vmul.f32 %v3563, 0.5
    %v3566 = vmul.f32 %v3542, %v3564
    %v3567 = vmul.f32 %v3547, %v3565
    %s3568 = scalar_lea.vmem %s6, 64
    %v3569 = vld [vmem:[%s3568] sm:$0xff]
    %v3570 = vld [vmem:[%s3568 + $0x8] sm:$0xff]
    %v3571 = vld [vmem:[%s3568 + $0x10] sm:$0xff]
    %v3572 = vld [vmem:[%s3568 + $0x18] sm:$0xff]
    %v3573 = vld [vmem:[%s3568 + $0x20] sm:$0xff]
    %v3574 = vld [vmem:[%s3568 + $0x28] sm:$0xff]
    %v3575 = vld [vmem:[%s3568 + $0x30] sm:$0xff]
    %v3576 = vld [vmem:[%s3568 + $0x38] sm:$0xff]
    %v3577 = vlaneseq
    %v3578 = vshrl.u32 %v3577, 7
    %v3579 = vsub.s32 5, %v3578
    %v3580 = vrot.slane %v1891, %v3579
    %v3582 = vsel %vm1768, %v3566, 0
    %v3585 = vsel %vm1768, %v3567, 0
    %3587 = vmatprep.subr.mxu0 0.0
    %3588 = vmatpush1.msra.mxu0 0.0
    %3589 = vmatprep.subr.mxu0 0.0
    %3590 = vmatpush1.msra.mxu0 0.0
    %3591 = vmatprep.subr.mxu0 0.0
    %3592 = vmatpush1.msra.mxu0 0.0
    %3593 = vmatprep.subr.mxu0 0.0
    %3594 = vmatpush1.msra.mxu0 0.0
    %3595 = vmatprep.subr.mxu0 0.0
    %3596 = vmatpush1.msra.mxu0 0.0
    %3597 = vmatprep.subr.mxu0 0.0
    %3598 = vmatpush1.msra.mxu0 0.0
    %3599 = vmatprep.subr.mxu0 0.0
    %3600 = vmatpush1.msra.mxu0 0.0
    %3601 = vmatprep.subr.mxu0 0.0
    %3602 = vmatpush1.msra.mxu0 0.0
    %3603 = vmatprep.subr.mxu0 0.0
    %3604 = vmatpush1.msra.mxu0 %v3576
    %3605 = vmatprep.subr.mxu0 0.0
    %3606 = vmatpush1.msra.mxu0 %v3575
    %3607 = vmatprep.subr.mxu0 0.0
    %3608 = vmatpush1.msra.mxu0 %v3574
    %3609 = vmatprep.subr.mxu0 0.0
    %3610 = vmatpush1.msra.mxu0 %v3573
    %3611 = vmatprep.subr.mxu0 0.0
    %3612 = vmatpush1.msra.mxu0 %v3572
    %3613 = vmatprep.subr.mxu0 0.0
    %3614 = vmatpush1.msra.mxu0 %v3571
    %3615 = vmatprep.subr.mxu0 0.0
    %3616 = vmatpush1.msra.mxu0 %v3570
    %3617 = vmatprep.subr.mxu0 0.0
    %3618 = vmatpush1.msra.mxu0 %v3569
    %3619 = vmatprep.subr.mxu0 0.0
    %3620 = vmatpush2.msra.mxu0 0.0
    %3621 = vmatprep.subr.mxu0 0.0
    %3622 = vmatpush2.msra.mxu0 0.0
    %3623 = vmatprep.subr.mxu0 0.0
    %3624 = vmatpush2.msra.mxu0 0.0
    %3625 = vmatprep.subr.mxu0 0.0
    %3626 = vmatpush2.msra.mxu0 0.0
    %3627 = vmatprep.subr.mxu0 0.0
    %3628 = vmatpush2.msra.mxu0 0.0
    %3629 = vmatprep.subr.mxu0 0.0
    %3630 = vmatpush2.msra.mxu0 0.0
    %3631 = vmatprep.subr.mxu0 0.0
    %3632 = vmatpush2.msra.mxu0 0.0
    %3633 = vmatprep.subr.mxu0 0.0
    %3634 = vmatpush2.msra.mxu0 0.0
    %3635 = vmatprep.subr.mxu0 0.0
    %3636 = vmatpush2.msra.mxu0 0.0
    %3637 = vmatprep.subr.mxu0 0.0
    %3638 = vmatpush2.msra.mxu0 0.0
    %3639 = vmatprep.subr.mxu0 0.0
    %3640 = vmatpush2.msra.mxu0 0.0
    %3641 = vmatprep.subr.mxu0 0.0
    %3642 = vmatpush2.msra.mxu0 0.0
    %3643 = vmatprep.subr.mxu0 0.0
    %3644 = vmatpush2.msra.mxu0 0.0
    %3645 = vmatprep.subr.mxu0 0.0
    %3646 = vmatpush2.msra.mxu0 0.0
    %3647 = vmatprep.subr.mxu0 0.0
    %3648 = vmatpush2.msra.mxu0 0.0
    %3649 = vmatprep.subr.mxu0 0.0
    %3650 = vmatpush2.msra.mxu0 0.0
    %3651 = vmatprep.mubr.f32.mxu0 0.0
    %3652 = vmatmul.mubr.f32.gmra.mxu0 %v3582
    %v3653 = vpop.f32.mrf.mxu0
    %v3654 = vadd.f32 %v3580, %v3653
    %v3655 = vpop.f32.mrf.mxu0
    %3656 = vmatprep.mubr.f32.mxu0 0.0
    %3657 = vmatmul.mubr.f32.gmra.mxu0 %v3585
    %v3658 = vpop.f32.mrf.mxu0
    %v3659 = vadd.f32 %v3580, %v3658
    %v3660 = vpop.f32.mrf.mxu0
    %3661 = vdwg.mxu0
    %v3662 = vadd.f32 %v3458, %v3654
    %v3663 = vadd.f32 %v3459, %v3659
    %v3664 = vsel %vm53, %v3662, 0.0
    %3665 = vadd.xlane.f32.xlu0 %v3664
    %v3666 = vpop.xlane.xlu0 %3665
    %v3667 = vsel %vm53, %v3663, 0.0
    %3668 = vadd.xlane.f32.xlu0 %v3667
    %v3669 = vpop.xlane.xlu0 %3668
    %v3670 = vmul.f32 %v3666, %v1616
    %v3671 = vmul.f32 %v3669, %v1616
    %v3672 = vsub.f32 %v3662, %v3670
    %v3673 = vsub.f32 %v3663, %v3671
    %v3674 = vmul.f32 %v3672, %v3672
    %v3675 = vmul.f32 %v3673, %v3673
    %v3676 = vsel %vm53, %v3674, 0.0
    %3677 = vadd.xlane.f32.xlu0 %v3676
    %v3678 = vpop.xlane.xlu0 %3677
    %v3679 = vsel %vm53, %v3675, 0.0
    %3680 = vadd.xlane.f32.xlu0 %v3679
    %v3681 = vpop.xlane.xlu0 %3680
    %v3682 = vmul.f32 %v3678, %v1616
    %v3683 = vmul.f32 %v3681, %v1616
    %v3684 = vadd.f32 %v3682, 1e-12
    %v3685 = vadd.f32 %v3683, 1e-12
    %v3686 = vrsqrt.pop %v3684
    %v3687 = vrsqrt.pop %v3685
    %v3688 = vmul.f32 %v3672, %v3686
    %v3689 = vmul.f32 %v3673, %v3687
    %v3690 = vlaneseq
    %v3691 = vshrl.u32 %v3690, 7
    %v3692 = vsub.s32 6, %v3691
    %v3693 = vrot.slane %v1891, %v3692
    %v3694 = vmul.f32 %v3688, %v3693
    %v3695 = vmul.f32 %v3689, %v3693
    %v3696 = vlaneseq
    %v3697 = vshrl.u32 %v3696, 7
    %v3698 = vsub.s32 7, %v3697
    %v3699 = vrot.slane %v1891, %v3698
    %v3700 = vadd.f32 %v3694, %v3699
    %v3701 = vadd.f32 %v3695, %v3699
    %v3702 = vld [vmem:[%s8] sm:$0xff]
    %v3703 = vld [vmem:[%s8 + $0x8] sm:$0xff]
    %v3704 = vld [vmem:[%s8 + $0x10] sm:$0xff]
    %v3705 = vld [vmem:[%s8 + $0x18] sm:$0xff]
    %v3706 = vld [vmem:[%s9] sm:$0x1]
    %v3708 = vlaneseq
    %v3709 = vshrl.u32 %v3708, 7
    %v3710 = vsub.s32 0, %v3709
    %v3711 = vrot.slane %v3706, %v3710
    %v3715 = vrot.slane %v3701, 7
    %vm3716 = vcmask 1041409
    %v3717 = vsel %vm3716, %v3715, %v3700
    %v3718 = vsel %vm53, %v3717, 0
    %3720 = vmatprep.subr.mxu0 0.0
    %3721 = vmatpush1.msra.mxu0 0.0
    %3722 = vmatprep.subr.mxu0 0.0
    %3723 = vmatpush1.msra.mxu0 0.0
    %3724 = vmatprep.subr.mxu0 0.0
    %3725 = vmatpush1.msra.mxu0 0.0
    %3726 = vmatprep.subr.mxu0 0.0
    %3727 = vmatpush1.msra.mxu0 0.0
    %3728 = vmatprep.subr.mxu0 0.0
    %3729 = vmatpush1.msra.mxu0 0.0
    %3730 = vmatprep.subr.mxu0 0.0
    %3731 = vmatpush1.msra.mxu0 0.0
    %3732 = vmatprep.subr.mxu0 0.0
    %3733 = vmatpush1.msra.mxu0 0.0
    %3734 = vmatprep.subr.mxu0 0.0
    %3735 = vmatpush1.msra.mxu0 0.0
    %3736 = vmatprep.subr.mxu0 0.0
    %3737 = vmatpush1.msra.mxu0 0.0
    %3738 = vmatprep.subr.mxu0 0.0
    %3739 = vmatpush1.msra.mxu0 0.0
    %3740 = vmatprep.subr.mxu0 0.0
    %3741 = vmatpush1.msra.mxu0 0.0
    %3742 = vmatprep.subr.mxu0 0.0
    %3743 = vmatpush1.msra.mxu0 0.0
    %3744 = vmatprep.subr.mxu0 0.0
    %3745 = vmatpush1.msra.mxu0 %v3705
    %3746 = vmatprep.subr.mxu0 0.0
    %3747 = vmatpush1.msra.mxu0 %v3704
    %3748 = vmatprep.subr.mxu0 0.0
    %3749 = vmatpush1.msra.mxu0 %v3703
    %3750 = vmatprep.subr.mxu0 0.0
    %3751 = vmatpush1.msra.mxu0 %v3702
    %3752 = vmatprep.subr.mxu0 0.0
    %3753 = vmatpush2.msra.mxu0 0.0
    %3754 = vmatprep.subr.mxu0 0.0
    %3755 = vmatpush2.msra.mxu0 0.0
    %3756 = vmatprep.subr.mxu0 0.0
    %3757 = vmatpush2.msra.mxu0 0.0
    %3758 = vmatprep.subr.mxu0 0.0
    %3759 = vmatpush2.msra.mxu0 0.0
    %3760 = vmatprep.subr.mxu0 0.0
    %3761 = vmatpush2.msra.mxu0 0.0
    %3762 = vmatprep.subr.mxu0 0.0
    %3763 = vmatpush2.msra.mxu0 0.0
    %3764 = vmatprep.subr.mxu0 0.0
    %3765 = vmatpush2.msra.mxu0 0.0
    %3766 = vmatprep.subr.mxu0 0.0
    %3767 = vmatpush2.msra.mxu0 0.0
    %3768 = vmatprep.subr.mxu0 0.0
    %3769 = vmatpush2.msra.mxu0 0.0
    %3770 = vmatprep.subr.mxu0 0.0
    %3771 = vmatpush2.msra.mxu0 0.0
    %3772 = vmatprep.subr.mxu0 0.0
    %3773 = vmatpush2.msra.mxu0 0.0
    %3774 = vmatprep.subr.mxu0 0.0
    %3775 = vmatpush2.msra.mxu0 0.0
    %3776 = vmatprep.subr.mxu0 0.0
    %3777 = vmatpush2.msra.mxu0 0.0
    %3778 = vmatprep.subr.mxu0 0.0
    %3779 = vmatpush2.msra.mxu0 0.0
    %3780 = vmatprep.subr.mxu0 0.0
    %3781 = vmatpush2.msra.mxu0 0.0
    %3782 = vmatprep.subr.mxu0 0.0
    %3783 = vmatpush2.msra.mxu0 0.0
    %3784 = vmatprep.mubr.f32.mxu0 0.0
    %3785 = vmatmul.mubr.f32.gmra.mxu0 %v3718
    %v3786 = vpop.f32.mrf.mxu0
    %v3787 = vadd.f32 %v3711, %v3786
    %v3788 = vpop.f32.mrf.mxu0
    %3789 = vdwg.mxu0
    %v3790 = vtanh.pop %v3787
    %vm3791 = vcmask 254976
    %3792 = vst.msk [vmem:[#allocation2] sm:$0x3] %vm3791, %v3790
    %v3793 = vld [vmem:[%s2] sm:$0xff]
    %v3794 = vld [vmem:[%s2 + $0x8] sm:$0xff]
    %3796 = vset.pattern.permute.xlu0 0
    %3797 = vperm.xlu0 %3796, %v3793
    %v3798 = vpop.permute.xlu0 %3797
    %3801 = vset.pattern.permute.xlu0 0
    %3802 = vperm.xlu0 %3801, %v3794
    %v3803 = vpop.permute.xlu0 %3802
    %v3805 = vmul.f32 %v3700, %v3798
    %v3806 = vmul.f32 %v3701, %v3803
    %v3807 = vsel %vm53, %v3805, 0.0
    %v3808 = vrot.slane %v3807, 4
    %v3809 = vadd.f32 %v3807, %v3808
    %v3810 = vrot.slane %v3809, 2
    %v3811 = vadd.f32 %v3809, %v3810
    %v3812 = vrot.slane %v3811, 1
    %v3813 = vadd.f32 %v3811, %v3812
    %v3814 = vsel %vm53, %v3806, 0.0
    %v3815 = vrot.slane %v3814, 4
    %v3816 = vadd.f32 %v3814, %v3815
    %v3817 = vrot.slane %v3816, 2
    %v3818 = vadd.f32 %v3816, %v3817
    %v3819 = vrot.slane %v3818, 1
    %v3820 = vadd.f32 %v3818, %v3819
    %vm3821 = vcmask 58368
    %v3822 = vsel %vm3821, %v41, 0.0
    %3823 = vadd.xlane.f32.xlu0 %v3822
    %v3824 = vpop.xlane.xlu0 %3823
    %v3825 = vmax.f32 %v3824, 1e-09
    %v3827 = vrot.slane %v3825, 1
    %v3830 = vrcp.pop %v3825
    %v3831 = vmul.f32 %v3813, %v3830
    %v3832 = vrcp.pop %v3827
    %v3833 = vmul.f32 %v3820, %v3832
    %v3836 = vrot.slane %v3833, 7
    %v3837 = vsel %vm3716, %v3836, %v3831
    %3839 = vst.msk [vmem:[#allocation4] sm:$0x3] %vm3791, %v3837
    // Predicated region
    $region42: #{encoder_forward.1} parent=1 // pred_check
      _
    $region43: #{encoder_forward.1} parent=1 // pred_check_branch
      %3841 = sbr.rel (0) target = $region45
    $region44: #{encoder_forward.1} parent=1 // pred_region
      %s3843 = ssub.s32 32, 32
      %3844 = vsyncadd [#allocation3], %s3843
      %s3846 = sshll.u32 [#allocation2], 4
      %s3847 = int_to_ptr.vmem [resolvable:$true] %s3846
      %3849 = dma.vmem_to_hbm [thread:$0]  %s3847, 32, %s10, [#allocation3]
    $region45: #{encoder_forward.1} parent=1 // pred_fallthru
      _
    // Predicated region
    $region46: #{encoder_forward.1} parent=1 // pred_check
      _
    $region47: #{encoder_forward.1} parent=1 // pred_check_branch
      %3851 = sbr.rel (0) target = $region49
    $region48: #{encoder_forward.1} parent=1 // pred_region
      %s3853 = ssub.s32 32, 32
      %3854 = vsyncadd [#allocation5], %s3853
      %s3856 = sshll.u32 [#allocation4], 4
      %s3857 = int_to_ptr.vmem [resolvable:$true] %s3856
      %3859 = dma.vmem_to_hbm [thread:$0]  %s3857, 32, %s11, [#allocation5]
    $region49: #{encoder_forward.1} parent=1 // pred_fallthru
      _
    // Predicated region
    $region50: #{encoder_forward.1} parent=1 // pred_check
      _
    $region51: #{encoder_forward.1} parent=1 // pred_check_branch
      %3861 = sbr.rel (0) target = $region53
    $region52: #{encoder_forward.1} parent=1 // pred_region
      %3862 = dma.done [#allocation3], 32
    $region53: #{encoder_forward.1} parent=1 // pred_fallthru
      _
    // Predicated region
    $region54: #{encoder_forward.1} parent=1 // pred_check
      _
    $region55: #{encoder_forward.1} parent=1 // pred_check_branch
      %3864 = sbr.rel (0) target = $region57
    $region56: #{encoder_forward.1} parent=1 // pred_region
      %3865 = dma.done [#allocation5], 32
    $region57: #{encoder_forward.1} parent=1 // pred_fallthru
      _
    %3866 = vsyncpa [#allocation3], 1
    %3867 = vsyncpa [#allocation5], 1

</llo_original>
